<compile_context>
chip_gen: v5e
topology: v5e:2x2
jax: 0.10.0
libtpu: 0.0.40
codegen_flags: <defaults>
</compile_context>

<pallas_src>
import functools

import jax
import jax.numpy as jnp
from jax.experimental import pallas as pl
from jax.experimental.pallas import tpu as pltpu

_TRUNK_FOUT = (512, 512, 256, 256, 128, 64)
_BIAS_LANES = 512            # widest bias; bias slab is (8, 512) f32
_OUT_LANES = 128             # lane-dense padded output width
_TB_MAX = 1024               # batch-tile cap; sweep 512..2048 if tuning


def _device_kind():
    try:
        return jax.devices()[0].device_kind.lower()
    except Exception:
        return ""


_KIND = _device_kind()
# bf16 VALU exists on v6e/v7x; keep f32 elementwise on v2-v5 generations.
_BF16_ELEMENTWISE = not any(t in _KIND for t in ("v2", "v3", "v4", "v5"))
# Chips with 2 TensorCores per chip: keep the parallel grid >= 2 when B allows.
_MIN_GRID = 2 if any(t in _KIND for t in ("v4", "v5p", "v7")) else 1


# ----------------------------- kernel ---------------------------------------

def _mlp_kernel(x_ref, w1, w2, w3, w4, w5, w6, wh1, wh2, b_ref, out_ref,
                *, bf16_elementwise):
    ws = (w1, w2, w3, w4, w5, w6)

    h = x_ref[...]  # (TB, F_in) bfloat16 (pre-cast in the wrapper)

    # trunk: 6 x (Linear with folded BN -> ReLU); dropout identity in eval mode
    for i in range(6):
        fout = _TRUNK_FOUT[i]
        acc = jnp.dot(h, ws[i][...], preferred_element_type=jnp.float32)
        b = b_ref[i:i + 1, :fout]                     # (1, fout) f32 (tiny slice)
        if bf16_elementwise:
            h = jnp.maximum(acc.astype(jnp.bfloat16) + b.astype(jnp.bfloat16), 0.0)
        else:
            h = jnp.maximum(acc + b, 0.0).astype(jnp.bfloat16)

    # fused heads, stage 1: [goals_hidden | result_hidden] = relu(h @ Wh1 + bh1)
    acc = jnp.dot(h, wh1[...], preferred_element_type=jnp.float32)
    b1 = b_ref[6:7, :64]
    if bf16_elementwise:
        g = jnp.maximum(acc.astype(jnp.bfloat16) + b1.astype(jnp.bfloat16), 0.0)
    else:
        g = jnp.maximum(acc + b1, 0.0).astype(jnp.bfloat16)

    # fused heads, stage 2: block-diagonal (64,128); lanes 0,1 goals; lane 2 result.
    # No tanh / no lane mask here -- the wrapper applies tanh to column 2 after
    # slicing (single-lane EUP work moved out of the kernel).
    b2 = b_ref[7:8, :_OUT_LANES]
    out_ref[...] = jnp.dot(g, wh2[...], preferred_element_type=jnp.float32) + b2


# ----------------------------- wrapper ---------------------------------------

def _round_up8(n):
    return ((n + 7) // 8) * 8


def _choose_tiling(batch, tb_max=_TB_MAX, min_grid=_MIN_GRID):
    """Pick TB ~ round_up8(cdiv(B, n_tiles)) to minimize padding, with n >= min_grid
    whenever the batch is large enough (so 2-TC chips keep both cores busy)."""
    b8 = _round_up8(batch)
    n = max(min_grid, pl.cdiv(b8, tb_max))
    tb = _round_up8(pl.cdiv(b8, n))
    n = pl.cdiv(b8, tb)
    if n < min_grid and b8 >= min_grid * 8:
        tb = _round_up8(pl.cdiv(b8, min_grid))
        n = pl.cdiv(b8, tb)
    return tb, n, tb * n


def _const_spec(shape, buffered):
    # Grid-invariant (weight / bias) operand: constant index map; single buffer
    # when the JAX version supports pipeline_mode=pl.Buffered(1).
    if buffered:
        return pl.BlockSpec(shape, lambda i: (0, 0), pipeline_mode=pl.Buffered(1))
    return pl.BlockSpec(shape, lambda i: (0, 0))


def _build_and_run(x_bf16, weights, bias_slab, tb, n_tiles, vmem_bytes, buffered):
    b_pad, f_in = x_bf16.shape

    in_specs = [pl.BlockSpec((tb, f_in), lambda i: (i, 0))]
    for w in weights:
        in_specs.append(_const_spec(w.shape, buffered))
    in_specs.append(_const_spec(bias_slab.shape, buffered))

    out_spec = pl.BlockSpec((tb, _OUT_LANES), lambda i: (i, 0))   # lane-dense store

    cp_kwargs = dict(dimension_semantics=("parallel",))
    if vmem_bytes is not None:
        cp_kwargs["vmem_limit_bytes"] = vmem_bytes

    fn = pl.pallas_call(
        functools.partial(_mlp_kernel, bf16_elementwise=_BF16_ELEMENTWISE),
        out_shape=jax.ShapeDtypeStruct((b_pad, _OUT_LANES), jnp.float32),
        grid_spec=pltpu.PrefetchScalarGridSpec(
            num_scalar_prefetch=0,
            grid=(n_tiles,),
            in_specs=in_specs,
            out_specs=out_spec,
        ),
        compiler_params=pltpu.CompilerParams(**cp_kwargs),
    )
    return fn(x_bf16, *weights, bias_slab)


def soccer_forward(x, weights, bias_slab):
    """x: (B, F) float32. weights: list of 8 bf16 (fin,fout) arrays.
    bias_slab: (8, 512) float32. Returns (B, 3) float32 [goals0, goals1, result]."""
    B, F = x.shape
    tb, n_tiles, b_pad = _choose_tiling(B)

    # Pre-cast input to bf16 (numerically identical to casting at the first dot;
    # halves input HBM/DMA traffic and removes one in-kernel pack pass per tile).
    xb = x.astype(jnp.bfloat16)
    if b_pad != B:
        xb = jnp.pad(xb, ((0, b_pad - B), (0, 0)))

    # Scoped-VMEM bump for big tiles (v5e default scoped limit is only 16 MiB).
    vmem_bytes = None
    if tb >= 1024:
        w_bytes = sum(int(w.size) * w.dtype.itemsize for w in weights)
        w_bytes += int(bias_slab.size) * bias_slab.dtype.itemsize
        # double-buffered bf16 x + double-buffered f32 out slab + ~3 widest f32 live
        act_bytes = tb * (2 * F * 2 + 2 * _OUT_LANES * 4 + 3 * 512 * 4)
        vmem_bytes = int(min(2 * w_bytes + 2 * act_bytes, 64 * 2 ** 20))

    buffered = hasattr(pl, "Buffered")
    try:
        out = _build_and_run(xb, weights, bias_slab, tb, n_tiles, vmem_bytes, buffered)
    except Exception:
        if not buffered:
            raise
        # Fallback for JAX versions that reject pipeline_mode=Buffered(1) here.
        out = _build_and_run(xb, weights, bias_slab, tb, n_tiles, vmem_bytes, False)

    out = out[:B, :3]
    # tanh only on the result column, fused with the slice in the XLA epilogue.
    return jnp.concatenate([out[:, :2], jnp.tanh(out[:, 2:3])], axis=1)


# -------------------------- parameter setup ----------------------------------

def _make_raw_params(key, input_size):
    """Deterministic synthetic parameters matching the PyTorch module's shapes.
    Linear weights are generated directly as (in_features, out_features)."""
    trunk_dims = [(input_size, 512), (512, 512), (512, 256),
                  (256, 256), (256, 128), (128, 64)]
    trunk = []
    for (fin, fout) in trunk_dims:
        key, kw, kb, kg, kbe, km, kv = jax.random.split(key, 7)
        w = jax.random.normal(kw, (fin, fout), jnp.float32) * (1.0 / jnp.sqrt(fin))
        b = jax.random.normal(kb, (fout,), jnp.float32) * 0.05
        gamma = 1.0 + 0.1 * jax.random.normal(kg, (fout,), jnp.float32)
        beta = 0.05 * jax.random.normal(kbe, (fout,), jnp.float32)
        mean = 0.05 * jax.random.normal(km, (fout,), jnp.float32)
        var = 1.0 + jnp.abs(0.1 * jax.random.normal(kv, (fout,), jnp.float32))
        trunk.append((w, b, gamma, beta, mean, var))

    def linear(k, fin, fout):
        kw, kb = jax.random.split(k)
        w = jax.random.normal(kw, (fin, fout), jnp.float32) * (1.0 / jnp.sqrt(fin))
        b = jax.random.normal(kb, (fout,), jnp.float32) * 0.05
        return w, b

    key, k1, k2, k3, k4 = jax.random.split(key, 5)
    heads = {
        "gw1_gb1": linear(k1, 64, 32),   # goals_head[0]
        "gw2_gb2": linear(k2, 32, 2),    # goals_head[2]
        "rw1_rb1": linear(k3, 64, 32),   # result_head[0]
        "rw2_rb2": linear(k4, 32, 1),    # result_head[2]
    }
    return trunk, heads


def _fold_and_pack(trunk, heads, eps=1e-5):
    """Fold eval-mode BN + bias into weights, fuse heads, pack into 9 arrays."""
    weights = []
    biases = []

    # Linear -> BatchNorm1d(eval) -> ReLU  ==>  relu(x @ (W*scale) + (b*scale+shift))
    for (w, b, gamma, beta, mean, var) in trunk:
        scale = gamma / jnp.sqrt(var + eps)
        shift = beta - mean * scale
        weights.append((w * scale[None, :]).astype(jnp.bfloat16))
        biases.append(b * scale + shift)

    gw1, gb1 = heads["gw1_gb1"]
    gw2, gb2 = heads["gw2_gb2"]
    rw1, rb1 = heads["rw1_rb1"]
    rw2, rb2 = heads["rw2_rb2"]

    # stage-1 fusion: [goals_hidden | result_hidden]
    wh1 = jnp.concatenate([gw1, rw1], axis=1)        # (64, 64)
    bh1 = jnp.concatenate([gb1, rb1], axis=0)        # (64,)

    # stage-2 fusion: block-diagonal, lane-padded to 128
    wh2 = jnp.zeros((64, _OUT_LANES), jnp.float32)
    wh2 = wh2.at[:32, 0:2].set(gw2)                  # goals output (lanes 0,1)
    wh2 = wh2.at[32:64, 2:3].set(rw2)                # result output (lane 2)
    bh2 = jnp.zeros((_OUT_LANES,), jnp.float32)
    bh2 = bh2.at[0:2].set(gb2)
    bh2 = bh2.at[2:3].set(rb2)

    weights.append(wh1.astype(jnp.bfloat16))
    weights.append(wh2.astype(jnp.bfloat16))
    biases.append(bh1)
    biases.append(bh2)

    bias_slab = jnp.zeros((8, _BIAS_LANES), jnp.float32)
    for i, b in enumerate(biases):
        bias_slab = bias_slab.at[i, :b.shape[0]].set(b)

    return weights, bias_slab


# -------------------------- pure-JAX reference --------------------------------

def _reference_forward(x, trunk, heads, eps=1e-5):
    h = x
    for (w, b, gamma, beta, mean, var) in trunk:
        h = h @ w + b
        h = (h - mean) / jnp.sqrt(var + eps) * gamma + beta
        h = jnp.maximum(h, 0.0)
    gw1, gb1 = heads["gw1_gb1"]
    gw2, gb2 = heads["gw2_gb2"]
    rw1, rb1 = heads["rw1_rb1"]
    rw2, rb2 = heads["rw2_rb2"]
    goals = jnp.maximum(h @ gw1 + gb1, 0.0) @ gw2 + gb2
    result = jnp.tanh(jnp.maximum(h @ rw1 + rb1, 0.0) @ rw2 + rb2)
    return jnp.concatenate([goals, result], axis=1)


# ------------------------------ main ------------------------------------------

if __name__ == "__main__":
    INPUT_SIZE = 64
    BATCH = 8

    key = jax.random.PRNGKey(0)
    kx, kp = jax.random.split(key)
    x = jax.random.normal(kx, (BATCH, INPUT_SIZE), jnp.float32)

    trunk, heads = _make_raw_params(kp, INPUT_SIZE)
    weights, bias_slab = _fold_and_pack(trunk, heads)

    out = soccer_forward(x, weights, bias_slab)
    out = jax.block_until_ready(out)

    assert out.shape == (BATCH, 3) and out.dtype == jnp.float32
    assert bool(jnp.all(jnp.isfinite(out)))

    ref = _reference_forward(x, trunk, heads)
    max_err = float(jnp.max(jnp.abs(out - ref)))
    assert max_err < 0.1, f"kernel/reference mismatch: max abs err {max_err}"

    print("KERNEL_OK")
</pallas_src>

<mosaic_0001>
module attributes {stable_mosaic.version = 11 : i64} {
  func.func @_mlp_kernel(%arg0: i32, %arg1: memref<8x64xbf16, #tpu.memory_space<vmem>>, %arg2: memref<64x512xbf16, #tpu.memory_space<vmem>>, %arg3: memref<512x512xbf16, #tpu.memory_space<vmem>>, %arg4: memref<512x256xbf16, #tpu.memory_space<vmem>>, %arg5: memref<256x256xbf16, #tpu.memory_space<vmem>>, %arg6: memref<256x128xbf16, #tpu.memory_space<vmem>>, %arg7: memref<128x64xbf16, #tpu.memory_space<vmem>>, %arg8: memref<64x64xbf16, #tpu.memory_space<vmem>>, %arg9: memref<64x128xbf16, #tpu.memory_space<vmem>>, %arg10: memref<8x512xf32, #tpu.memory_space<vmem>>, %arg11: memref<8x128xf32, #tpu.memory_space<vmem>>) attributes {dimension_semantics = [#tpu.dimension_semantics<parallel>], iteration_bounds = array<i64: 1>, scalar_prefetch = 0 : i64, scratch_operands = 0 : i64, tpu.core_type = #tpu.core_type<tc>, window_params = [{transform_indices = @transform_0, window_bounds = array<i64: 8, 64>}, {pipeline_mode = #tpu.pipeline_mode<synchronous>, transform_indices = @transform_1, window_bounds = array<i64: 64, 512>}, {pipeline_mode = #tpu.pipeline_mode<synchronous>, transform_indices = @transform_2, window_bounds = array<i64: 512, 512>}, {pipeline_mode = #tpu.pipeline_mode<synchronous>, transform_indices = @transform_3, window_bounds = array<i64: 512, 256>}, {pipeline_mode = #tpu.pipeline_mode<synchronous>, transform_indices = @transform_4, window_bounds = array<i64: 256, 256>}, {pipeline_mode = #tpu.pipeline_mode<synchronous>, transform_indices = @transform_5, window_bounds = array<i64: 256, 128>}, {pipeline_mode = #tpu.pipeline_mode<synchronous>, transform_indices = @transform_6, window_bounds = array<i64: 128, 64>}, {pipeline_mode = #tpu.pipeline_mode<synchronous>, transform_indices = @transform_7, window_bounds = array<i64: 64, 64>}, {pipeline_mode = #tpu.pipeline_mode<synchronous>, transform_indices = @transform_8, window_bounds = array<i64: 64, 128>}, {pipeline_mode = #tpu.pipeline_mode<synchronous>, transform_indices = @transform_9, window_bounds = array<i64: 8, 512>}, {transform_indices = @transform_10, window_bounds = array<i64: 8, 128>}]} {
    %c0 = arith.constant 0 : index
    %c0_0 = arith.constant 0 : index
    %0 = vector.load %arg1[%c0, %c0_0] : memref<8x64xbf16, #tpu.memory_space<vmem>>, vector<8x64xbf16>
    %c0_1 = arith.constant 0 : index
    %c0_2 = arith.constant 0 : index
    %1 = vector.load %arg2[%c0_1, %c0_2] : memref<64x512xbf16, #tpu.memory_space<vmem>>, vector<64x512xbf16>
    %cst = arith.constant dense<0.000000e+00> : vector<8x512xf32>
    %2 = tpu.matmul %0, %1, %cst {dimension_numbers = #tpu.dot_dimension_numbers<[1], [0], [0], [1], [0, 0, 1, 1], [], []>} : vector<8x64xbf16>, vector<64x512xbf16>, vector<8x512xf32> -> vector<8x512xf32>
    %c0_3 = arith.constant 0 : index
    %c0_4 = arith.constant 0 : index
    %3 = vector.load %arg10[%c0_3, %c0_4] : memref<8x512xf32, #tpu.memory_space<vmem>>, vector<1x512xf32>
    %4 = arith.truncf %2 : vector<8x512xf32> to vector<8x512xbf16>
    %5 = arith.truncf %3 : vector<1x512xf32> to vector<1x512xbf16>
    %6 = vector.broadcast %5 : vector<1x512xbf16> to vector<8x512xbf16>
    %7 = arith.addf %4, %6 : vector<8x512xbf16>
    %cst_5 = arith.constant 0.000000e+00 : bf16
    %8 = vector.broadcast %cst_5 : bf16 to vector<8x512xbf16>
    %9 = arith.maximumf %7, %8 : vector<8x512xbf16>
    %c0_6 = arith.constant 0 : index
    %c0_7 = arith.constant 0 : index
    %10 = vector.load %arg3[%c0_6, %c0_7] : memref<512x512xbf16, #tpu.memory_space<vmem>>, vector<512x512xbf16>
    %cst_8 = arith.constant dense<0.000000e+00> : vector<8x512xf32>
    %11 = tpu.matmul %9, %10, %cst_8 {dimension_numbers = #tpu.dot_dimension_numbers<[1], [0], [0], [1], [0, 0, 1, 1], [], []>} : vector<8x512xbf16>, vector<512x512xbf16>, vector<8x512xf32> -> vector<8x512xf32>
    %c1 = arith.constant 1 : index
    %c0_9 = arith.constant 0 : index
    %12 = vector.load %arg10[%c1, %c0_9] : memref<8x512xf32, #tpu.memory_space<vmem>>, vector<1x512xf32>
    %13 = arith.truncf %11 : vector<8x512xf32> to vector<8x512xbf16>
    %14 = arith.truncf %12 : vector<1x512xf32> to vector<1x512xbf16>
    %15 = vector.broadcast %14 : vector<1x512xbf16> to vector<8x512xbf16>
    %16 = arith.addf %13, %15 : vector<8x512xbf16>
    %cst_10 = arith.constant 0.000000e+00 : bf16
    %17 = vector.broadcast %cst_10 : bf16 to vector<8x512xbf16>
    %18 = arith.maximumf %16, %17 : vector<8x512xbf16>
    %c0_11 = arith.constant 0 : index
    %c0_12 = arith.constant 0 : index
    %19 = vector.load %arg4[%c0_11, %c0_12] : memref<512x256xbf16, #tpu.memory_space<vmem>>, vector<512x256xbf16>
    %cst_13 = arith.constant dense<0.000000e+00> : vector<8x256xf32>
    %20 = tpu.matmul %18, %19, %cst_13 {dimension_numbers = #tpu.dot_dimension_numbers<[1], [0], [0], [1], [0, 0, 1, 1], [], []>} : vector<8x512xbf16>, vector<512x256xbf16>, vector<8x256xf32> -> vector<8x256xf32>
    %c2 = arith.constant 2 : index
    %c0_14 = arith.constant 0 : index
    %21 = vector.load %arg10[%c2, %c0_14] : memref<8x512xf32, #tpu.memory_space<vmem>>, vector<1x256xf32>
    %22 = arith.truncf %20 : vector<8x256xf32> to vector<8x256xbf16>
    %23 = arith.truncf %21 : vector<1x256xf32> to vector<1x256xbf16>
    %24 = vector.broadcast %23 : vector<1x256xbf16> to vector<8x256xbf16>
    %25 = arith.addf %22, %24 : vector<8x256xbf16>
    %cst_15 = arith.constant 0.000000e+00 : bf16
    %26 = vector.broadcast %cst_15 : bf16 to vector<8x256xbf16>
    %27 = arith.maximumf %25, %26 : vector<8x256xbf16>
    %c0_16 = arith.constant 0 : index
    %c0_17 = arith.constant 0 : index
    %28 = vector.load %arg5[%c0_16, %c0_17] : memref<256x256xbf16, #tpu.memory_space<vmem>>, vector<256x256xbf16>
    %cst_18 = arith.constant dense<0.000000e+00> : vector<8x256xf32>
    %29 = tpu.matmul %27, %28, %cst_18 {dimension_numbers = #tpu.dot_dimension_numbers<[1], [0], [0], [1], [0, 0, 1, 1], [], []>} : vector<8x256xbf16>, vector<256x256xbf16>, vector<8x256xf32> -> vector<8x256xf32>
    %c3 = arith.constant 3 : index
    %c0_19 = arith.constant 0 : index
    %30 = vector.load %arg10[%c3, %c0_19] : memref<8x512xf32, #tpu.memory_space<vmem>>, vector<1x256xf32>
    %31 = arith.truncf %29 : vector<8x256xf32> to vector<8x256xbf16>
    %32 = arith.truncf %30 : vector<1x256xf32> to vector<1x256xbf16>
    %33 = vector.broadcast %32 : vector<1x256xbf16> to vector<8x256xbf16>
    %34 = arith.addf %31, %33 : vector<8x256xbf16>
    %cst_20 = arith.constant 0.000000e+00 : bf16
    %35 = vector.broadcast %cst_20 : bf16 to vector<8x256xbf16>
    %36 = arith.maximumf %34, %35 : vector<8x256xbf16>
    %c0_21 = arith.constant 0 : index
    %c0_22 = arith.constant 0 : index
    %37 = vector.load %arg6[%c0_21, %c0_22] : memref<256x128xbf16, #tpu.memory_space<vmem>>, vector<256x128xbf16>
    %cst_23 = arith.constant dense<0.000000e+00> : vector<8x128xf32>
    %38 = tpu.matmul %36, %37, %cst_23 {dimension_numbers = #tpu.dot_dimension_numbers<[1], [0], [0], [1], [0, 0, 1, 1], [], []>} : vector<8x256xbf16>, vector<256x128xbf16>, vector<8x128xf32> -> vector<8x128xf32>
    %c4 = arith.constant 4 : index
    %c0_24 = arith.constant 0 : index
    %39 = vector.load %arg10[%c4, %c0_24] : memref<8x512xf32, #tpu.memory_space<vmem>>, vector<1x128xf32>
    %40 = arith.truncf %38 : vector<8x128xf32> to vector<8x128xbf16>
    %41 = arith.truncf %39 : vector<1x128xf32> to vector<1x128xbf16>
    %42 = vector.broadcast %41 : vector<1x128xbf16> to vector<8x128xbf16>
    %43 = arith.addf %40, %42 : vector<8x128xbf16>
    %cst_25 = arith.constant 0.000000e+00 : bf16
    %44 = vector.broadcast %cst_25 : bf16 to vector<8x128xbf16>
    %45 = arith.maximumf %43, %44 : vector<8x128xbf16>
    %c0_26 = arith.constant 0 : index
    %c0_27 = arith.constant 0 : index
    %46 = vector.load %arg7[%c0_26, %c0_27] : memref<128x64xbf16, #tpu.memory_space<vmem>>, vector<128x64xbf16>
    %cst_28 = arith.constant dense<0.000000e+00> : vector<8x64xf32>
    %47 = tpu.matmul %45, %46, %cst_28 {dimension_numbers = #tpu.dot_dimension_numbers<[1], [0], [0], [1], [0, 0, 1, 1], [], []>} : vector<8x128xbf16>, vector<128x64xbf16>, vector<8x64xf32> -> vector<8x64xf32>
    %c5 = arith.constant 5 : index
    %c0_29 = arith.constant 0 : index
    %48 = vector.load %arg10[%c5, %c0_29] : memref<8x512xf32, #tpu.memory_space<vmem>>, vector<1x64xf32>
    %49 = arith.truncf %47 : vector<8x64xf32> to vector<8x64xbf16>
    %50 = arith.truncf %48 : vector<1x64xf32> to vector<1x64xbf16>
    %51 = vector.broadcast %50 : vector<1x64xbf16> to vector<8x64xbf16>
    %52 = arith.addf %49, %51 : vector<8x64xbf16>
    %cst_30 = arith.constant 0.000000e+00 : bf16
    %53 = vector.broadcast %cst_30 : bf16 to vector<8x64xbf16>
    %54 = arith.maximumf %52, %53 : vector<8x64xbf16>
    %c0_31 = arith.constant 0 : index
    %c0_32 = arith.constant 0 : index
    %55 = vector.load %arg8[%c0_31, %c0_32] : memref<64x64xbf16, #tpu.memory_space<vmem>>, vector<64x64xbf16>
    %cst_33 = arith.constant dense<0.000000e+00> : vector<8x64xf32>
    %56 = tpu.matmul %54, %55, %cst_33 {dimension_numbers = #tpu.dot_dimension_numbers<[1], [0], [0], [1], [0, 0, 1, 1], [], []>} : vector<8x64xbf16>, vector<64x64xbf16>, vector<8x64xf32> -> vector<8x64xf32>
    %c6 = arith.constant 6 : index
    %c0_34 = arith.constant 0 : index
    %57 = vector.load %arg10[%c6, %c0_34] : memref<8x512xf32, #tpu.memory_space<vmem>>, vector<1x64xf32>
    %58 = arith.truncf %56 : vector<8x64xf32> to vector<8x64xbf16>
    %59 = arith.truncf %57 : vector<1x64xf32> to vector<1x64xbf16>
    %60 = vector.broadcast %59 : vector<1x64xbf16> to vector<8x64xbf16>
    %61 = arith.addf %58, %60 : vector<8x64xbf16>
    %cst_35 = arith.constant 0.000000e+00 : bf16
    %62 = vector.broadcast %cst_35 : bf16 to vector<8x64xbf16>
    %63 = arith.maximumf %61, %62 : vector<8x64xbf16>
    %c7 = arith.constant 7 : index
    %c0_36 = arith.constant 0 : index
    %64 = vector.load %arg10[%c7, %c0_36] : memref<8x512xf32, #tpu.memory_space<vmem>>, vector<1x128xf32>
    %c0_37 = arith.constant 0 : index
    %c0_38 = arith.constant 0 : index
    %65 = vector.load %arg9[%c0_37, %c0_38] : memref<64x128xbf16, #tpu.memory_space<vmem>>, vector<64x128xbf16>
    %cst_39 = arith.constant dense<0.000000e+00> : vector<8x128xf32>
    %66 = tpu.matmul %63, %65, %cst_39 {dimension_numbers = #tpu.dot_dimension_numbers<[1], [0], [0], [1], [0, 0, 1, 1], [], []>} : vector<8x64xbf16>, vector<64x128xbf16>, vector<8x128xf32> -> vector<8x128xf32>
    %67 = vector.broadcast %64 : vector<1x128xf32> to vector<8x128xf32>
    %68 = arith.addf %66, %67 : vector<8x128xf32>
    %c0_40 = arith.constant 0 : index
    %c0_41 = arith.constant 0 : index
    %69 = vector.load %arg11[%c0_40, %c0_41] : memref<8x128xf32, #tpu.memory_space<vmem>>, vector<8x128xf32>
    tpu.vector_store %arg11[%c0_40, %c0_41], %68 {strides = array<i32>} : memref<8x128xf32, #tpu.memory_space<vmem>>, vector<8x128xf32>,
    return
  }
  func.func @transform_0(%arg0: i32) -> (i32, i32) {
    %c0_i32 = arith.constant 0 : i32
    %c0_i32_0 = arith.constant 0 : i32
    return %arg0, %c0_i32 : i32, i32
  }
  func.func @transform_1(%arg0: i32) -> (i32, i32) {
    %c0_i32 = arith.constant 0 : i32
    %c0_i32_0 = arith.constant 0 : i32
    %c0_i32_1 = arith.constant 0 : i32
    return %c0_i32, %c0_i32_0 : i32, i32
  }
  func.func @transform_2(%arg0: i32) -> (i32, i32) {
    %c0_i32 = arith.constant 0 : i32
    %c0_i32_0 = arith.constant 0 : i32
    %c0_i32_1 = arith.constant 0 : i32
    return %c0_i32, %c0_i32_0 : i32, i32
  }
  func.func @transform_3(%arg0: i32) -> (i32, i32) {
    %c0_i32 = arith.constant 0 : i32
    %c0_i32_0 = arith.constant 0 : i32
    %c0_i32_1 = arith.constant 0 : i32
    return %c0_i32, %c0_i32_0 : i32, i32
  }
  func.func @transform_4(%arg0: i32) -> (i32, i32) {
    %c0_i32 = arith.constant 0 : i32
    %c0_i32_0 = arith.constant 0 : i32
    %c0_i32_1 = arith.constant 0 : i32
    return %c0_i32, %c0_i32_0 : i32, i32
  }
  func.func @transform_5(%arg0: i32) -> (i32, i32) {
    %c0_i32 = arith.constant 0 : i32
    %c0_i32_0 = arith.constant 0 : i32
    %c0_i32_1 = arith.constant 0 : i32
    return %c0_i32, %c0_i32_0 : i32, i32
  }
  func.func @transform_6(%arg0: i32) -> (i32, i32) {
    %c0_i32 = arith.constant 0 : i32
    %c0_i32_0 = arith.constant 0 : i32
    %c0_i32_1 = arith.constant 0 : i32
    return %c0_i32, %c0_i32_0 : i32, i32
  }
  func.func @transform_7(%arg0: i32) -> (i32, i32) {
    %c0_i32 = arith.constant 0 : i32
    %c0_i32_0 = arith.constant 0 : i32
    %c0_i32_1 = arith.constant 0 : i32
    return %c0_i32, %c0_i32_0 : i32, i32
  }
  func.func @transform_8(%arg0: i32) -> (i32, i32) {
    %c0_i32 = arith.constant 0 : i32
    %c0_i32_0 = arith.constant 0 : i32
    %c0_i32_1 = arith.constant 0 : i32
    return %c0_i32, %c0_i32_0 : i32, i32
  }
  func.func @transform_9(%arg0: i32) -> (i32, i32) {
    %c0_i32 = arith.constant 0 : i32
    %c0_i32_0 = arith.constant 0 : i32
    %c0_i32_1 = arith.constant 0 : i32
    return %c0_i32, %c0_i32_0 : i32, i32
  }
  func.func @transform_10(%arg0: i32) -> (i32, i32) {
    %c0_i32 = arith.constant 0 : i32
    %c0_i32_0 = arith.constant 0 : i32
    return %arg0, %c0_i32 : i32, i32
  }
}

module attributes {stable_mosaic.version = 11 : i64} {
  func.func @_mlp_kernel(%arg0: i32, %arg1: memref<8x64xbf16, #tpu.memory_space<vmem>>, %arg2: memref<64x512xbf16, #tpu.memory_space<vmem>>, %arg3: memref<512x512xbf16, #tpu.memory_space<vmem>>, %arg4: memref<512x256xbf16, #tpu.memory_space<vmem>>, %arg5: memref<256x256xbf16, #tpu.memory_space<vmem>>, %arg6: memref<256x128xbf16, #tpu.memory_space<vmem>>, %arg7: memref<128x64xbf16, #tpu.memory_space<vmem>>, %arg8: memref<64x64xbf16, #tpu.memory_space<vmem>>, %arg9: memref<64x128xbf16, #tpu.memory_space<vmem>>, %arg10: memref<8x512xf32, #tpu.memory_space<vmem>>, %arg11: memref<8x128xf32, #tpu.memory_space<vmem>>) attributes {dimension_semantics = [#tpu.dimension_semantics<parallel>], iteration_bounds = array<i64: 1>, scalar_prefetch = 0 : i64, scratch_operands = 0 : i64, tpu.core_type = #tpu.core_type<tc>, window_params = [{transform_indices = @transform_0, window_bounds = array<i64: 8, 64>}, {pipeline_mode = #tpu.pipeline_mode<synchronous>, transform_indices = @transform_1, window_bounds = array<i64: 64, 512>}, {pipeline_mode = #tpu.pipeline_mode<synchronous>, transform_indices = @transform_2, window_bounds = array<i64: 512, 512>}, {pipeline_mode = #tpu.pipeline_mode<synchronous>, transform_indices = @transform_3, window_bounds = array<i64: 512, 256>}, {pipeline_mode = #tpu.pipeline_mode<synchronous>, transform_indices = @transform_4, window_bounds = array<i64: 256, 256>}, {pipeline_mode = #tpu.pipeline_mode<synchronous>, transform_indices = @transform_5, window_bounds = array<i64: 256, 128>}, {pipeline_mode = #tpu.pipeline_mode<synchronous>, transform_indices = @transform_6, window_bounds = array<i64: 128, 64>}, {pipeline_mode = #tpu.pipeline_mode<synchronous>, transform_indices = @transform_7, window_bounds = array<i64: 64, 64>}, {pipeline_mode = #tpu.pipeline_mode<synchronous>, transform_indices = @transform_8, window_bounds = array<i64: 64, 128>}, {pipeline_mode = #tpu.pipeline_mode<synchronous>, transform_indices = @transform_9, window_bounds = array<i64: 8, 512>}, {transform_indices = @transform_10, window_bounds = array<i64: 8, 128>}]} {
    %c0 = arith.constant 0 : index
    %c0_0 = arith.constant 0 : index
    %0 = vector.load %arg1[%c0, %c0_0] : memref<8x64xbf16, #tpu.memory_space<vmem>>, vector<8x64xbf16>
    %c0_1 = arith.constant 0 : index
    %c0_2 = arith.constant 0 : index
    %1 = vector.load %arg2[%c0_1, %c0_2] : memref<64x512xbf16, #tpu.memory_space<vmem>>, vector<64x512xbf16>
    %cst = arith.constant dense<0.000000e+00> : vector<8x512xf32>
    %2 = tpu.matmul %0, %1, %cst {dimension_numbers = #tpu.dot_dimension_numbers<[1], [0], [0], [1], [0, 0, 1, 1], [], []>} : vector<8x64xbf16>, vector<64x512xbf16>, vector<8x512xf32> -> vector<8x512xf32>
    %c0_3 = arith.constant 0 : index
    %c0_4 = arith.constant 0 : index
    %3 = vector.load %arg10[%c0_3, %c0_4] : memref<8x512xf32, #tpu.memory_space<vmem>>, vector<1x512xf32>
    %4 = arith.truncf %2 : vector<8x512xf32> to vector<8x512xbf16>
    %5 = arith.truncf %3 : vector<1x512xf32> to vector<1x512xbf16>
    %6 = vector.broadcast %5 : vector<1x512xbf16> to vector<8x512xbf16>
    %7 = arith.addf %4, %6 : vector<8x512xbf16>
    %cst_5 = arith.constant 0.000000e+00 : bf16
    %8 = vector.broadcast %cst_5 : bf16 to vector<8x512xbf16>
    %9 = arith.maximumf %7, %8 : vector<8x512xbf16>
    %c0_6 = arith.constant 0 : index
    %c0_7 = arith.constant 0 : index
    %10 = vector.load %arg3[%c0_6, %c0_7] : memref<512x512xbf16, #tpu.memory_space<vmem>>, vector<512x512xbf16>
    %cst_8 = arith.constant dense<0.000000e+00> : vector<8x512xf32>
    %11 = tpu.matmul %9, %10, %cst_8 {dimension_numbers = #tpu.dot_dimension_numbers<[1], [0], [0], [1], [0, 0, 1, 1], [], []>} : vector<8x512xbf16>, vector<512x512xbf16>, vector<8x512xf32> -> vector<8x512xf32>
    %c1 = arith.constant 1 : index
    %c0_9 = arith.constant 0 : index
    %12 = vector.load %arg10[%c1, %c0_9] : memref<8x512xf32, #tpu.memory_space<vmem>>, vector<1x512xf32>
    %13 = arith.truncf %11 : vector<8x512xf32> to vector<8x512xbf16>
    %14 = arith.truncf %12 : vector<1x512xf32> to vector<1x512xbf16>
    %15 = vector.broadcast %14 : vector<1x512xbf16> to vector<8x512xbf16>
    %16 = arith.addf %13, %15 : vector<8x512xbf16>
    %cst_10 = arith.constant 0.000000e+00 : bf16
    %17 = vector.broadcast %cst_10 : bf16 to vector<8x512xbf16>
    %18 = arith.maximumf %16, %17 : vector<8x512xbf16>
    %c0_11 = arith.constant 0 : index
    %c0_12 = arith.constant 0 : index
    %19 = vector.load %arg4[%c0_11, %c0_12] : memref<512x256xbf16, #tpu.memory_space<vmem>>, vector<512x256xbf16>
    %cst_13 = arith.constant dense<0.000000e+00> : vector<8x256xf32>
    %20 = tpu.matmul %18, %19, %cst_13 {dimension_numbers = #tpu.dot_dimension_numbers<[1], [0], [0], [1], [0, 0, 1, 1], [], []>} : vector<8x512xbf16>, vector<512x256xbf16>, vector<8x256xf32> -> vector<8x256xf32>
    %c2 = arith.constant 2 : index
    %c0_14 = arith.constant 0 : index
    %21 = vector.load %arg10[%c2, %c0_14] : memref<8x512xf32, #tpu.memory_space<vmem>>, vector<1x256xf32>
    %22 = arith.truncf %20 : vector<8x256xf32> to vector<8x256xbf16>
    %23 = arith.truncf %21 : vector<1x256xf32> to vector<1x256xbf16>
    %24 = vector.broadcast %23 : vector<1x256xbf16> to vector<8x256xbf16>
    %25 = arith.addf %22, %24 : vector<8x256xbf16>
    %cst_15 = arith.constant 0.000000e+00 : bf16
    %26 = vector.broadcast %cst_15 : bf16 to vector<8x256xbf16>
    %27 = arith.maximumf %25, %26 : vector<8x256xbf16>
    %c0_16 = arith.constant 0 : index
    %c0_17 = arith.constant 0 : index
    %28 = vector.load %arg5[%c0_16, %c0_17] : memref<256x256xbf16, #tpu.memory_space<vmem>>, vector<256x256xbf16>
    %cst_18 = arith.constant dense<0.000000e+00> : vector<8x256xf32>
    %29 = tpu.matmul %27, %28, %cst_18 {dimension_numbers = #tpu.dot_dimension_numbers<[1], [0], [0], [1], [0, 0, 1, 1], [], []>} : vector<8x256xbf16>, vector<256x256xbf16>, vector<8x256xf32> -> vector<8x256xf32>
    %c3 = arith.constant 3 : index
    %c0_19 = arith.constant 0 : index
    %30 = vector.load %arg10[%c3, %c0_19] : memref<8x512xf32, #tpu.memory_space<vmem>>, vector<1x256xf32>
    %31 = arith.truncf %29 : vector<8x256xf32> to vector<8x256xbf16>
    %32 = arith.truncf %30 : vector<1x256xf32> to vector<1x256xbf16>
    %33 = vector.broadcast %32 : vector<1x256xbf16> to vector<8x256xbf16>
    %34 = arith.addf %31, %33 : vector<8x256xbf16>
    %cst_20 = arith.constant 0.000000e+00 : bf16
    %35 = vector.broadcast %cst_20 : bf16 to vector<8x256xbf16>
    %36 = arith.maximumf %34, %35 : vector<8x256xbf16>
    %c0_21 = arith.constant 0 : index
    %c0_22 = arith.constant 0 : index
    %37 = vector.load %arg6[%c0_21, %c0_22] : memref<256x128xbf16, #tpu.memory_space<vmem>>, vector<256x128xbf16>
    %cst_23 = arith.constant dense<0.000000e+00> : vector<8x128xf32>
    %38 = tpu.matmul %36, %37, %cst_23 {dimension_numbers = #tpu.dot_dimension_numbers<[1], [0], [0], [1], [0, 0, 1, 1], [], []>} : vector<8x256xbf16>, vector<256x128xbf16>, vector<8x128xf32> -> vector<8x128xf32>
    %c4 = arith.constant 4 : index
    %c0_24 = arith.constant 0 : index
    %39 = vector.load %arg10[%c4, %c0_24] : memref<8x512xf32, #tpu.memory_space<vmem>>, vector<1x128xf32>
    %40 = arith.truncf %38 : vector<8x128xf32> to vector<8x128xbf16>
    %41 = arith.truncf %39 : vector<1x128xf32> to vector<1x128xbf16>
    %42 = vector.broadcast %41 : vector<1x128xbf16> to vector<8x128xbf16>
    %43 = arith.addf %40, %42 : vector<8x128xbf16>
    %cst_25 = arith.constant 0.000000e+00 : bf16
    %44 = vector.broadcast %cst_25 : bf16 to vector<8x128xbf16>
    %45 = arith.maximumf %43, %44 : vector<8x128xbf16>
    %c0_26 = arith.constant 0 : index
    %c0_27 = arith.constant 0 : index
    %46 = vector.load %arg7[%c0_26, %c0_27] : memref<128x64xbf16, #tpu.memory_space<vmem>>, vector<128x64xbf16>
    %cst_28 = arith.constant dense<0.000000e+00> : vector<8x64xf32>
    %47 = tpu.matmul %45, %46, %cst_28 {dimension_numbers = #tpu.dot_dimension_numbers<[1], [0], [0], [1], [0, 0, 1, 1], [], []>} : vector<8x128xbf16>, vector<128x64xbf16>, vector<8x64xf32> -> vector<8x64xf32>
    %c5 = arith.constant 5 : index
    %c0_29 = arith.constant 0 : index
    %48 = vector.load %arg10[%c5, %c0_29] : memref<8x512xf32, #tpu.memory_space<vmem>>, vector<1x64xf32>
    %49 = arith.truncf %47 : vector<8x64xf32> to vector<8x64xbf16>
    %50 = arith.truncf %48 : vector<1x64xf32> to vector<1x64xbf16>
    %51 = vector.broadcast %50 : vector<1x64xbf16> to vector<8x64xbf16>
    %52 = arith.addf %49, %51 : vector<8x64xbf16>
    %cst_30 = arith.constant 0.000000e+00 : bf16
    %53 = vector.broadcast %cst_30 : bf16 to vector<8x64xbf16>
    %54 = arith.maximumf %52, %53 : vector<8x64xbf16>
    %c0_31 = arith.constant 0 : index
    %c0_32 = arith.constant 0 : index
    %55 = vector.load %arg8[%c0_31, %c0_32] : memref<64x64xbf16, #tpu.memory_space<vmem>>, vector<64x64xbf16>
    %cst_33 = arith.constant dense<0.000000e+00> : vector<8x64xf32>
    %56 = tpu.matmul %54, %55, %cst_33 {dimension_numbers = #tpu.dot_dimension_numbers<[1], [0], [0], [1], [0, 0, 1, 1], [], []>} : vector<8x64xbf16>, vector<64x64xbf16>, vector<8x64xf32> -> vector<8x64xf32>
    %c6 = arith.constant 6 : index
    %c0_34 = arith.constant 0 : index
    %57 = vector.load %arg10[%c6, %c0_34] : memref<8x512xf32, #tpu.memory_space<vmem>>, vector<1x64xf32>
    %58 = arith.truncf %56 : vector<8x64xf32> to vector<8x64xbf16>
    %59 = arith.truncf %57 : vector<1x64xf32> to vector<1x64xbf16>
    %60 = vector.broadcast %59 : vector<1x64xbf16> to vector<8x64xbf16>
    %61 = arith.addf %58, %60 : vector<8x64xbf16>
    %cst_35 = arith.constant 0.000000e+00 : bf16
    %62 = vector.broadcast %cst_35 : bf16 to vector<8x64xbf16>
    %63 = arith.maximumf %61, %62 : vector<8x64xbf16>
    %c7 = arith.constant 7 : index
    %c0_36 = arith.constant 0 : index
    %64 = vector.load %arg10[%c7, %c0_36] : memref<8x512xf32, #tpu.memory_space<vmem>>, vector<1x128xf32>
    %c0_37 = arith.constant 0 : index
    %c0_38 = arith.constant 0 : index
    %65 = vector.load %arg9[%c0_37, %c0_38] : memref<64x128xbf16, #tpu.memory_space<vmem>>, vector<64x128xbf16>
    %cst_39 = arith.constant dense<0.000000e+00> : vector<8x128xf32>
    %66 = tpu.matmul %63, %65, %cst_39 {dimension_numbers = #tpu.dot_dimension_numbers<[1], [0], [0], [1], [0, 0, 1, 1], [], []>} : vector<8x64xbf16>, vector<64x128xbf16>, vector<8x128xf32> -> vector<8x128xf32>
    %67 = vector.broadcast %64 : vector<1x128xf32> to vector<8x128xf32>
    %68 = arith.addf %66, %67 : vector<8x128xf32>
    %c0_40 = arith.constant 0 : index
    %c0_41 = arith.constant 0 : index
    %69 = vector.load %arg11[%c0_40, %c0_41] : memref<8x128xf32, #tpu.memory_space<vmem>>, vector<8x128xf32>
    tpu.vector_store %arg11[%c0_40, %c0_41], %68 {strides = array<i32>} : memref<8x128xf32, #tpu.memory_space<vmem>>, vector<8x128xf32>,
    return
  }
  func.func @transform_0(%arg0: i32) -> (i32, i32) {
    %c0_i32 = arith.constant 0 : i32
    %c0_i32_0 = arith.constant 0 : i32
    return %arg0, %c0_i32 : i32, i32
  }
  func.func @transform_1(%arg0: i32) -> (i32, i32) {
    %c0_i32 = arith.constant 0 : i32
    %c0_i32_0 = arith.constant 0 : i32
    %c0_i32_1 = arith.constant 0 : i32
    return %c0_i32, %c0_i32_0 : i32, i32
  }
  func.func @transform_2(%arg0: i32) -> (i32, i32) {
    %c0_i32 = arith.constant 0 : i32
    %c0_i32_0 = arith.constant 0 : i32
    %c0_i32_1 = arith.constant 0 : i32
    return %c0_i32, %c0_i32_0 : i32, i32
  }
  func.func @transform_3(%arg0: i32) -> (i32, i32) {
    %c0_i32 = arith.constant 0 : i32
    %c0_i32_0 = arith.constant 0 : i32
    %c0_i32_1 = arith.constant 0 : i32
    return %c0_i32, %c0_i32_0 : i32, i32
  }
  func.func @transform_4(%arg0: i32) -> (i32, i32) {
    %c0_i32 = arith.constant 0 : i32
    %c0_i32_0 = arith.constant 0 : i32
    %c0_i32_1 = arith.constant 0 : i32
    return %c0_i32, %c0_i32_0 : i32, i32
  }
  func.func @transform_5(%arg0: i32) -> (i32, i32) {
    %c0_i32 = arith.constant 0 : i32
    %c0_i32_0 = arith.constant 0 : i32
    %c0_i32_1 = arith.constant 0 : i32
    return %c0_i32, %c0_i32_0 : i32, i32
  }
  func.func @transform_6(%arg0: i32) -> (i32, i32) {
    %c0_i32 = arith.constant 0 : i32
    %c0_i32_0 = arith.constant 0 : i32
    %c0_i32_1 = arith.constant 0 : i32
    return %c0_i32, %c0_i32_0 : i32, i32
  }
  func.func @transform_7(%arg0: i32) -> (i32, i32) {
    %c0_i32 = arith.constant 0 : i32
    %c0_i32_0 = arith.constant 0 : i32
    %c0_i32_1 = arith.constant 0 : i32
    return %c0_i32, %c0_i32_0 : i32, i32
  }
  func.func @transform_8(%arg0: i32) -> (i32, i32) {
    %c0_i32 = arith.constant 0 : i32
    %c0_i32_0 = arith.constant 0 : i32
    %c0_i32_1 = arith.constant 0 : i32
    return %c0_i32, %c0_i32_0 : i32, i32
  }
  func.func @transform_9(%arg0: i32) -> (i32, i32) {
    %c0_i32 = arith.constant 0 : i32
    %c0_i32_0 = arith.constant 0 : i32
    %c0_i32_1 = arith.constant 0 : i32
    return %c0_i32, %c0_i32_0 : i32, i32
  }
  func.func @transform_10(%arg0: i32) -> (i32, i32) {
    %c0_i32 = arith.constant 0 : i32
    %c0_i32_0 = arith.constant 0 : i32
    return %arg0, %c0_i32 : i32, i32
  }
}

</mosaic_0001>

<llo_original>
// kernel: tpu_custom_call.1
$region0: #{tpu_custom_call.1}
  #allocation0 [shape = 'u32[]', space=smem, size = 0x4, offset = 0x4, fixed_abs, tag = 'smem constant byte address 0x4 - core index']
  #allocation1 [shape = 'u32[72,128]{1,0:T(1,128)}', space=vmem, size = 0x9000, scoped, tag = 'internal scratch']
  %s0 = inlined_call_operand.hbm [shape: bf16[8,64], index: 0, kind: input, shape index: {}]
  %s1 = inlined_call_operand.hbm [shape: bf16[64,512], index: 1, kind: input, shape index: {}]
  %s2 = inlined_call_operand.hbm [shape: bf16[512,512], index: 2, kind: input, shape index: {}]
  %s3 = inlined_call_operand.hbm [shape: bf16[512,256], index: 3, kind: input, shape index: {}]
  %s4 = inlined_call_operand.hbm [shape: bf16[256,256], index: 4, kind: input, shape index: {}]
  %s5 = inlined_call_operand.hbm [shape: bf16[256,128], index: 5, kind: input, shape index: {}]
  %s6 = inlined_call_operand.vmem [shape: bf16[128,64], index: 6, kind: input, shape index: {}]
  %s7 = inlined_call_operand.vmem [shape: bf16[64,64], index: 7, kind: input, shape index: {}]
  %s8 = inlined_call_operand.vmem [shape: bf16[64,128], index: 8, kind: input, shape index: {}]
  %s9 = inlined_call_operand.vmem [shape: f32[8,512], index: 9, kind: input, shape index: {}]
  %s10 = inlined_call_operand.hbm [shape: f32[8,128], index: 10, kind: output, shape index: {}]
  %s11 = sld [smem:[#allocation0]]
  $region74: #{tpu_custom_call.1} parent=0
    _
  %s13 = ssub.s32 1, %s11
  %s14 = scalar_select 0, %s13, %s11
  $region1: #{tpu_custom_call.1} parent=0
    #allocation2 [shape = 'u8[2048]{0}', space=vmem, size = 0x800, scoped, tag = 'input window, operand 0, single buffered']
    #allocation3 [shape = 's32[1]{0}', space=sflag, size = 0x4, scoped, tag = 'scoped memory for tpu_custom_call.1']
    #allocation4 [shape = 's32[1]{0}', space=sflag, size = 0x4, scoped, tag = 'scoped memory for tpu_custom_call.1']
    #allocation5 [shape = 'u8[65536]{0}', space=vmem, size = 0x10000, scoped, tag = 'input window, operand 1, single buffered']
    #allocation6 [shape = 's32[1]{0}', space=sflag, size = 0x4, scoped, tag = 'scoped memory for tpu_custom_call.1']
    #allocation7 [shape = 'u8[524288]{0}', space=vmem, size = 0x80000, scoped, tag = 'input window, operand 2, single buffered']
    #allocation8 [shape = 'u8[262144]{0}', space=vmem, size = 0x40000, scoped, tag = 'input window, operand 3, single buffered']
    #allocation9 [shape = 's32[1]{0}', space=sflag, size = 0x4, scoped, tag = 'scoped memory for tpu_custom_call.1']
    #allocation10 [shape = 'u8[131072]{0}', space=vmem, size = 0x20000, scoped, tag = 'input window, operand 4, single buffered']
    #allocation11 [shape = 'u8[65536]{0}', space=vmem, size = 0x10000, scoped, tag = 'input window, operand 5, single buffered']
    #allocation12 [shape = 's32[1]{0}', space=sflag, size = 0x4, scoped, tag = 'scoped memory for tpu_custom_call.1']
    #allocation13 [shape = 'u8[4096]{0}', space=vmem, size = 0x1000, scoped, tag = 'output window, operand 0, single buffered']
    %15 = vsyncpa [#allocation3], 0
    %16 = vsyncpa [#allocation6], 0
    %17 = vsyncpa [#allocation9], 0
    %18 = vsyncpa [#allocation12], 0
    %19 = vsyncpa [#allocation4], 0
    // Predicated region
    $region2: #{tpu_custom_call.1} parent=1 // pred_check
      _
    $region3: #{tpu_custom_call.1} parent=1 // pred_check_branch
      %21 = sbr.rel (0) target = $region5
    $region4: #{tpu_custom_call.1} parent=1 // pred_region
      %23 = vsyncadd [#allocation3], 0
      %s25 = sshll.u32 %s0, 4
      %s26 = int_to_ptr.hbm [resolvable:$true] %s25
      %s27 = sshll.u32 [#allocation2], 4
      %s28 = int_to_ptr.vmem [resolvable:$true] %s27
      %30 = dma.hbm_to_vmem [thread:$0]  %s26, 64, %s28, [#allocation3]
    $region5: #{tpu_custom_call.1} parent=1 // pred_fallthru
      _
    // Predicated region
    $region6: #{tpu_custom_call.1} parent=1 // pred_check
      _
    $region7: #{tpu_custom_call.1} parent=1 // pred_check_branch
      %32 = sbr.rel (0) target = $region9
    $region8: #{tpu_custom_call.1} parent=1 // pred_region
      %34 = vsyncadd [#allocation6], 0
      %s35 = sshll.u32 %s1, 4
      %s36 = int_to_ptr.hbm [resolvable:$true] %s35
      %s37 = sshll.u32 [#allocation5], 4
      %s38 = int_to_ptr.vmem [resolvable:$true] %s37
      %43 = dma.hbm_to_vmem [thread:$0]  %s36, 2048, %s38, [#allocation6], 256, 256, 16
    $region9: #{tpu_custom_call.1} parent=1 // pred_fallthru
      _
    // Predicated region
    $region10: #{tpu_custom_call.1} parent=1 // pred_check
      _
    $region11: #{tpu_custom_call.1} parent=1 // pred_check_branch
      %45 = sbr.rel (0) target = $region13
    $region12: #{tpu_custom_call.1} parent=1 // pred_region
      %47 = vsyncadd [#allocation6], 0
      %s48 = sshll.u32 %s2, 4
      %s49 = int_to_ptr.hbm [resolvable:$true] %s48
      %s50 = sshll.u32 [#allocation7], 4
      %s51 = int_to_ptr.vmem [resolvable:$true] %s50
      %56 = dma.hbm_to_vmem [thread:$0]  %s49, 16384, %s51, [#allocation6], 256, 256, 16
    $region13: #{tpu_custom_call.1} parent=1 // pred_fallthru
      _
    // Predicated region
    $region14: #{tpu_custom_call.1} parent=1 // pred_check
      _
    $region15: #{tpu_custom_call.1} parent=1 // pred_check_branch
      %58 = sbr.rel (0) target = $region17
    $region16: #{tpu_custom_call.1} parent=1 // pred_region
      %60 = vsyncadd [#allocation9], 0
      %s61 = sshll.u32 %s3, 4
      %s62 = int_to_ptr.hbm [resolvable:$true] %s61
      %s63 = sshll.u32 [#allocation8], 4
      %s64 = int_to_ptr.vmem [resolvable:$true] %s63
      %69 = dma.hbm_to_vmem [thread:$0]  %s62, 8192, %s64, [#allocation9], 128, 128, 8
    $region17: #{tpu_custom_call.1} parent=1 // pred_fallthru
      _
    // Predicated region
    $region18: #{tpu_custom_call.1} parent=1 // pred_check
      _
    $region19: #{tpu_custom_call.1} parent=1 // pred_check_branch
      %71 = sbr.rel (0) target = $region21
    $region20: #{tpu_custom_call.1} parent=1 // pred_region
      %73 = vsyncadd [#allocation9], 0
      %s74 = sshll.u32 %s4, 4
      %s75 = int_to_ptr.hbm [resolvable:$true] %s74
      %s76 = sshll.u32 [#allocation10], 4
      %s77 = int_to_ptr.vmem [resolvable:$true] %s76
      %82 = dma.hbm_to_vmem [thread:$0]  %s75, 4096, %s77, [#allocation9], 128, 128, 8
    $region21: #{tpu_custom_call.1} parent=1 // pred_fallthru
      _
    // Predicated region
    $region22: #{tpu_custom_call.1} parent=1 // pred_check
      _
    $region23: #{tpu_custom_call.1} parent=1 // pred_check_branch
      %84 = sbr.rel (0) target = $region25
    $region24: #{tpu_custom_call.1} parent=1 // pred_region
      %86 = vsyncadd [#allocation12], 0
      %s87 = sshll.u32 %s5, 4
      %s88 = int_to_ptr.hbm [resolvable:$true] %s87
      %s89 = sshll.u32 [#allocation11], 4
      %s90 = int_to_ptr.vmem [resolvable:$true] %s89
      %95 = dma.hbm_to_vmem [thread:$0]  %s88, 2048, %s90, [#allocation12], 64, 64, 4
    $region25: #{tpu_custom_call.1} parent=1 // pred_fallthru
      _
    // Predicated region
    $region26: #{tpu_custom_call.1} parent=1 // pred_check
      _
    $region27: #{tpu_custom_call.1} parent=1 // pred_check_branch
      %97 = sbr.rel (0) target = $region29
    $region28: #{tpu_custom_call.1} parent=1 // pred_region
      _
    $region29: #{tpu_custom_call.1} parent=1 // pred_fallthru
      _
    // Predicated region
    $region30: #{tpu_custom_call.1} parent=1 // pred_check
      _
    $region31: #{tpu_custom_call.1} parent=1 // pred_check_branch
      %99 = sbr.rel (0) target = $region33
    $region32: #{tpu_custom_call.1} parent=1 // pred_region
      _
    $region33: #{tpu_custom_call.1} parent=1 // pred_fallthru
      _
    // Predicated region
    $region34: #{tpu_custom_call.1} parent=1 // pred_check
      _
    $region35: #{tpu_custom_call.1} parent=1 // pred_check_branch
      %101 = sbr.rel (0) target = $region37
    $region36: #{tpu_custom_call.1} parent=1 // pred_region
      _
    $region37: #{tpu_custom_call.1} parent=1 // pred_fallthru
      _
    // Predicated region
    $region38: #{tpu_custom_call.1} parent=1 // pred_check
      _
    $region39: #{tpu_custom_call.1} parent=1 // pred_check_branch
      %103 = sbr.rel (0) target = $region41
    $region40: #{tpu_custom_call.1} parent=1 // pred_region
      _
    $region41: #{tpu_custom_call.1} parent=1 // pred_fallthru
      _
    // Predicated region
    $region42: #{tpu_custom_call.1} parent=1 // pred_check
      _
    $region43: #{tpu_custom_call.1} parent=1 // pred_check_branch
      %105 = sbr.rel (0) target = $region45
    $region44: #{tpu_custom_call.1} parent=1 // pred_region
      %107 = dma.done [#allocation3], 64
    $region45: #{tpu_custom_call.1} parent=1 // pred_fallthru
      _
    // Predicated region
    $region46: #{tpu_custom_call.1} parent=1 // pred_check
      _
    $region47: #{tpu_custom_call.1} parent=1 // pred_check_branch
      %109 = sbr.rel (0) target = $region49
    $region48: #{tpu_custom_call.1} parent=1 // pred_region
      %111 = dma.done [#allocation6], 2048
    $region49: #{tpu_custom_call.1} parent=1 // pred_fallthru
      _
    // Predicated region
    $region50: #{tpu_custom_call.1} parent=1 // pred_check
      _
    $region51: #{tpu_custom_call.1} parent=1 // pred_check_branch
      %113 = sbr.rel (0) target = $region53
    $region52: #{tpu_custom_call.1} parent=1 // pred_region
      %115 = dma.done [#allocation6], 16384
    $region53: #{tpu_custom_call.1} parent=1 // pred_fallthru
      _
    // Predicated region
    $region54: #{tpu_custom_call.1} parent=1 // pred_check
      _
    $region55: #{tpu_custom_call.1} parent=1 // pred_check_branch
      %117 = sbr.rel (0) target = $region57
    $region56: #{tpu_custom_call.1} parent=1 // pred_region
      %119 = dma.done [#allocation9], 8192
    $region57: #{tpu_custom_call.1} parent=1 // pred_fallthru
      _
    // Predicated region
    $region58: #{tpu_custom_call.1} parent=1 // pred_check
      _
    $region59: #{tpu_custom_call.1} parent=1 // pred_check_branch
      %121 = sbr.rel (0) target = $region61
    $region60: #{tpu_custom_call.1} parent=1 // pred_region
      %123 = dma.done [#allocation9], 4096
    $region61: #{tpu_custom_call.1} parent=1 // pred_fallthru
      _
    // Predicated region
    $region62: #{tpu_custom_call.1} parent=1 // pred_check
      _
    $region63: #{tpu_custom_call.1} parent=1 // pred_check_branch
      %125 = sbr.rel (0) target = $region65
    $region64: #{tpu_custom_call.1} parent=1 // pred_region
      %127 = dma.done [#allocation12], 2048
    $region65: #{tpu_custom_call.1} parent=1 // pred_fallthru
      _
    %v129 = vld [vmem:[#allocation2] sm:$0xf]
    %v130 = vld [vmem:[#allocation5] sm:$0xff]
    %v131 = vld [vmem:[#allocation5 + $0x8] sm:$0xff]
    %v132 = vld [vmem:[#allocation5 + $0x10] sm:$0xff]
    %v133 = vld [vmem:[#allocation5 + $0x18] sm:$0xff]
    %v134 = vld [vmem:[#allocation5 + $0x20] sm:$0xff]
    %v135 = vld [vmem:[#allocation5 + $0x28] sm:$0xff]
    %v136 = vld [vmem:[#allocation5 + $0x30] sm:$0xff]
    %v137 = vld [vmem:[#allocation5 + $0x38] sm:$0xff]
    %v138 = vld [vmem:[#allocation5 + $0x40] sm:$0xff]
    %v139 = vld [vmem:[#allocation5 + $0x48] sm:$0xff]
    %v140 = vld [vmem:[#allocation5 + $0x50] sm:$0xff]
    %v141 = vld [vmem:[#allocation5 + $0x58] sm:$0xff]
    %v142 = vld [vmem:[#allocation5 + $0x60] sm:$0xff]
    %v143 = vld [vmem:[#allocation5 + $0x68] sm:$0xff]
    %v144 = vld [vmem:[#allocation5 + $0x70] sm:$0xff]
    %v145 = vld [vmem:[#allocation5 + $0x78] sm:$0xff]
    %v162 = vunpack.c.l.b16 %v130
    %v163 = vunpack.c.h.b16 %v130
    %v164 = vunpack.c.l.b16 %v131
    %v165 = vunpack.c.h.b16 %v131
    %v166 = vunpack.c.l.b16 %v132
    %v167 = vunpack.c.h.b16 %v132
    %v168 = vunpack.c.l.b16 %v133
    %v169 = vunpack.c.h.b16 %v133
    %v170 = vunpack.c.l.b16 %v134
    %v171 = vunpack.c.h.b16 %v134
    %v172 = vunpack.c.l.b16 %v135
    %v173 = vunpack.c.h.b16 %v135
    %v174 = vunpack.c.l.b16 %v136
    %v175 = vunpack.c.h.b16 %v136
    %v176 = vunpack.c.l.b16 %v137
    %v177 = vunpack.c.h.b16 %v137
    %v178 = vunpack.c.l.b16 %v138
    %v179 = vunpack.c.h.b16 %v138
    %v180 = vunpack.c.l.b16 %v139
    %v181 = vunpack.c.h.b16 %v139
    %v182 = vunpack.c.l.b16 %v140
    %v183 = vunpack.c.h.b16 %v140
    %v184 = vunpack.c.l.b16 %v141
    %v185 = vunpack.c.h.b16 %v141
    %v186 = vunpack.c.l.b16 %v142
    %v187 = vunpack.c.h.b16 %v142
    %v188 = vunpack.c.l.b16 %v143
    %v189 = vunpack.c.h.b16 %v143
    %v190 = vunpack.c.l.b16 %v144
    %v191 = vunpack.c.h.b16 %v144
    %v192 = vunpack.c.l.b16 %v145
    %v193 = vunpack.c.h.b16 %v145
    %v194 = vpack.c.b16 %v166, %v162
    %v195 = vpack.c.b16 %v167, %v163
    %v196 = vpack.c.b16 %v168, %v164
    %v197 = vpack.c.b16 %v169, %v165
    %v198 = vpack.c.b16 %v174, %v170
    %v199 = vpack.c.b16 %v175, %v171
    %v200 = vpack.c.b16 %v176, %v172
    %v201 = vpack.c.b16 %v177, %v173
    %v202 = vpack.c.b16 %v182, %v178
    %v203 = vpack.c.b16 %v183, %v179
    %v204 = vpack.c.b16 %v184, %v180
    %v205 = vpack.c.b16 %v185, %v181
    %v206 = vpack.c.b16 %v190, %v186
    %v207 = vpack.c.b16 %v191, %v187
    %v208 = vpack.c.b16 %v192, %v188
    %v209 = vpack.c.b16 %v193, %v189
    %vm226 = vcmask 523264
    %v228 = vsel %vm226, %v129, 0
    %230 = vmatpush.bf16.msra.mxu0 0
    %231 = vmatpush.bf16.msra.mxu0 0
    %232 = vmatpush.bf16.msra.mxu0 0
    %233 = vmatpush.bf16.msra.mxu0 0
    %234 = vmatpush.bf16.msra.mxu0 %v206
    %235 = vmatpush.bf16.msra.mxu0 %v202
    %236 = vmatpush.bf16.msra.mxu0 %v198
    %237 = vmatpush.bf16.msra.mxu0 %v194
    %238 = vmatmul.bf16.gmra.mxu0 %v228
    %v239 = vpop.f32.mrf.mxu0
    %v240 = vadd.f32 0.0, %v239
    %v241 = vpop.f32.mrf.mxu0
    %242 = vdwg.mxu0
    %243 = vmatpush.bf16.msra.mxu0 0
    %244 = vmatpush.bf16.msra.mxu0 0
    %245 = vmatpush.bf16.msra.mxu0 0
    %246 = vmatpush.bf16.msra.mxu0 0
    %247 = vmatpush.bf16.msra.mxu0 %v207
    %248 = vmatpush.bf16.msra.mxu0 %v203
    %249 = vmatpush.bf16.msra.mxu0 %v199
    %250 = vmatpush.bf16.msra.mxu0 %v195
    %251 = vmatmul.bf16.gmra.mxu0 %v228
    %v252 = vpop.f32.mrf.mxu0
    %v253 = vadd.f32 0.0, %v252
    %v254 = vpop.f32.mrf.mxu0
    %255 = vdwg.mxu0
    %256 = vmatpush.bf16.msra.mxu0 0
    %257 = vmatpush.bf16.msra.mxu0 0
    %258 = vmatpush.bf16.msra.mxu0 0
    %259 = vmatpush.bf16.msra.mxu0 0
    %260 = vmatpush.bf16.msra.mxu0 %v208
    %261 = vmatpush.bf16.msra.mxu0 %v204
    %262 = vmatpush.bf16.msra.mxu0 %v200
    %263 = vmatpush.bf16.msra.mxu0 %v196
    %264 = vmatmul.bf16.gmra.mxu0 %v228
    %v265 = vpop.f32.mrf.mxu0
    %v266 = vadd.f32 0.0, %v265
    %v267 = vpop.f32.mrf.mxu0
    %268 = vdwg.mxu0
    %269 = vmatpush.bf16.msra.mxu0 0
    %270 = vmatpush.bf16.msra.mxu0 0
    %271 = vmatpush.bf16.msra.mxu0 0
    %272 = vmatpush.bf16.msra.mxu0 0
    %273 = vmatpush.bf16.msra.mxu0 %v209
    %274 = vmatpush.bf16.msra.mxu0 %v205
    %275 = vmatpush.bf16.msra.mxu0 %v201
    %276 = vmatpush.bf16.msra.mxu0 %v197
    %277 = vmatmul.bf16.gmra.mxu0 %v228
    %v278 = vpop.f32.mrf.mxu0
    %v279 = vadd.f32 0.0, %v278
    %v280 = vpop.f32.mrf.mxu0
    %281 = vdwg.mxu0
    %v282 = vld [vmem:[%s9] ss:$8 sm:$0xf]
    %v283 = vpack.c.bf16 %v253, %v240
    %v284 = vpack.c.bf16 %v279, %v266
    %v286 = vperm.slane %v282, 0
    %v287 = vperm.slane %v282, 1
    %v288 = vperm.slane %v282, 2
    %v289 = vperm.slane %v282, 3
    %v294 = vpack.c.bf16 %v287, %v286
    %v295 = vpack.c.bf16 %v289, %v288
    %v298 = vunpack.c.l.b16 %v294
    %v299 = vunpack.c.h.b16 %v294
    %v300 = vunpack.c.l.b16 %v295
    %v301 = vunpack.c.h.b16 %v295
    %v302 = vpack.c.b16 %v298, %v298
    %v303 = vpack.c.b16 %v299, %v299
    %v304 = vpack.c.b16 %v300, %v300
    %v305 = vpack.c.b16 %v301, %v301
    %v307 = vpack.i.b16 %v302, %v302
    %v309 = vperm.slane %v307, 0
    %v311 = vpack.i.b16 %v303, %v303
    %v313 = vperm.slane %v311, 0
    %v315 = vpack.i.b16 %v304, %v304
    %v317 = vperm.slane %v315, 0
    %v319 = vpack.i.b16 %v305, %v305
    %v321 = vperm.slane %v319, 0
    %v322 = vunpack.c.l.bf16 %v283
    %v323 = vunpack.c.h.bf16 %v283
    %v324 = vunpack.c.l.bf16 %v284
    %v325 = vunpack.c.h.bf16 %v284
    %v326 = vunpack.c.l.bf16 %v309
    %v327 = vunpack.c.l.bf16 %v313
    %v328 = vunpack.c.l.bf16 %v317
    %v329 = vunpack.c.l.bf16 %v321
    %v330 = vadd.f32 %v322, %v326
    %v331 = vadd.f32 %v323, %v327
    %v332 = vadd.f32 %v324, %v328
    %v333 = vadd.f32 %v325, %v329
    %v334 = vpack.c.bf16 %v331, %v330
    %v335 = vpack.c.bf16 %v333, %v332
    %v336 = vunpack.c.l.bf16 %v334
    %v337 = vunpack.c.h.bf16 %v334
    %v338 = vunpack.c.l.bf16 %v335
    %v339 = vunpack.c.h.bf16 %v335
    %v340 = vmax.f32 %v336, 0.0
    %v341 = vmax.f32 %v337, 0.0
    %v342 = vmax.f32 %v338, 0.0
    %v343 = vmax.f32 %v339, 0.0
    %v344 = vpack.c.bf16 %v340, %v340
    %v345 = vpack.c.bf16 %v341, %v341
    %v346 = vpack.c.bf16 %v342, %v342
    %v347 = vpack.c.bf16 %v343, %v343
    %v348 = vld [vmem:[#allocation7] sm:$0xff]
    %v349 = vld [vmem:[#allocation7 + $0x8] sm:$0xff]
    %v350 = vld [vmem:[#allocation7 + $0x10] sm:$0xff]
    %v351 = vld [vmem:[#allocation7 + $0x18] sm:$0xff]
    %v352 = vld [vmem:[#allocation7 + $0x20] sm:$0xff]
    %v353 = vld [vmem:[#allocation7 + $0x28] sm:$0xff]
    %v354 = vld [vmem:[#allocation7 + $0x30] sm:$0xff]
    %v355 = vld [vmem:[#allocation7 + $0x38] sm:$0xff]
    %v356 = vld [vmem:[#allocation7 + $0x40] sm:$0xff]
    %v357 = vld [vmem:[#allocation7 + $0x48] sm:$0xff]
    %v358 = vld [vmem:[#allocation7 + $0x50] sm:$0xff]
    %v359 = vld [vmem:[#allocation7 + $0x58] sm:$0xff]
    %v360 = vld [vmem:[#allocation7 + $0x60] sm:$0xff]
    %v361 = vld [vmem:[#allocation7 + $0x68] sm:$0xff]
    %v362 = vld [vmem:[#allocation7 + $0x70] sm:$0xff]
    %v363 = vld [vmem:[#allocation7 + $0x78] sm:$0xff]
    %v364 = vld [vmem:[#allocation7 + $0x80] sm:$0xff]
    %v365 = vld [vmem:[#allocation7 + $0x88] sm:$0xff]
    %v366 = vld [vmem:[#allocation7 + $0x90] sm:$0xff]
    %v367 = vld [vmem:[#allocation7 + $0x98] sm:$0xff]
    %v368 = vld [vmem:[#allocation7 + $0xa0] sm:$0xff]
    %v369 = vld [vmem:[#allocation7 + $0xa8] sm:$0xff]
    %v370 = vld [vmem:[#allocation7 + $0xb0] sm:$0xff]
    %v371 = vld [vmem:[#allocation7 + $0xb8] sm:$0xff]
    %v372 = vld [vmem:[#allocation7 + $0xc0] sm:$0xff]
    %v373 = vld [vmem:[#allocation7 + $0xc8] sm:$0xff]
    %v374 = vld [vmem:[#allocation7 + $0xd0] sm:$0xff]
    %v375 = vld [vmem:[#allocation7 + $0xd8] sm:$0xff]
    %v376 = vld [vmem:[#allocation7 + $0xe0] sm:$0xff]
    %v377 = vld [vmem:[#allocation7 + $0xe8] sm:$0xff]
    %v378 = vld [vmem:[#allocation7 + $0xf0] sm:$0xff]
    %v379 = vld [vmem:[#allocation7 + $0xf8] sm:$0xff]
    %v380 = vld [vmem:[#allocation7 + $0x100] sm:$0xff]
    %v381 = vld [vmem:[#allocation7 + $0x108] sm:$0xff]
    %v382 = vld [vmem:[#allocation7 + $0x110] sm:$0xff]
    %v383 = vld [vmem:[#allocation7 + $0x118] sm:$0xff]
    %v384 = vld [vmem:[#allocation7 + $0x120] sm:$0xff]
    %v385 = vld [vmem:[#allocation7 + $0x128] sm:$0xff]
    %v386 = vld [vmem:[#allocation7 + $0x130] sm:$0xff]
    %v387 = vld [vmem:[#allocation7 + $0x138] sm:$0xff]
    %v388 = vld [vmem:[#allocation7 + $0x140] sm:$0xff]
    %v389 = vld [vmem:[#allocation7 + $0x148] sm:$0xff]
    %v390 = vld [vmem:[#allocation7 + $0x150] sm:$0xff]
    %v391 = vld [vmem:[#allocation7 + $0x158] sm:$0xff]
    %v392 = vld [vmem:[#allocation7 + $0x160] sm:$0xff]
    %v393 = vld [vmem:[#allocation7 + $0x168] sm:$0xff]
    %v394 = vld [vmem:[#allocation7 + $0x170] sm:$0xff]
    %v395 = vld [vmem:[#allocation7 + $0x178] sm:$0xff]
    %v396 = vld [vmem:[#allocation7 + $0x180] sm:$0xff]
    %v397 = vld [vmem:[#allocation7 + $0x188] sm:$0xff]
    %v398 = vld [vmem:[#allocation7 + $0x190] sm:$0xff]
    %v399 = vld [vmem:[#allocation7 + $0x198] sm:$0xff]
    %v400 = vld [vmem:[#allocation7 + $0x1a0] sm:$0xff]
    %v401 = vld [vmem:[#allocation7 + $0x1a8] sm:$0xff]
    %v402 = vld [vmem:[#allocation7 + $0x1b0] sm:$0xff]
    %v403 = vld [vmem:[#allocation7 + $0x1b8] sm:$0xff]
    %v404 = vld [vmem:[#allocation7 + $0x1c0] sm:$0xff]
    %v405 = vld [vmem:[#allocation7 + $0x1c8] sm:$0xff]
    %v406 = vld [vmem:[#allocation7 + $0x1d0] sm:$0xff]
    %v407 = vld [vmem:[#allocation7 + $0x1d8] sm:$0xff]
    %v408 = vld [vmem:[#allocation7 + $0x1e0] sm:$0xff]
    %v409 = vld [vmem:[#allocation7 + $0x1e8] sm:$0xff]
    %v410 = vld [vmem:[#allocation7 + $0x1f0] sm:$0xff]
    %v411 = vld [vmem:[#allocation7 + $0x1f8] sm:$0xff]
    %v412 = vld [vmem:[#allocation7 + $0x200] sm:$0xff]
    %v413 = vld [vmem:[#allocation7 + $0x208] sm:$0xff]
    %v414 = vld [vmem:[#allocation7 + $0x210] sm:$0xff]
    %v415 = vld [vmem:[#allocation7 + $0x218] sm:$0xff]
    %v416 = vld [vmem:[#allocation7 + $0x220] sm:$0xff]
    %v417 = vld [vmem:[#allocation7 + $0x228] sm:$0xff]
    %v418 = vld [vmem:[#allocation7 + $0x230] sm:$0xff]
    %v419 = vld [vmem:[#allocation7 + $0x238] sm:$0xff]
    %v420 = vld [vmem:[#allocation7 + $0x240] sm:$0xff]
    %v421 = vld [vmem:[#allocation7 + $0x248] sm:$0xff]
    %v422 = vld [vmem:[#allocation7 + $0x250] sm:$0xff]
    %v423 = vld [vmem:[#allocation7 + $0x258] sm:$0xff]
    %v424 = vld [vmem:[#allocation7 + $0x260] sm:$0xff]
    %v425 = vld [vmem:[#allocation7 + $0x268] sm:$0xff]
    %v426 = vld [vmem:[#allocation7 + $0x270] sm:$0xff]
    %v427 = vld [vmem:[#allocation7 + $0x278] sm:$0xff]
    %v428 = vld [vmem:[#allocation7 + $0x280] sm:$0xff]
    %v429 = vld [vmem:[#allocation7 + $0x288] sm:$0xff]
    %v430 = vld [vmem:[#allocation7 + $0x290] sm:$0xff]
    %v431 = vld [vmem:[#allocation7 + $0x298] sm:$0xff]
    %v432 = vld [vmem:[#allocation7 + $0x2a0] sm:$0xff]
    %v433 = vld [vmem:[#allocation7 + $0x2a8] sm:$0xff]
    %v434 = vld [vmem:[#allocation7 + $0x2b0] sm:$0xff]
    %v435 = vld [vmem:[#allocation7 + $0x2b8] sm:$0xff]
    %v436 = vld [vmem:[#allocation7 + $0x2c0] sm:$0xff]
    %v437 = vld [vmem:[#allocation7 + $0x2c8] sm:$0xff]
    %v438 = vld [vmem:[#allocation7 + $0x2d0] sm:$0xff]
    %v439 = vld [vmem:[#allocation7 + $0x2d8] sm:$0xff]
    %v440 = vld [vmem:[#allocation7 + $0x2e0] sm:$0xff]
    %v441 = vld [vmem:[#allocation7 + $0x2e8] sm:$0xff]
    %v442 = vld [vmem:[#allocation7 + $0x2f0] sm:$0xff]
    %v443 = vld [vmem:[#allocation7 + $0x2f8] sm:$0xff]
    %v444 = vld [vmem:[#allocation7 + $0x300] sm:$0xff]
    %v445 = vld [vmem:[#allocation7 + $0x308] sm:$0xff]
    %v446 = vld [vmem:[#allocation7 + $0x310] sm:$0xff]
    %v447 = vld [vmem:[#allocation7 + $0x318] sm:$0xff]
    %v448 = vld [vmem:[#allocation7 + $0x320] sm:$0xff]
    %v449 = vld [vmem:[#allocation7 + $0x328] sm:$0xff]
    %v450 = vld [vmem:[#allocation7 + $0x330] sm:$0xff]
    %v451 = vld [vmem:[#allocation7 + $0x338] sm:$0xff]
    %v452 = vld [vmem:[#allocation7 + $0x340] sm:$0xff]
    %v453 = vld [vmem:[#allocation7 + $0x348] sm:$0xff]
    %v454 = vld [vmem:[#allocation7 + $0x350] sm:$0xff]
    %v455 = vld [vmem:[#allocation7 + $0x358] sm:$0xff]
    %v456 = vld [vmem:[#allocation7 + $0x360] sm:$0xff]
    %v457 = vld [vmem:[#allocation7 + $0x368] sm:$0xff]
    %v458 = vld [vmem:[#allocation7 + $0x370] sm:$0xff]
    %v459 = vld [vmem:[#allocation7 + $0x378] sm:$0xff]
    %v460 = vld [vmem:[#allocation7 + $0x380] sm:$0xff]
    %v461 = vld [vmem:[#allocation7 + $0x388] sm:$0xff]
    %v462 = vld [vmem:[#allocation7 + $0x390] sm:$0xff]
    %v463 = vld [vmem:[#allocation7 + $0x398] sm:$0xff]
    %v464 = vld [vmem:[#allocation7 + $0x3a0] sm:$0xff]
    %v465 = vld [vmem:[#allocation7 + $0x3a8] sm:$0xff]
    %v466 = vld [vmem:[#allocation7 + $0x3b0] sm:$0xff]
    %v467 = vld [vmem:[#allocation7 + $0x3b8] sm:$0xff]
    %v468 = vld [vmem:[#allocation7 + $0x3c0] sm:$0xff]
    %v469 = vld [vmem:[#allocation7 + $0x3c8] sm:$0xff]
    %v470 = vld [vmem:[#allocation7 + $0x3d0] sm:$0xff]
    %v471 = vld [vmem:[#allocation7 + $0x3d8] sm:$0xff]
    %v472 = vld [vmem:[#allocation7 + $0x3e0] sm:$0xff]
    %v473 = vld [vmem:[#allocation7 + $0x3e8] sm:$0xff]
    %v474 = vld [vmem:[#allocation7 + $0x3f0] sm:$0xff]
    %v475 = vld [vmem:[#allocation7 + $0x3f8] sm:$0xff]
    %v604 = vunpack.c.l.b16 %v348
    %v605 = vunpack.c.h.b16 %v348
    %v606 = vunpack.c.l.b16 %v349
    %v607 = vunpack.c.h.b16 %v349
    %v608 = vunpack.c.l.b16 %v350
    %v609 = vunpack.c.h.b16 %v350
    %v610 = vunpack.c.l.b16 %v351
    %v611 = vunpack.c.h.b16 %v351
    %v612 = vunpack.c.l.b16 %v352
    %v613 = vunpack.c.h.b16 %v352
    %v614 = vunpack.c.l.b16 %v353
    %v615 = vunpack.c.h.b16 %v353
    %v616 = vunpack.c.l.b16 %v354
    %v617 = vunpack.c.h.b16 %v354
    %v618 = vunpack.c.l.b16 %v355
    %v619 = vunpack.c.h.b16 %v355
    %v620 = vunpack.c.l.b16 %v356
    %v621 = vunpack.c.h.b16 %v356
    %v622 = vunpack.c.l.b16 %v357
    %v623 = vunpack.c.h.b16 %v357
    %v624 = vunpack.c.l.b16 %v358
    %v625 = vunpack.c.h.b16 %v358
    %v626 = vunpack.c.l.b16 %v359
    %v627 = vunpack.c.h.b16 %v359
    %v628 = vunpack.c.l.b16 %v360
    %v629 = vunpack.c.h.b16 %v360
    %v630 = vunpack.c.l.b16 %v361
    %v631 = vunpack.c.h.b16 %v361
    %v632 = vunpack.c.l.b16 %v362
    %v633 = vunpack.c.h.b16 %v362
    %v634 = vunpack.c.l.b16 %v363
    %v635 = vunpack.c.h.b16 %v363
    %v636 = vunpack.c.l.b16 %v364
    %v637 = vunpack.c.h.b16 %v364
    %v638 = vunpack.c.l.b16 %v365
    %v639 = vunpack.c.h.b16 %v365
    %v640 = vunpack.c.l.b16 %v366
    %v641 = vunpack.c.h.b16 %v366
    %v642 = vunpack.c.l.b16 %v367
    %v643 = vunpack.c.h.b16 %v367
    %v644 = vunpack.c.l.b16 %v368
    %v645 = vunpack.c.h.b16 %v368
    %v646 = vunpack.c.l.b16 %v369
    %v647 = vunpack.c.h.b16 %v369
    %v648 = vunpack.c.l.b16 %v370
    %v649 = vunpack.c.h.b16 %v370
    %v650 = vunpack.c.l.b16 %v371
    %v651 = vunpack.c.h.b16 %v371
    %v652 = vunpack.c.l.b16 %v372
    %v653 = vunpack.c.h.b16 %v372
    %v654 = vunpack.c.l.b16 %v373
    %v655 = vunpack.c.h.b16 %v373
    %v656 = vunpack.c.l.b16 %v374
    %v657 = vunpack.c.h.b16 %v374
    %v658 = vunpack.c.l.b16 %v375
    %v659 = vunpack.c.h.b16 %v375
    %v660 = vunpack.c.l.b16 %v376
    %v661 = vunpack.c.h.b16 %v376
    %v662 = vunpack.c.l.b16 %v377
    %v663 = vunpack.c.h.b16 %v377
    %v664 = vunpack.c.l.b16 %v378
    %v665 = vunpack.c.h.b16 %v378
    %v666 = vunpack.c.l.b16 %v379
    %v667 = vunpack.c.h.b16 %v379
    %v668 = vunpack.c.l.b16 %v380
    %v669 = vunpack.c.h.b16 %v380
    %v670 = vunpack.c.l.b16 %v381
    %v671 = vunpack.c.h.b16 %v381
    %v672 = vunpack.c.l.b16 %v382
    %v673 = vunpack.c.h.b16 %v382
    %v674 = vunpack.c.l.b16 %v383
    %v675 = vunpack.c.h.b16 %v383
    %v676 = vunpack.c.l.b16 %v384
    %v677 = vunpack.c.h.b16 %v384
    %v678 = vunpack.c.l.b16 %v385
    %v679 = vunpack.c.h.b16 %v385
    %v680 = vunpack.c.l.b16 %v386
    %v681 = vunpack.c.h.b16 %v386
    %v682 = vunpack.c.l.b16 %v387
    %v683 = vunpack.c.h.b16 %v387
    %v684 = vunpack.c.l.b16 %v388
    %v685 = vunpack.c.h.b16 %v388
    %v686 = vunpack.c.l.b16 %v389
    %v687 = vunpack.c.h.b16 %v389
    %v688 = vunpack.c.l.b16 %v390
    %v689 = vunpack.c.h.b16 %v390
    %v690 = vunpack.c.l.b16 %v391
    %v691 = vunpack.c.h.b16 %v391
    %v692 = vunpack.c.l.b16 %v392
    %v693 = vunpack.c.h.b16 %v392
    %v694 = vunpack.c.l.b16 %v393
    %v695 = vunpack.c.h.b16 %v393
    %v696 = vunpack.c.l.b16 %v394
    %v697 = vunpack.c.h.b16 %v394
    %v698 = vunpack.c.l.b16 %v395
    %v699 = vunpack.c.h.b16 %v395
    %v700 = vunpack.c.l.b16 %v396
    %v701 = vunpack.c.h.b16 %v396
    %v702 = vunpack.c.l.b16 %v397
    %v703 = vunpack.c.h.b16 %v397
    %v704 = vunpack.c.l.b16 %v398
    %v705 = vunpack.c.h.b16 %v398
    %v706 = vunpack.c.l.b16 %v399
    %v707 = vunpack.c.h.b16 %v399
    %v708 = vunpack.c.l.b16 %v400
    %v709 = vunpack.c.h.b16 %v400
    %v710 = vunpack.c.l.b16 %v401
    %v711 = vunpack.c.h.b16 %v401
    %v712 = vunpack.c.l.b16 %v402
    %v713 = vunpack.c.h.b16 %v402
    %v714 = vunpack.c.l.b16 %v403
    %v715 = vunpack.c.h.b16 %v403
    %v716 = vunpack.c.l.b16 %v404
    %v717 = vunpack.c.h.b16 %v404
    %v718 = vunpack.c.l.b16 %v405
    %v719 = vunpack.c.h.b16 %v405
    %v720 = vunpack.c.l.b16 %v406
    %v721 = vunpack.c.h.b16 %v406
    %v722 = vunpack.c.l.b16 %v407
    %v723 = vunpack.c.h.b16 %v407
    %v724 = vunpack.c.l.b16 %v408
    %v725 = vunpack.c.h.b16 %v408
    %v726 = vunpack.c.l.b16 %v409
    %v727 = vunpack.c.h.b16 %v409
    %v728 = vunpack.c.l.b16 %v410
    %v729 = vunpack.c.h.b16 %v410
    %v730 = vunpack.c.l.b16 %v411
    %v731 = vunpack.c.h.b16 %v411
    %v732 = vunpack.c.l.b16 %v412
    %v733 = vunpack.c.h.b16 %v412
    %v734 = vunpack.c.l.b16 %v413
    %v735 = vunpack.c.h.b16 %v413
    %v736 = vunpack.c.l.b16 %v414
    %v737 = vunpack.c.h.b16 %v414
    %v738 = vunpack.c.l.b16 %v415
    %v739 = vunpack.c.h.b16 %v415
    %v740 = vunpack.c.l.b16 %v416
    %v741 = vunpack.c.h.b16 %v416
    %v742 = vunpack.c.l.b16 %v417
    %v743 = vunpack.c.h.b16 %v417
    %v744 = vunpack.c.l.b16 %v418
    %v745 = vunpack.c.h.b16 %v418
    %v746 = vunpack.c.l.b16 %v419
    %v747 = vunpack.c.h.b16 %v419
    %v748 = vunpack.c.l.b16 %v420
    %v749 = vunpack.c.h.b16 %v420
    %v750 = vunpack.c.l.b16 %v421
    %v751 = vunpack.c.h.b16 %v421
    %v752 = vunpack.c.l.b16 %v422
    %v753 = vunpack.c.h.b16 %v422
    %v754 = vunpack.c.l.b16 %v423
    %v755 = vunpack.c.h.b16 %v423
    %v756 = vunpack.c.l.b16 %v424
    %v757 = vunpack.c.h.b16 %v424
    %v758 = vunpack.c.l.b16 %v425
    %v759 = vunpack.c.h.b16 %v425
    %v760 = vunpack.c.l.b16 %v426
    %v761 = vunpack.c.h.b16 %v426
    %v762 = vunpack.c.l.b16 %v427
    %v763 = vunpack.c.h.b16 %v427
    %v764 = vunpack.c.l.b16 %v428
    %v765 = vunpack.c.h.b16 %v428
    %v766 = vunpack.c.l.b16 %v429
    %v767 = vunpack.c.h.b16 %v429
    %v768 = vunpack.c.l.b16 %v430
    %v769 = vunpack.c.h.b16 %v430
    %v770 = vunpack.c.l.b16 %v431
    %v771 = vunpack.c.h.b16 %v431
    %v772 = vunpack.c.l.b16 %v432
    %v773 = vunpack.c.h.b16 %v432
    %v774 = vunpack.c.l.b16 %v433
    %v775 = vunpack.c.h.b16 %v433
    %v776 = vunpack.c.l.b16 %v434
    %v777 = vunpack.c.h.b16 %v434
    %v778 = vunpack.c.l.b16 %v435
    %v779 = vunpack.c.h.b16 %v435
    %v780 = vunpack.c.l.b16 %v436
    %v781 = vunpack.c.h.b16 %v436
    %v782 = vunpack.c.l.b16 %v437
    %v783 = vunpack.c.h.b16 %v437
    %v784 = vunpack.c.l.b16 %v438
    %v785 = vunpack.c.h.b16 %v438
    %v786 = vunpack.c.l.b16 %v439
    %v787 = vunpack.c.h.b16 %v439
    %v788 = vunpack.c.l.b16 %v440
    %v789 = vunpack.c.h.b16 %v440
    %v790 = vunpack.c.l.b16 %v441
    %v791 = vunpack.c.h.b16 %v441
    %v792 = vunpack.c.l.b16 %v442
    %v793 = vunpack.c.h.b16 %v442
    %v794 = vunpack.c.l.b16 %v443
    %v795 = vunpack.c.h.b16 %v443
    %v796 = vunpack.c.l.b16 %v444
    %v797 = vunpack.c.h.b16 %v444
    %v798 = vunpack.c.l.b16 %v445
    %v799 = vunpack.c.h.b16 %v445
    %v800 = vunpack.c.l.b16 %v446
    %v801 = vunpack.c.h.b16 %v446
    %v802 = vunpack.c.l.b16 %v447
    %v803 = vunpack.c.h.b16 %v447
    %v804 = vunpack.c.l.b16 %v448
    %v805 = vunpack.c.h.b16 %v448
    %v806 = vunpack.c.l.b16 %v449
    %v807 = vunpack.c.h.b16 %v449
    %v808 = vunpack.c.l.b16 %v450
    %v809 = vunpack.c.h.b16 %v450
    %v810 = vunpack.c.l.b16 %v451
    %v811 = vunpack.c.h.b16 %v451
    %v812 = vunpack.c.l.b16 %v452
    %v813 = vunpack.c.h.b16 %v452
    %v814 = vunpack.c.l.b16 %v453
    %v815 = vunpack.c.h.b16 %v453
    %v816 = vunpack.c.l.b16 %v454
    %v817 = vunpack.c.h.b16 %v454
    %v818 = vunpack.c.l.b16 %v455
    %v819 = vunpack.c.h.b16 %v455
    %v820 = vunpack.c.l.b16 %v456
    %v821 = vunpack.c.h.b16 %v456
    %v822 = vunpack.c.l.b16 %v457
    %v823 = vunpack.c.h.b16 %v457
    %v824 = vunpack.c.l.b16 %v458
    %v825 = vunpack.c.h.b16 %v458
    %v826 = vunpack.c.l.b16 %v459
    %v827 = vunpack.c.h.b16 %v459
    %v828 = vunpack.c.l.b16 %v460
    %v829 = vunpack.c.h.b16 %v460
    %v830 = vunpack.c.l.b16 %v461
    %v831 = vunpack.c.h.b16 %v461
    %v832 = vunpack.c.l.b16 %v462
    %v833 = vunpack.c.h.b16 %v462
    %v834 = vunpack.c.l.b16 %v463
    %v835 = vunpack.c.h.b16 %v463
    %v836 = vunpack.c.l.b16 %v464
    %v837 = vunpack.c.h.b16 %v464
    %v838 = vunpack.c.l.b16 %v465
    %v839 = vunpack.c.h.b16 %v465
    %v840 = vunpack.c.l.b16 %v466
    %v841 = vunpack.c.h.b16 %v466
    %v842 = vunpack.c.l.b16 %v467
    %v843 = vunpack.c.h.b16 %v467
    %v844 = vunpack.c.l.b16 %v468
    %v845 = vunpack.c.h.b16 %v468
    %v846 = vunpack.c.l.b16 %v469
    %v847 = vunpack.c.h.b16 %v469
    %v848 = vunpack.c.l.b16 %v470
    %v849 = vunpack.c.h.b16 %v470
    %v850 = vunpack.c.l.b16 %v471
    %v851 = vunpack.c.h.b16 %v471
    %v852 = vunpack.c.l.b16 %v472
    %v853 = vunpack.c.h.b16 %v472
    %v854 = vunpack.c.l.b16 %v473
    %v855 = vunpack.c.h.b16 %v473
    %v856 = vunpack.c.l.b16 %v474
    %v857 = vunpack.c.h.b16 %v474
    %v858 = vunpack.c.l.b16 %v475
    %v859 = vunpack.c.h.b16 %v475
    %v860 = vpack.c.b16 %v608, %v604
    %v861 = vpack.c.b16 %v609, %v605
    %v862 = vpack.c.b16 %v610, %v606
    %v863 = vpack.c.b16 %v611, %v607
    %v864 = vpack.c.b16 %v616, %v612
    %v865 = vpack.c.b16 %v617, %v613
    %v866 = vpack.c.b16 %v618, %v614
    %v867 = vpack.c.b16 %v619, %v615
    %v868 = vpack.c.b16 %v624, %v620
    %v869 = vpack.c.b16 %v625, %v621
    %v870 = vpack.c.b16 %v626, %v622
    %v871 = vpack.c.b16 %v627, %v623
    %v872 = vpack.c.b16 %v632, %v628
    %v873 = vpack.c.b16 %v633, %v629
    %v874 = vpack.c.b16 %v634, %v630
    %v875 = vpack.c.b16 %v635, %v631
    %v876 = vpack.c.b16 %v640, %v636
    %v877 = vpack.c.b16 %v641, %v637
    %v878 = vpack.c.b16 %v642, %v638
    %v879 = vpack.c.b16 %v643, %v639
    %v880 = vpack.c.b16 %v648, %v644
    %v881 = vpack.c.b16 %v649, %v645
    %v882 = vpack.c.b16 %v650, %v646
    %v883 = vpack.c.b16 %v651, %v647
    %v884 = vpack.c.b16 %v656, %v652
    %v885 = vpack.c.b16 %v657, %v653
    %v886 = vpack.c.b16 %v658, %v654
    %v887 = vpack.c.b16 %v659, %v655
    %v888 = vpack.c.b16 %v664, %v660
    %v889 = vpack.c.b16 %v665, %v661
    %v890 = vpack.c.b16 %v666, %v662
    %v891 = vpack.c.b16 %v667, %v663
    %v892 = vpack.c.b16 %v672, %v668
    %v893 = vpack.c.b16 %v673, %v669
    %v894 = vpack.c.b16 %v674, %v670
    %v895 = vpack.c.b16 %v675, %v671
    %v896 = vpack.c.b16 %v680, %v676
    %v897 = vpack.c.b16 %v681, %v677
    %v898 = vpack.c.b16 %v682, %v678
    %v899 = vpack.c.b16 %v683, %v679
    %v900 = vpack.c.b16 %v688, %v684
    %v901 = vpack.c.b16 %v689, %v685
    %v902 = vpack.c.b16 %v690, %v686
    %v903 = vpack.c.b16 %v691, %v687
    %v904 = vpack.c.b16 %v696, %v692
    %v905 = vpack.c.b16 %v697, %v693
    %v906 = vpack.c.b16 %v698, %v694
    %v907 = vpack.c.b16 %v699, %v695
    %v908 = vpack.c.b16 %v704, %v700
    %v909 = vpack.c.b16 %v705, %v701
    %v910 = vpack.c.b16 %v706, %v702
    %v911 = vpack.c.b16 %v707, %v703
    %v912 = vpack.c.b16 %v712, %v708
    %v913 = vpack.c.b16 %v713, %v709
    %v914 = vpack.c.b16 %v714, %v710
    %v915 = vpack.c.b16 %v715, %v711
    %v916 = vpack.c.b16 %v720, %v716
    %v917 = vpack.c.b16 %v721, %v717
    %v918 = vpack.c.b16 %v722, %v718
    %v919 = vpack.c.b16 %v723, %v719
    %v920 = vpack.c.b16 %v728, %v724
    %v921 = vpack.c.b16 %v729, %v725
    %v922 = vpack.c.b16 %v730, %v726
    %v923 = vpack.c.b16 %v731, %v727
    %v924 = vpack.c.b16 %v736, %v732
    %v925 = vpack.c.b16 %v737, %v733
    %v926 = vpack.c.b16 %v738, %v734
    %v927 = vpack.c.b16 %v739, %v735
    %v928 = vpack.c.b16 %v744, %v740
    %v929 = vpack.c.b16 %v745, %v741
    %v930 = vpack.c.b16 %v746, %v742
    %v931 = vpack.c.b16 %v747, %v743
    %v932 = vpack.c.b16 %v752, %v748
    %v933 = vpack.c.b16 %v753, %v749
    %v934 = vpack.c.b16 %v754, %v750
    %v935 = vpack.c.b16 %v755, %v751
    %v936 = vpack.c.b16 %v760, %v756
    %v937 = vpack.c.b16 %v761, %v757
    %v938 = vpack.c.b16 %v762, %v758
    %v939 = vpack.c.b16 %v763, %v759
    %v940 = vpack.c.b16 %v768, %v764
    %v941 = vpack.c.b16 %v769, %v765
    %v942 = vpack.c.b16 %v770, %v766
    %v943 = vpack.c.b16 %v771, %v767
    %v944 = vpack.c.b16 %v776, %v772
    %v945 = vpack.c.b16 %v777, %v773
    %v946 = vpack.c.b16 %v778, %v774
    %v947 = vpack.c.b16 %v779, %v775
    %v948 = vpack.c.b16 %v784, %v780
    %v949 = vpack.c.b16 %v785, %v781
    %v950 = vpack.c.b16 %v786, %v782
    %v951 = vpack.c.b16 %v787, %v783
    %v952 = vpack.c.b16 %v792, %v788
    %v953 = vpack.c.b16 %v793, %v789
    %v954 = vpack.c.b16 %v794, %v790
    %v955 = vpack.c.b16 %v795, %v791
    %v956 = vpack.c.b16 %v800, %v796
    %v957 = vpack.c.b16 %v801, %v797
    %v958 = vpack.c.b16 %v802, %v798
    %v959 = vpack.c.b16 %v803, %v799
    %v960 = vpack.c.b16 %v808, %v804
    %v961 = vpack.c.b16 %v809, %v805
    %v962 = vpack.c.b16 %v810, %v806
    %v963 = vpack.c.b16 %v811, %v807
    %v964 = vpack.c.b16 %v816, %v812
    %v965 = vpack.c.b16 %v817, %v813
    %v966 = vpack.c.b16 %v818, %v814
    %v967 = vpack.c.b16 %v819, %v815
    %v968 = vpack.c.b16 %v824, %v820
    %v969 = vpack.c.b16 %v825, %v821
    %v970 = vpack.c.b16 %v826, %v822
    %v971 = vpack.c.b16 %v827, %v823
    %v972 = vpack.c.b16 %v832, %v828
    %v973 = vpack.c.b16 %v833, %v829
    %v974 = vpack.c.b16 %v834, %v830
    %v975 = vpack.c.b16 %v835, %v831
    %v976 = vpack.c.b16 %v840, %v836
    %v977 = vpack.c.b16 %v841, %v837
    %v978 = vpack.c.b16 %v842, %v838
    %v979 = vpack.c.b16 %v843, %v839
    %v980 = vpack.c.b16 %v848, %v844
    %v981 = vpack.c.b16 %v849, %v845
    %v982 = vpack.c.b16 %v850, %v846
    %v983 = vpack.c.b16 %v851, %v847
    %v984 = vpack.c.b16 %v856, %v852
    %v985 = vpack.c.b16 %v857, %v853
    %v986 = vpack.c.b16 %v858, %v854
    %v987 = vpack.c.b16 %v859, %v855
    %1116 = vmatpush.bf16.msra.mxu0 %v888
    %1117 = vmatpush.bf16.msra.mxu0 %v884
    %1118 = vmatpush.bf16.msra.mxu0 %v880
    %1119 = vmatpush.bf16.msra.mxu0 %v876
    %1120 = vmatpush.bf16.msra.mxu0 %v872
    %1121 = vmatpush.bf16.msra.mxu0 %v868
    %1122 = vmatpush.bf16.msra.mxu0 %v864
    %1123 = vmatpush.bf16.msra.mxu0 %v860
    %1124 = vmatmul.bf16.gmra.mxu0 %v344
    %v1125 = vpop.f32.mrf.mxu0
    %v1126 = vadd.f32 0.0, %v1125
    %v1127 = vpop.f32.mrf.mxu0
    %1128 = vdwg.mxu0
    %1129 = vmatpush.bf16.msra.mxu0 %v920
    %1130 = vmatpush.bf16.msra.mxu0 %v916
    %1131 = vmatpush.bf16.msra.mxu0 %v912
    %1132 = vmatpush.bf16.msra.mxu0 %v908
    %1133 = vmatpush.bf16.msra.mxu0 %v904
    %1134 = vmatpush.bf16.msra.mxu0 %v900
    %1135 = vmatpush.bf16.msra.mxu0 %v896
    %1136 = vmatpush.bf16.msra.mxu0 %v892
    %1137 = vmatmul.bf16.gmra.mxu0 %v345
    %v1138 = vpop.f32.mrf.mxu0
    %v1139 = vadd.f32 %v1126, %v1138
    %v1140 = vpop.f32.mrf.mxu0
    %1141 = vdwg.mxu0
    %1142 = vmatpush.bf16.msra.mxu0 %v952
    %1143 = vmatpush.bf16.msra.mxu0 %v948
    %1144 = vmatpush.bf16.msra.mxu0 %v944
    %1145 = vmatpush.bf16.msra.mxu0 %v940
    %1146 = vmatpush.bf16.msra.mxu0 %v936
    %1147 = vmatpush.bf16.msra.mxu0 %v932
    %1148 = vmatpush.bf16.msra.mxu0 %v928
    %1149 = vmatpush.bf16.msra.mxu0 %v924
    %1150 = vmatmul.bf16.gmra.mxu0 %v346
    %v1151 = vpop.f32.mrf.mxu0
    %v1152 = vadd.f32 %v1139, %v1151
    %v1153 = vpop.f32.mrf.mxu0
    %1154 = vdwg.mxu0
    %1155 = vmatpush.bf16.msra.mxu0 %v984
    %1156 = vmatpush.bf16.msra.mxu0 %v980
    %1157 = vmatpush.bf16.msra.mxu0 %v976
    %1158 = vmatpush.bf16.msra.mxu0 %v972
    %1159 = vmatpush.bf16.msra.mxu0 %v968
    %1160 = vmatpush.bf16.msra.mxu0 %v964
    %1161 = vmatpush.bf16.msra.mxu0 %v960
    %1162 = vmatpush.bf16.msra.mxu0 %v956
    %1163 = vmatmul.bf16.gmra.mxu0 %v347
    %v1164 = vpop.f32.mrf.mxu0
    %v1165 = vadd.f32 %v1152, %v1164
    %v1166 = vpop.f32.mrf.mxu0
    %1167 = vdwg.mxu0
    %1168 = vmatpush.bf16.msra.mxu0 %v889
    %1169 = vmatpush.bf16.msra.mxu0 %v885
    %1170 = vmatpush.bf16.msra.mxu0 %v881
    %1171 = vmatpush.bf16.msra.mxu0 %v877
    %1172 = vmatpush.bf16.msra.mxu0 %v873
    %1173 = vmatpush.bf16.msra.mxu0 %v869
    %1174 = vmatpush.bf16.msra.mxu0 %v865
    %1175 = vmatpush.bf16.msra.mxu0 %v861
    %1176 = vmatmul.bf16.gmra.mxu0 %v344
    %v1177 = vpop.f32.mrf.mxu0
    %v1178 = vadd.f32 0.0, %v1177
    %v1179 = vpop.f32.mrf.mxu0
    %1180 = vdwg.mxu0
    %1181 = vmatpush.bf16.msra.mxu0 %v921
    %1182 = vmatpush.bf16.msra.mxu0 %v917
    %1183 = vmatpush.bf16.msra.mxu0 %v913
    %1184 = vmatpush.bf16.msra.mxu0 %v909
    %1185 = vmatpush.bf16.msra.mxu0 %v905
    %1186 = vmatpush.bf16.msra.mxu0 %v901
    %1187 = vmatpush.bf16.msra.mxu0 %v897
    %1188 = vmatpush.bf16.msra.mxu0 %v893
    %1189 = vmatmul.bf16.gmra.mxu0 %v345
    %v1190 = vpop.f32.mrf.mxu0
    %v1191 = vadd.f32 %v1178, %v1190
    %v1192 = vpop.f32.mrf.mxu0
    %1193 = vdwg.mxu0
    %1194 = vmatpush.bf16.msra.mxu0 %v953
    %1195 = vmatpush.bf16.msra.mxu0 %v949
    %1196 = vmatpush.bf16.msra.mxu0 %v945
    %1197 = vmatpush.bf16.msra.mxu0 %v941
    %1198 = vmatpush.bf16.msra.mxu0 %v937
    %1199 = vmatpush.bf16.msra.mxu0 %v933
    %1200 = vmatpush.bf16.msra.mxu0 %v929
    %1201 = vmatpush.bf16.msra.mxu0 %v925
    %1202 = vmatmul.bf16.gmra.mxu0 %v346
    %v1203 = vpop.f32.mrf.mxu0
    %v1204 = vadd.f32 %v1191, %v1203
    %v1205 = vpop.f32.mrf.mxu0
    %1206 = vdwg.mxu0
    %1207 = vmatpush.bf16.msra.mxu0 %v985
    %1208 = vmatpush.bf16.msra.mxu0 %v981
    %1209 = vmatpush.bf16.msra.mxu0 %v977
    %1210 = vmatpush.bf16.msra.mxu0 %v973
    %1211 = vmatpush.bf16.msra.mxu0 %v969
    %1212 = vmatpush.bf16.msra.mxu0 %v965
    %1213 = vmatpush.bf16.msra.mxu0 %v961
    %1214 = vmatpush.bf16.msra.mxu0 %v957
    %1215 = vmatmul.bf16.gmra.mxu0 %v347
    %v1216 = vpop.f32.mrf.mxu0
    %v1217 = vadd.f32 %v1204, %v1216
    %v1218 = vpop.f32.mrf.mxu0
    %1219 = vdwg.mxu0
    %1220 = vmatpush.bf16.msra.mxu0 %v890
    %1221 = vmatpush.bf16.msra.mxu0 %v886
    %1222 = vmatpush.bf16.msra.mxu0 %v882
    %1223 = vmatpush.bf16.msra.mxu0 %v878
    %1224 = vmatpush.bf16.msra.mxu0 %v874
    %1225 = vmatpush.bf16.msra.mxu0 %v870
    %1226 = vmatpush.bf16.msra.mxu0 %v866
    %1227 = vmatpush.bf16.msra.mxu0 %v862
    %1228 = vmatmul.bf16.gmra.mxu0 %v344
    %v1229 = vpop.f32.mrf.mxu0
    %v1230 = vadd.f32 0.0, %v1229
    %v1231 = vpop.f32.mrf.mxu0
    %1232 = vdwg.mxu0
    %1233 = vmatpush.bf16.msra.mxu0 %v922
    %1234 = vmatpush.bf16.msra.mxu0 %v918
    %1235 = vmatpush.bf16.msra.mxu0 %v914
    %1236 = vmatpush.bf16.msra.mxu0 %v910
    %1237 = vmatpush.bf16.msra.mxu0 %v906
    %1238 = vmatpush.bf16.msra.mxu0 %v902
    %1239 = vmatpush.bf16.msra.mxu0 %v898
    %1240 = vmatpush.bf16.msra.mxu0 %v894
    %1241 = vmatmul.bf16.gmra.mxu0 %v345
    %v1242 = vpop.f32.mrf.mxu0
    %v1243 = vadd.f32 %v1230, %v1242
    %v1244 = vpop.f32.mrf.mxu0
    %1245 = vdwg.mxu0
    %1246 = vmatpush.bf16.msra.mxu0 %v954
    %1247 = vmatpush.bf16.msra.mxu0 %v950
    %1248 = vmatpush.bf16.msra.mxu0 %v946
    %1249 = vmatpush.bf16.msra.mxu0 %v942
    %1250 = vmatpush.bf16.msra.mxu0 %v938
    %1251 = vmatpush.bf16.msra.mxu0 %v934
    %1252 = vmatpush.bf16.msra.mxu0 %v930
    %1253 = vmatpush.bf16.msra.mxu0 %v926
    %1254 = vmatmul.bf16.gmra.mxu0 %v346
    %v1255 = vpop.f32.mrf.mxu0
    %v1256 = vadd.f32 %v1243, %v1255
    %v1257 = vpop.f32.mrf.mxu0
    %1258 = vdwg.mxu0
    %1259 = vmatpush.bf16.msra.mxu0 %v986
    %1260 = vmatpush.bf16.msra.mxu0 %v982
    %1261 = vmatpush.bf16.msra.mxu0 %v978
    %1262 = vmatpush.bf16.msra.mxu0 %v974
    %1263 = vmatpush.bf16.msra.mxu0 %v970
    %1264 = vmatpush.bf16.msra.mxu0 %v966
    %1265 = vmatpush.bf16.msra.mxu0 %v962
    %1266 = vmatpush.bf16.msra.mxu0 %v958
    %1267 = vmatmul.bf16.gmra.mxu0 %v347
    %v1268 = vpop.f32.mrf.mxu0
    %v1269 = vadd.f32 %v1256, %v1268
    %v1270 = vpop.f32.mrf.mxu0
    %1271 = vdwg.mxu0
    %1272 = vmatpush.bf16.msra.mxu0 %v891
    %1273 = vmatpush.bf16.msra.mxu0 %v887
    %1274 = vmatpush.bf16.msra.mxu0 %v883
    %1275 = vmatpush.bf16.msra.mxu0 %v879
    %1276 = vmatpush.bf16.msra.mxu0 %v875
    %1277 = vmatpush.bf16.msra.mxu0 %v871
    %1278 = vmatpush.bf16.msra.mxu0 %v867
    %1279 = vmatpush.bf16.msra.mxu0 %v863
    %1280 = vmatmul.bf16.gmra.mxu0 %v344
    %v1281 = vpop.f32.mrf.mxu0
    %v1282 = vadd.f32 0.0, %v1281
    %v1283 = vpop.f32.mrf.mxu0
    %1284 = vdwg.mxu0
    %1285 = vmatpush.bf16.msra.mxu0 %v923
    %1286 = vmatpush.bf16.msra.mxu0 %v919
    %1287 = vmatpush.bf16.msra.mxu0 %v915
    %1288 = vmatpush.bf16.msra.mxu0 %v911
    %1289 = vmatpush.bf16.msra.mxu0 %v907
    %1290 = vmatpush.bf16.msra.mxu0 %v903
    %1291 = vmatpush.bf16.msra.mxu0 %v899
    %1292 = vmatpush.bf16.msra.mxu0 %v895
    %1293 = vmatmul.bf16.gmra.mxu0 %v345
    %v1294 = vpop.f32.mrf.mxu0
    %v1295 = vadd.f32 %v1282, %v1294
    %v1296 = vpop.f32.mrf.mxu0
    %1297 = vdwg.mxu0
    %1298 = vmatpush.bf16.msra.mxu0 %v955
    %1299 = vmatpush.bf16.msra.mxu0 %v951
    %1300 = vmatpush.bf16.msra.mxu0 %v947
    %1301 = vmatpush.bf16.msra.mxu0 %v943
    %1302 = vmatpush.bf16.msra.mxu0 %v939
    %1303 = vmatpush.bf16.msra.mxu0 %v935
    %1304 = vmatpush.bf16.msra.mxu0 %v931
    %1305 = vmatpush.bf16.msra.mxu0 %v927
    %1306 = vmatmul.bf16.gmra.mxu0 %v346
    %v1307 = vpop.f32.mrf.mxu0
    %v1308 = vadd.f32 %v1295, %v1307
    %v1309 = vpop.f32.mrf.mxu0
    %1310 = vdwg.mxu0
    %1311 = vmatpush.bf16.msra.mxu0 %v987
    %1312 = vmatpush.bf16.msra.mxu0 %v983
    %1313 = vmatpush.bf16.msra.mxu0 %v979
    %1314 = vmatpush.bf16.msra.mxu0 %v975
    %1315 = vmatpush.bf16.msra.mxu0 %v971
    %1316 = vmatpush.bf16.msra.mxu0 %v967
    %1317 = vmatpush.bf16.msra.mxu0 %v963
    %1318 = vmatpush.bf16.msra.mxu0 %v959
    %1319 = vmatmul.bf16.gmra.mxu0 %v347
    %v1320 = vpop.f32.mrf.mxu0
    %v1321 = vadd.f32 %v1308, %v1320
    %v1322 = vpop.f32.mrf.mxu0
    %1323 = vdwg.mxu0
    %s1324 = scalar_lea.vmem %s9, 1
    %v1325 = vld [vmem:[%s1324] ss:$8 sm:$0xf]
    %v1326 = vpack.c.bf16 %v1217, %v1165
    %v1327 = vpack.c.bf16 %v1321, %v1269
    %v1329 = vperm.slane %v1325, 0
    %v1330 = vperm.slane %v1325, 1
    %v1331 = vperm.slane %v1325, 2
    %v1332 = vperm.slane %v1325, 3
    %v1337 = vpack.c.bf16 %v1330, %v1329
    %v1338 = vpack.c.bf16 %v1332, %v1331
    %v1341 = vunpack.c.l.b16 %v1337
    %v1342 = vunpack.c.h.b16 %v1337
    %v1343 = vunpack.c.l.b16 %v1338
    %v1344 = vunpack.c.h.b16 %v1338
    %v1345 = vpack.c.b16 %v1341, %v1341
    %v1346 = vpack.c.b16 %v1342, %v1342
    %v1347 = vpack.c.b16 %v1343, %v1343
    %v1348 = vpack.c.b16 %v1344, %v1344
    %v1350 = vpack.i.b16 %v1345, %v1345
    %v1352 = vperm.slane %v1350, 0
    %v1354 = vpack.i.b16 %v1346, %v1346
    %v1356 = vperm.slane %v1354, 0
    %v1358 = vpack.i.b16 %v1347, %v1347
    %v1360 = vperm.slane %v1358, 0
    %v1362 = vpack.i.b16 %v1348, %v1348
    %v1364 = vperm.slane %v1362, 0
    %v1365 = vunpack.c.l.bf16 %v1326
    %v1366 = vunpack.c.h.bf16 %v1326
    %v1367 = vunpack.c.l.bf16 %v1327
    %v1368 = vunpack.c.h.bf16 %v1327
    %v1369 = vunpack.c.l.bf16 %v1352
    %v1370 = vunpack.c.l.bf16 %v1356
    %v1371 = vunpack.c.l.bf16 %v1360
    %v1372 = vunpack.c.l.bf16 %v1364
    %v1373 = vadd.f32 %v1365, %v1369
    %v1374 = vadd.f32 %v1366, %v1370
    %v1375 = vadd.f32 %v1367, %v1371
    %v1376 = vadd.f32 %v1368, %v1372
    %v1377 = vpack.c.bf16 %v1374, %v1373
    %v1378 = vpack.c.bf16 %v1376, %v1375
    %v1379 = vunpack.c.l.bf16 %v1377
    %v1380 = vunpack.c.h.bf16 %v1377
    %v1381 = vunpack.c.l.bf16 %v1378
    %v1382 = vunpack.c.h.bf16 %v1378
    %v1383 = vmax.f32 %v1379, 0.0
    %v1384 = vmax.f32 %v1380, 0.0
    %v1385 = vmax.f32 %v1381, 0.0
    %v1386 = vmax.f32 %v1382, 0.0
    %v1387 = vpack.c.bf16 %v1383, %v1383
    %v1388 = vpack.c.bf16 %v1384, %v1384
    %v1389 = vpack.c.bf16 %v1385, %v1385
    %v1390 = vpack.c.bf16 %v1386, %v1386
    %v1391 = vld [vmem:[#allocation8] sm:$0xff]
    %v1392 = vld [vmem:[#allocation8 + $0x8] sm:$0xff]
    %v1393 = vld [vmem:[#allocation8 + $0x10] sm:$0xff]
    %v1394 = vld [vmem:[#allocation8 + $0x18] sm:$0xff]
    %v1395 = vld [vmem:[#allocation8 + $0x20] sm:$0xff]
    %v1396 = vld [vmem:[#allocation8 + $0x28] sm:$0xff]
    %v1397 = vld [vmem:[#allocation8 + $0x30] sm:$0xff]
    %v1398 = vld [vmem:[#allocation8 + $0x38] sm:$0xff]
    %v1399 = vld [vmem:[#allocation8 + $0x40] sm:$0xff]
    %v1400 = vld [vmem:[#allocation8 + $0x48] sm:$0xff]
    %v1401 = vld [vmem:[#allocation8 + $0x50] sm:$0xff]
    %v1402 = vld [vmem:[#allocation8 + $0x58] sm:$0xff]
    %v1403 = vld [vmem:[#allocation8 + $0x60] sm:$0xff]
    %v1404 = vld [vmem:[#allocation8 + $0x68] sm:$0xff]
    %v1405 = vld [vmem:[#allocation8 + $0x70] sm:$0xff]
    %v1406 = vld [vmem:[#allocation8 + $0x78] sm:$0xff]
    %v1407 = vld [vmem:[#allocation8 + $0x80] sm:$0xff]
    %v1408 = vld [vmem:[#allocation8 + $0x88] sm:$0xff]
    %v1409 = vld [vmem:[#allocation8 + $0x90] sm:$0xff]
    %v1410 = vld [vmem:[#allocation8 + $0x98] sm:$0xff]
    %v1411 = vld [vmem:[#allocation8 + $0xa0] sm:$0xff]
    %v1412 = vld [vmem:[#allocation8 + $0xa8] sm:$0xff]
    %v1413 = vld [vmem:[#allocation8 + $0xb0] sm:$0xff]
    %v1414 = vld [vmem:[#allocation8 + $0xb8] sm:$0xff]
    %v1415 = vld [vmem:[#allocation8 + $0xc0] sm:$0xff]
    %v1416 = vld [vmem:[#allocation8 + $0xc8] sm:$0xff]
    %v1417 = vld [vmem:[#allocation8 + $0xd0] sm:$0xff]
    %v1418 = vld [vmem:[#allocation8 + $0xd8] sm:$0xff]
    %v1419 = vld [vmem:[#allocation8 + $0xe0] sm:$0xff]
    %v1420 = vld [vmem:[#allocation8 + $0xe8] sm:$0xff]
    %v1421 = vld [vmem:[#allocation8 + $0xf0] sm:$0xff]
    %v1422 = vld [vmem:[#allocation8 + $0xf8] sm:$0xff]
    %v1423 = vld [vmem:[#allocation8 + $0x100] sm:$0xff]
    %v1424 = vld [vmem:[#allocation8 + $0x108] sm:$0xff]
    %v1425 = vld [vmem:[#allocation8 + $0x110] sm:$0xff]
    %v1426 = vld [vmem:[#allocation8 + $0x118] sm:$0xff]
    %v1427 = vld [vmem:[#allocation8 + $0x120] sm:$0xff]
    %v1428 = vld [vmem:[#allocation8 + $0x128] sm:$0xff]
    %v1429 = vld [vmem:[#allocation8 + $0x130] sm:$0xff]
    %v1430 = vld [vmem:[#allocation8 + $0x138] sm:$0xff]
    %v1431 = vld [vmem:[#allocation8 + $0x140] sm:$0xff]
    %v1432 = vld [vmem:[#allocation8 + $0x148] sm:$0xff]
    %v1433 = vld [vmem:[#allocation8 + $0x150] sm:$0xff]
    %v1434 = vld [vmem:[#allocation8 + $0x158] sm:$0xff]
    %v1435 = vld [vmem:[#allocation8 + $0x160] sm:$0xff]
    %v1436 = vld [vmem:[#allocation8 + $0x168] sm:$0xff]
    %v1437 = vld [vmem:[#allocation8 + $0x170] sm:$0xff]
    %v1438 = vld [vmem:[#allocation8 + $0x178] sm:$0xff]
    %v1439 = vld [vmem:[#allocation8 + $0x180] sm:$0xff]
    %v1440 = vld [vmem:[#allocation8 + $0x188] sm:$0xff]
    %v1441 = vld [vmem:[#allocation8 + $0x190] sm:$0xff]
    %v1442 = vld [vmem:[#allocation8 + $0x198] sm:$0xff]
    %v1443 = vld [vmem:[#allocation8 + $0x1a0] sm:$0xff]
    %v1444 = vld [vmem:[#allocation8 + $0x1a8] sm:$0xff]
    %v1445 = vld [vmem:[#allocation8 + $0x1b0] sm:$0xff]
    %v1446 = vld [vmem:[#allocation8 + $0x1b8] sm:$0xff]
    %v1447 = vld [vmem:[#allocation8 + $0x1c0] sm:$0xff]
    %v1448 = vld [vmem:[#allocation8 + $0x1c8] sm:$0xff]
    %v1449 = vld [vmem:[#allocation8 + $0x1d0] sm:$0xff]
    %v1450 = vld [vmem:[#allocation8 + $0x1d8] sm:$0xff]
    %v1451 = vld [vmem:[#allocation8 + $0x1e0] sm:$0xff]
    %v1452 = vld [vmem:[#allocation8 + $0x1e8] sm:$0xff]
    %v1453 = vld [vmem:[#allocation8 + $0x1f0] sm:$0xff]
    %v1454 = vld [vmem:[#allocation8 + $0x1f8] sm:$0xff]
    %v1519 = vunpack.c.l.b16 %v1391
    %v1520 = vunpack.c.h.b16 %v1391
    %v1521 = vunpack.c.l.b16 %v1392
    %v1522 = vunpack.c.h.b16 %v1392
    %v1523 = vunpack.c.l.b16 %v1393
    %v1524 = vunpack.c.h.b16 %v1393
    %v1525 = vunpack.c.l.b16 %v1394
    %v1526 = vunpack.c.h.b16 %v1394
    %v1527 = vunpack.c.l.b16 %v1395
    %v1528 = vunpack.c.h.b16 %v1395
    %v1529 = vunpack.c.l.b16 %v1396
    %v1530 = vunpack.c.h.b16 %v1396
    %v1531 = vunpack.c.l.b16 %v1397
    %v1532 = vunpack.c.h.b16 %v1397
    %v1533 = vunpack.c.l.b16 %v1398
    %v1534 = vunpack.c.h.b16 %v1398
    %v1535 = vunpack.c.l.b16 %v1399
    %v1536 = vunpack.c.h.b16 %v1399
    %v1537 = vunpack.c.l.b16 %v1400
    %v1538 = vunpack.c.h.b16 %v1400
    %v1539 = vunpack.c.l.b16 %v1401
    %v1540 = vunpack.c.h.b16 %v1401
    %v1541 = vunpack.c.l.b16 %v1402
    %v1542 = vunpack.c.h.b16 %v1402
    %v1543 = vunpack.c.l.b16 %v1403
    %v1544 = vunpack.c.h.b16 %v1403
    %v1545 = vunpack.c.l.b16 %v1404
    %v1546 = vunpack.c.h.b16 %v1404
    %v1547 = vunpack.c.l.b16 %v1405
    %v1548 = vunpack.c.h.b16 %v1405
    %v1549 = vunpack.c.l.b16 %v1406
    %v1550 = vunpack.c.h.b16 %v1406
    %v1551 = vunpack.c.l.b16 %v1407
    %v1552 = vunpack.c.h.b16 %v1407
    %v1553 = vunpack.c.l.b16 %v1408
    %v1554 = vunpack.c.h.b16 %v1408
    %v1555 = vunpack.c.l.b16 %v1409
    %v1556 = vunpack.c.h.b16 %v1409
    %v1557 = vunpack.c.l.b16 %v1410
    %v1558 = vunpack.c.h.b16 %v1410
    %v1559 = vunpack.c.l.b16 %v1411
    %v1560 = vunpack.c.h.b16 %v1411
    %v1561 = vunpack.c.l.b16 %v1412
    %v1562 = vunpack.c.h.b16 %v1412
    %v1563 = vunpack.c.l.b16 %v1413
    %v1564 = vunpack.c.h.b16 %v1413
    %v1565 = vunpack.c.l.b16 %v1414
    %v1566 = vunpack.c.h.b16 %v1414
    %v1567 = vunpack.c.l.b16 %v1415
    %v1568 = vunpack.c.h.b16 %v1415
    %v1569 = vunpack.c.l.b16 %v1416
    %v1570 = vunpack.c.h.b16 %v1416
    %v1571 = vunpack.c.l.b16 %v1417
    %v1572 = vunpack.c.h.b16 %v1417
    %v1573 = vunpack.c.l.b16 %v1418
    %v1574 = vunpack.c.h.b16 %v1418
    %v1575 = vunpack.c.l.b16 %v1419
    %v1576 = vunpack.c.h.b16 %v1419
    %v1577 = vunpack.c.l.b16 %v1420
    %v1578 = vunpack.c.h.b16 %v1420
    %v1579 = vunpack.c.l.b16 %v1421
    %v1580 = vunpack.c.h.b16 %v1421
    %v1581 = vunpack.c.l.b16 %v1422
    %v1582 = vunpack.c.h.b16 %v1422
    %v1583 = vunpack.c.l.b16 %v1423
    %v1584 = vunpack.c.h.b16 %v1423
    %v1585 = vunpack.c.l.b16 %v1424
    %v1586 = vunpack.c.h.b16 %v1424
    %v1587 = vunpack.c.l.b16 %v1425
    %v1588 = vunpack.c.h.b16 %v1425
    %v1589 = vunpack.c.l.b16 %v1426
    %v1590 = vunpack.c.h.b16 %v1426
    %v1591 = vunpack.c.l.b16 %v1427
    %v1592 = vunpack.c.h.b16 %v1427
    %v1593 = vunpack.c.l.b16 %v1428
    %v1594 = vunpack.c.h.b16 %v1428
    %v1595 = vunpack.c.l.b16 %v1429
    %v1596 = vunpack.c.h.b16 %v1429
    %v1597 = vunpack.c.l.b16 %v1430
    %v1598 = vunpack.c.h.b16 %v1430
    %v1599 = vunpack.c.l.b16 %v1431
    %v1600 = vunpack.c.h.b16 %v1431
    %v1601 = vunpack.c.l.b16 %v1432
    %v1602 = vunpack.c.h.b16 %v1432
    %v1603 = vunpack.c.l.b16 %v1433
    %v1604 = vunpack.c.h.b16 %v1433
    %v1605 = vunpack.c.l.b16 %v1434
    %v1606 = vunpack.c.h.b16 %v1434
    %v1607 = vunpack.c.l.b16 %v1435
    %v1608 = vunpack.c.h.b16 %v1435
    %v1609 = vunpack.c.l.b16 %v1436
    %v1610 = vunpack.c.h.b16 %v1436
    %v1611 = vunpack.c.l.b16 %v1437
    %v1612 = vunpack.c.h.b16 %v1437
    %v1613 = vunpack.c.l.b16 %v1438
    %v1614 = vunpack.c.h.b16 %v1438
    %v1615 = vunpack.c.l.b16 %v1439
    %v1616 = vunpack.c.h.b16 %v1439
    %v1617 = vunpack.c.l.b16 %v1440
    %v1618 = vunpack.c.h.b16 %v1440
    %v1619 = vunpack.c.l.b16 %v1441
    %v1620 = vunpack.c.h.b16 %v1441
    %v1621 = vunpack.c.l.b16 %v1442
    %v1622 = vunpack.c.h.b16 %v1442
    %v1623 = vunpack.c.l.b16 %v1443
    %v1624 = vunpack.c.h.b16 %v1443
    %v1625 = vunpack.c.l.b16 %v1444
    %v1626 = vunpack.c.h.b16 %v1444
    %v1627 = vunpack.c.l.b16 %v1445
    %v1628 = vunpack.c.h.b16 %v1445
    %v1629 = vunpack.c.l.b16 %v1446
    %v1630 = vunpack.c.h.b16 %v1446
    %v1631 = vunpack.c.l.b16 %v1447
    %v1632 = vunpack.c.h.b16 %v1447
    %v1633 = vunpack.c.l.b16 %v1448
    %v1634 = vunpack.c.h.b16 %v1448
    %v1635 = vunpack.c.l.b16 %v1449
    %v1636 = vunpack.c.h.b16 %v1449
    %v1637 = vunpack.c.l.b16 %v1450
    %v1638 = vunpack.c.h.b16 %v1450
    %v1639 = vunpack.c.l.b16 %v1451
    %v1640 = vunpack.c.h.b16 %v1451
    %v1641 = vunpack.c.l.b16 %v1452
    %v1642 = vunpack.c.h.b16 %v1452
    %v1643 = vunpack.c.l.b16 %v1453
    %v1644 = vunpack.c.h.b16 %v1453
    %v1645 = vunpack.c.l.b16 %v1454
    %v1646 = vunpack.c.h.b16 %v1454
    %v1647 = vpack.c.b16 %v1521, %v1519
    %v1648 = vpack.c.b16 %v1522, %v1520
    %v1649 = vpack.c.b16 %v1525, %v1523
    %v1650 = vpack.c.b16 %v1526, %v1524
    %v1651 = vpack.c.b16 %v1529, %v1527
    %v1652 = vpack.c.b16 %v1530, %v1528
    %v1653 = vpack.c.b16 %v1533, %v1531
    %v1654 = vpack.c.b16 %v1534, %v1532
    %v1655 = vpack.c.b16 %v1537, %v1535
    %v1656 = vpack.c.b16 %v1538, %v1536
    %v1657 = vpack.c.b16 %v1541, %v1539
    %v1658 = vpack.c.b16 %v1542, %v1540
    %v1659 = vpack.c.b16 %v1545, %v1543
    %v1660 = vpack.c.b16 %v1546, %v1544
    %v1661 = vpack.c.b16 %v1549, %v1547
    %v1662 = vpack.c.b16 %v1550, %v1548
    %v1663 = vpack.c.b16 %v1553, %v1551
    %v1664 = vpack.c.b16 %v1554, %v1552
    %v1665 = vpack.c.b16 %v1557, %v1555
    %v1666 = vpack.c.b16 %v1558, %v1556
    %v1667 = vpack.c.b16 %v1561, %v1559
    %v1668 = vpack.c.b16 %v1562, %v1560
    %v1669 = vpack.c.b16 %v1565, %v1563
    %v1670 = vpack.c.b16 %v1566, %v1564
    %v1671 = vpack.c.b16 %v1569, %v1567
    %v1672 = vpack.c.b16 %v1570, %v1568
    %v1673 = vpack.c.b16 %v1573, %v1571
    %v1674 = vpack.c.b16 %v1574, %v1572
    %v1675 = vpack.c.b16 %v1577, %v1575
    %v1676 = vpack.c.b16 %v1578, %v1576
    %v1677 = vpack.c.b16 %v1581, %v1579
    %v1678 = vpack.c.b16 %v1582, %v1580
    %v1679 = vpack.c.b16 %v1585, %v1583
    %v1680 = vpack.c.b16 %v1586, %v1584
    %v1681 = vpack.c.b16 %v1589, %v1587
    %v1682 = vpack.c.b16 %v1590, %v1588
    %v1683 = vpack.c.b16 %v1593, %v1591
    %v1684 = vpack.c.b16 %v1594, %v1592
    %v1685 = vpack.c.b16 %v1597, %v1595
    %v1686 = vpack.c.b16 %v1598, %v1596
    %v1687 = vpack.c.b16 %v1601, %v1599
    %v1688 = vpack.c.b16 %v1602, %v1600
    %v1689 = vpack.c.b16 %v1605, %v1603
    %v1690 = vpack.c.b16 %v1606, %v1604
    %v1691 = vpack.c.b16 %v1609, %v1607
    %v1692 = vpack.c.b16 %v1610, %v1608
    %v1693 = vpack.c.b16 %v1613, %v1611
    %v1694 = vpack.c.b16 %v1614, %v1612
    %v1695 = vpack.c.b16 %v1617, %v1615
    %v1696 = vpack.c.b16 %v1618, %v1616
    %v1697 = vpack.c.b16 %v1621, %v1619
    %v1698 = vpack.c.b16 %v1622, %v1620
    %v1699 = vpack.c.b16 %v1625, %v1623
    %v1700 = vpack.c.b16 %v1626, %v1624
    %v1701 = vpack.c.b16 %v1629, %v1627
    %v1702 = vpack.c.b16 %v1630, %v1628
    %v1703 = vpack.c.b16 %v1633, %v1631
    %v1704 = vpack.c.b16 %v1634, %v1632
    %v1705 = vpack.c.b16 %v1637, %v1635
    %v1706 = vpack.c.b16 %v1638, %v1636
    %v1707 = vpack.c.b16 %v1641, %v1639
    %v1708 = vpack.c.b16 %v1642, %v1640
    %v1709 = vpack.c.b16 %v1645, %v1643
    %v1710 = vpack.c.b16 %v1646, %v1644
    %1775 = vmatpush.bf16.msra.mxu0 %v1661
    %1776 = vmatpush.bf16.msra.mxu0 %v1659
    %1777 = vmatpush.bf16.msra.mxu0 %v1657
    %1778 = vmatpush.bf16.msra.mxu0 %v1655
    %1779 = vmatpush.bf16.msra.mxu0 %v1653
    %1780 = vmatpush.bf16.msra.mxu0 %v1651
    %1781 = vmatpush.bf16.msra.mxu0 %v1649
    %1782 = vmatpush.bf16.msra.mxu0 %v1647
    %1783 = vmatmul.bf16.gmra.mxu0 %v1387
    %v1784 = vpop.f32.mrf.mxu0
    %v1785 = vadd.f32 0.0, %v1784
    %v1786 = vpop.f32.mrf.mxu0
    %1787 = vdwg.mxu0
    %1788 = vmatpush.bf16.msra.mxu0 %v1677
    %1789 = vmatpush.bf16.msra.mxu0 %v1675
    %1790 = vmatpush.bf16.msra.mxu0 %v1673
    %1791 = vmatpush.bf16.msra.mxu0 %v1671
    %1792 = vmatpush.bf16.msra.mxu0 %v1669
    %1793 = vmatpush.bf16.msra.mxu0 %v1667
    %1794 = vmatpush.bf16.msra.mxu0 %v1665
    %1795 = vmatpush.bf16.msra.mxu0 %v1663
    %1796 = vmatmul.bf16.gmra.mxu0 %v1388
    %v1797 = vpop.f32.mrf.mxu0
    %v1798 = vadd.f32 %v1785, %v1797
    %v1799 = vpop.f32.mrf.mxu0
    %1800 = vdwg.mxu0
    %1801 = vmatpush.bf16.msra.mxu0 %v1693
    %1802 = vmatpush.bf16.msra.mxu0 %v1691
    %1803 = vmatpush.bf16.msra.mxu0 %v1689
    %1804 = vmatpush.bf16.msra.mxu0 %v1687
    %1805 = vmatpush.bf16.msra.mxu0 %v1685
    %1806 = vmatpush.bf16.msra.mxu0 %v1683
    %1807 = vmatpush.bf16.msra.mxu0 %v1681
    %1808 = vmatpush.bf16.msra.mxu0 %v1679
    %1809 = vmatmul.bf16.gmra.mxu0 %v1389
    %v1810 = vpop.f32.mrf.mxu0
    %v1811 = vadd.f32 %v1798, %v1810
    %v1812 = vpop.f32.mrf.mxu0
    %1813 = vdwg.mxu0
    %1814 = vmatpush.bf16.msra.mxu0 %v1709
    %1815 = vmatpush.bf16.msra.mxu0 %v1707
    %1816 = vmatpush.bf16.msra.mxu0 %v1705
    %1817 = vmatpush.bf16.msra.mxu0 %v1703
    %1818 = vmatpush.bf16.msra.mxu0 %v1701
    %1819 = vmatpush.bf16.msra.mxu0 %v1699
    %1820 = vmatpush.bf16.msra.mxu0 %v1697
    %1821 = vmatpush.bf16.msra.mxu0 %v1695
    %1822 = vmatmul.bf16.gmra.mxu0 %v1390
    %v1823 = vpop.f32.mrf.mxu0
    %v1824 = vadd.f32 %v1811, %v1823
    %v1825 = vpop.f32.mrf.mxu0
    %1826 = vdwg.mxu0
    %1827 = vmatpush.bf16.msra.mxu0 %v1662
    %1828 = vmatpush.bf16.msra.mxu0 %v1660
    %1829 = vmatpush.bf16.msra.mxu0 %v1658
    %1830 = vmatpush.bf16.msra.mxu0 %v1656
    %1831 = vmatpush.bf16.msra.mxu0 %v1654
    %1832 = vmatpush.bf16.msra.mxu0 %v1652
    %1833 = vmatpush.bf16.msra.mxu0 %v1650
    %1834 = vmatpush.bf16.msra.mxu0 %v1648
    %1835 = vmatmul.bf16.gmra.mxu0 %v1387
    %v1836 = vpop.f32.mrf.mxu0
    %v1837 = vadd.f32 0.0, %v1836
    %v1838 = vpop.f32.mrf.mxu0
    %1839 = vdwg.mxu0
    %1840 = vmatpush.bf16.msra.mxu0 %v1678
    %1841 = vmatpush.bf16.msra.mxu0 %v1676
    %1842 = vmatpush.bf16.msra.mxu0 %v1674
    %1843 = vmatpush.bf16.msra.mxu0 %v1672
    %1844 = vmatpush.bf16.msra.mxu0 %v1670
    %1845 = vmatpush.bf16.msra.mxu0 %v1668
    %1846 = vmatpush.bf16.msra.mxu0 %v1666
    %1847 = vmatpush.bf16.msra.mxu0 %v1664
    %1848 = vmatmul.bf16.gmra.mxu0 %v1388
    %v1849 = vpop.f32.mrf.mxu0
    %v1850 = vadd.f32 %v1837, %v1849
    %v1851 = vpop.f32.mrf.mxu0
    %1852 = vdwg.mxu0
    %1853 = vmatpush.bf16.msra.mxu0 %v1694
    %1854 = vmatpush.bf16.msra.mxu0 %v1692
    %1855 = vmatpush.bf16.msra.mxu0 %v1690
    %1856 = vmatpush.bf16.msra.mxu0 %v1688
    %1857 = vmatpush.bf16.msra.mxu0 %v1686
    %1858 = vmatpush.bf16.msra.mxu0 %v1684
    %1859 = vmatpush.bf16.msra.mxu0 %v1682
    %1860 = vmatpush.bf16.msra.mxu0 %v1680
    %1861 = vmatmul.bf16.gmra.mxu0 %v1389
    %v1862 = vpop.f32.mrf.mxu0
    %v1863 = vadd.f32 %v1850, %v1862
    %v1864 = vpop.f32.mrf.mxu0
    %1865 = vdwg.mxu0
    %1866 = vmatpush.bf16.msra.mxu0 %v1710
    %1867 = vmatpush.bf16.msra.mxu0 %v1708
    %1868 = vmatpush.bf16.msra.mxu0 %v1706
    %1869 = vmatpush.bf16.msra.mxu0 %v1704
    %1870 = vmatpush.bf16.msra.mxu0 %v1702
    %1871 = vmatpush.bf16.msra.mxu0 %v1700
    %1872 = vmatpush.bf16.msra.mxu0 %v1698
    %1873 = vmatpush.bf16.msra.mxu0 %v1696
    %1874 = vmatmul.bf16.gmra.mxu0 %v1390
    %v1875 = vpop.f32.mrf.mxu0
    %v1876 = vadd.f32 %v1863, %v1875
    %v1877 = vpop.f32.mrf.mxu0
    %1878 = vdwg.mxu0
    %s1879 = scalar_lea.vmem %s9, 2
    %v1880 = vld [vmem:[%s1879] ss:$8 sm:$0x3]
    %v1881 = vpack.c.bf16 %v1876, %v1824
    %v1883 = vperm.slane %v1880, 0
    %v1884 = vperm.slane %v1880, 1
    %v1887 = vpack.c.bf16 %v1884, %v1883
    %v1889 = vunpack.c.l.b16 %v1887
    %v1890 = vunpack.c.h.b16 %v1887
    %v1891 = vpack.c.b16 %v1889, %v1889
    %v1892 = vpack.c.b16 %v1890, %v1890
    %v1894 = vpack.i.b16 %v1891, %v1891
    %v1896 = vperm.slane %v1894, 0
    %v1898 = vpack.i.b16 %v1892, %v1892
    %v1900 = vperm.slane %v1898, 0
    %v1901 = vunpack.c.l.bf16 %v1881
    %v1902 = vunpack.c.h.bf16 %v1881
    %v1903 = vunpack.c.l.bf16 %v1896
    %v1904 = vunpack.c.l.bf16 %v1900
    %v1905 = vadd.f32 %v1901, %v1903
    %v1906 = vadd.f32 %v1902, %v1904
    %v1907 = vpack.c.bf16 %v1906, %v1905
    %v1908 = vunpack.c.l.bf16 %v1907
    %v1909 = vunpack.c.h.bf16 %v1907
    %v1910 = vmax.f32 %v1908, 0.0
    %v1911 = vmax.f32 %v1909, 0.0
    %v1912 = vpack.c.bf16 %v1910, %v1910
    %v1913 = vpack.c.bf16 %v1911, %v1911
    %v1914 = vld [vmem:[#allocation10] sm:$0xff]
    %v1915 = vld [vmem:[#allocation10 + $0x8] sm:$0xff]
    %v1916 = vld [vmem:[#allocation10 + $0x10] sm:$0xff]
    %v1917 = vld [vmem:[#allocation10 + $0x18] sm:$0xff]
    %v1918 = vld [vmem:[#allocation10 + $0x20] sm:$0xff]
    %v1919 = vld [vmem:[#allocation10 + $0x28] sm:$0xff]
    %v1920 = vld [vmem:[#allocation10 + $0x30] sm:$0xff]
    %v1921 = vld [vmem:[#allocation10 + $0x38] sm:$0xff]
    %v1922 = vld [vmem:[#allocation10 + $0x40] sm:$0xff]
    %v1923 = vld [vmem:[#allocation10 + $0x48] sm:$0xff]
    %v1924 = vld [vmem:[#allocation10 + $0x50] sm:$0xff]
    %v1925 = vld [vmem:[#allocation10 + $0x58] sm:$0xff]
    %v1926 = vld [vmem:[#allocation10 + $0x60] sm:$0xff]
    %v1927 = vld [vmem:[#allocation10 + $0x68] sm:$0xff]
    %v1928 = vld [vmem:[#allocation10 + $0x70] sm:$0xff]
    %v1929 = vld [vmem:[#allocation10 + $0x78] sm:$0xff]
    %v1930 = vld [vmem:[#allocation10 + $0x80] sm:$0xff]
    %v1931 = vld [vmem:[#allocation10 + $0x88] sm:$0xff]
    %v1932 = vld [vmem:[#allocation10 + $0x90] sm:$0xff]
    %v1933 = vld [vmem:[#allocation10 + $0x98] sm:$0xff]
    %v1934 = vld [vmem:[#allocation10 + $0xa0] sm:$0xff]
    %v1935 = vld [vmem:[#allocation10 + $0xa8] sm:$0xff]
    %v1936 = vld [vmem:[#allocation10 + $0xb0] sm:$0xff]
    %v1937 = vld [vmem:[#allocation10 + $0xb8] sm:$0xff]
    %v1938 = vld [vmem:[#allocation10 + $0xc0] sm:$0xff]
    %v1939 = vld [vmem:[#allocation10 + $0xc8] sm:$0xff]
    %v1940 = vld [vmem:[#allocation10 + $0xd0] sm:$0xff]
    %v1941 = vld [vmem:[#allocation10 + $0xd8] sm:$0xff]
    %v1942 = vld [vmem:[#allocation10 + $0xe0] sm:$0xff]
    %v1943 = vld [vmem:[#allocation10 + $0xe8] sm:$0xff]
    %v1944 = vld [vmem:[#allocation10 + $0xf0] sm:$0xff]
    %v1945 = vld [vmem:[#allocation10 + $0xf8] sm:$0xff]
    %v1978 = vunpack.c.l.b16 %v1914
    %v1979 = vunpack.c.h.b16 %v1914
    %v1980 = vunpack.c.l.b16 %v1915
    %v1981 = vunpack.c.h.b16 %v1915
    %v1982 = vunpack.c.l.b16 %v1916
    %v1983 = vunpack.c.h.b16 %v1916
    %v1984 = vunpack.c.l.b16 %v1917
    %v1985 = vunpack.c.h.b16 %v1917
    %v1986 = vunpack.c.l.b16 %v1918
    %v1987 = vunpack.c.h.b16 %v1918
    %v1988 = vunpack.c.l.b16 %v1919
    %v1989 = vunpack.c.h.b16 %v1919
    %v1990 = vunpack.c.l.b16 %v1920
    %v1991 = vunpack.c.h.b16 %v1920
    %v1992 = vunpack.c.l.b16 %v1921
    %v1993 = vunpack.c.h.b16 %v1921
    %v1994 = vunpack.c.l.b16 %v1922
    %v1995 = vunpack.c.h.b16 %v1922
    %v1996 = vunpack.c.l.b16 %v1923
    %v1997 = vunpack.c.h.b16 %v1923
    %v1998 = vunpack.c.l.b16 %v1924
    %v1999 = vunpack.c.h.b16 %v1924
    %v2000 = vunpack.c.l.b16 %v1925
    %v2001 = vunpack.c.h.b16 %v1925
    %v2002 = vunpack.c.l.b16 %v1926
    %v2003 = vunpack.c.h.b16 %v1926
    %v2004 = vunpack.c.l.b16 %v1927
    %v2005 = vunpack.c.h.b16 %v1927
    %v2006 = vunpack.c.l.b16 %v1928
    %v2007 = vunpack.c.h.b16 %v1928
    %v2008 = vunpack.c.l.b16 %v1929
    %v2009 = vunpack.c.h.b16 %v1929
    %v2010 = vunpack.c.l.b16 %v1930
    %v2011 = vunpack.c.h.b16 %v1930
    %v2012 = vunpack.c.l.b16 %v1931
    %v2013 = vunpack.c.h.b16 %v1931
    %v2014 = vunpack.c.l.b16 %v1932
    %v2015 = vunpack.c.h.b16 %v1932
    %v2016 = vunpack.c.l.b16 %v1933
    %v2017 = vunpack.c.h.b16 %v1933
    %v2018 = vunpack.c.l.b16 %v1934
    %v2019 = vunpack.c.h.b16 %v1934
    %v2020 = vunpack.c.l.b16 %v1935
    %v2021 = vunpack.c.h.b16 %v1935
    %v2022 = vunpack.c.l.b16 %v1936
    %v2023 = vunpack.c.h.b16 %v1936
    %v2024 = vunpack.c.l.b16 %v1937
    %v2025 = vunpack.c.h.b16 %v1937
    %v2026 = vunpack.c.l.b16 %v1938
    %v2027 = vunpack.c.h.b16 %v1938
    %v2028 = vunpack.c.l.b16 %v1939
    %v2029 = vunpack.c.h.b16 %v1939
    %v2030 = vunpack.c.l.b16 %v1940
    %v2031 = vunpack.c.h.b16 %v1940
    %v2032 = vunpack.c.l.b16 %v1941
    %v2033 = vunpack.c.h.b16 %v1941
    %v2034 = vunpack.c.l.b16 %v1942
    %v2035 = vunpack.c.h.b16 %v1942
    %v2036 = vunpack.c.l.b16 %v1943
    %v2037 = vunpack.c.h.b16 %v1943
    %v2038 = vunpack.c.l.b16 %v1944
    %v2039 = vunpack.c.h.b16 %v1944
    %v2040 = vunpack.c.l.b16 %v1945
    %v2041 = vunpack.c.h.b16 %v1945
    %v2042 = vpack.c.b16 %v1980, %v1978
    %v2043 = vpack.c.b16 %v1981, %v1979
    %v2044 = vpack.c.b16 %v1984, %v1982
    %v2045 = vpack.c.b16 %v1985, %v1983
    %v2046 = vpack.c.b16 %v1988, %v1986
    %v2047 = vpack.c.b16 %v1989, %v1987
    %v2048 = vpack.c.b16 %v1992, %v1990
    %v2049 = vpack.c.b16 %v1993, %v1991
    %v2050 = vpack.c.b16 %v1996, %v1994
    %v2051 = vpack.c.b16 %v1997, %v1995
    %v2052 = vpack.c.b16 %v2000, %v1998
    %v2053 = vpack.c.b16 %v2001, %v1999
    %v2054 = vpack.c.b16 %v2004, %v2002
    %v2055 = vpack.c.b16 %v2005, %v2003
    %v2056 = vpack.c.b16 %v2008, %v2006
    %v2057 = vpack.c.b16 %v2009, %v2007
    %v2058 = vpack.c.b16 %v2012, %v2010
    %v2059 = vpack.c.b16 %v2013, %v2011
    %v2060 = vpack.c.b16 %v2016, %v2014
    %v2061 = vpack.c.b16 %v2017, %v2015
    %v2062 = vpack.c.b16 %v2020, %v2018
    %v2063 = vpack.c.b16 %v2021, %v2019
    %v2064 = vpack.c.b16 %v2024, %v2022
    %v2065 = vpack.c.b16 %v2025, %v2023
    %v2066 = vpack.c.b16 %v2028, %v2026
    %v2067 = vpack.c.b16 %v2029, %v2027
    %v2068 = vpack.c.b16 %v2032, %v2030
    %v2069 = vpack.c.b16 %v2033, %v2031
    %v2070 = vpack.c.b16 %v2036, %v2034
    %v2071 = vpack.c.b16 %v2037, %v2035
    %v2072 = vpack.c.b16 %v2040, %v2038
    %v2073 = vpack.c.b16 %v2041, %v2039
    %2106 = vmatpush.bf16.msra.mxu0 %v2056
    %2107 = vmatpush.bf16.msra.mxu0 %v2054
    %2108 = vmatpush.bf16.msra.mxu0 %v2052
    %2109 = vmatpush.bf16.msra.mxu0 %v2050
    %2110 = vmatpush.bf16.msra.mxu0 %v2048
    %2111 = vmatpush.bf16.msra.mxu0 %v2046
    %2112 = vmatpush.bf16.msra.mxu0 %v2044
    %2113 = vmatpush.bf16.msra.mxu0 %v2042
    %2114 = vmatmul.bf16.gmra.mxu0 %v1912
    %v2115 = vpop.f32.mrf.mxu0
    %v2116 = vadd.f32 0.0, %v2115
    %v2117 = vpop.f32.mrf.mxu0
    %2118 = vdwg.mxu0
    %2119 = vmatpush.bf16.msra.mxu0 %v2072
    %2120 = vmatpush.bf16.msra.mxu0 %v2070
    %2121 = vmatpush.bf16.msra.mxu0 %v2068
    %2122 = vmatpush.bf16.msra.mxu0 %v2066
    %2123 = vmatpush.bf16.msra.mxu0 %v2064
    %2124 = vmatpush.bf16.msra.mxu0 %v2062
    %2125 = vmatpush.bf16.msra.mxu0 %v2060
    %2126 = vmatpush.bf16.msra.mxu0 %v2058
    %2127 = vmatmul.bf16.gmra.mxu0 %v1913
    %v2128 = vpop.f32.mrf.mxu0
    %v2129 = vadd.f32 %v2116, %v2128
    %v2130 = vpop.f32.mrf.mxu0
    %2131 = vdwg.mxu0
    %2132 = vmatpush.bf16.msra.mxu0 %v2057
    %2133 = vmatpush.bf16.msra.mxu0 %v2055
    %2134 = vmatpush.bf16.msra.mxu0 %v2053
    %2135 = vmatpush.bf16.msra.mxu0 %v2051
    %2136 = vmatpush.bf16.msra.mxu0 %v2049
    %2137 = vmatpush.bf16.msra.mxu0 %v2047
    %2138 = vmatpush.bf16.msra.mxu0 %v2045
    %2139 = vmatpush.bf16.msra.mxu0 %v2043
    %2140 = vmatmul.bf16.gmra.mxu0 %v1912
    %v2141 = vpop.f32.mrf.mxu0
    %v2142 = vadd.f32 0.0, %v2141
    %v2143 = vpop.f32.mrf.mxu0
    %2144 = vdwg.mxu0
    %2145 = vmatpush.bf16.msra.mxu0 %v2073
    %2146 = vmatpush.bf16.msra.mxu0 %v2071
    %2147 = vmatpush.bf16.msra.mxu0 %v2069
    %2148 = vmatpush.bf16.msra.mxu0 %v2067
    %2149 = vmatpush.bf16.msra.mxu0 %v2065
    %2150 = vmatpush.bf16.msra.mxu0 %v2063
    %2151 = vmatpush.bf16.msra.mxu0 %v2061
    %2152 = vmatpush.bf16.msra.mxu0 %v2059
    %2153 = vmatmul.bf16.gmra.mxu0 %v1913
    %v2154 = vpop.f32.mrf.mxu0
    %v2155 = vadd.f32 %v2142, %v2154
    %v2156 = vpop.f32.mrf.mxu0
    %2157 = vdwg.mxu0
    %s2158 = scalar_lea.vmem %s9, 3
    %v2159 = vld [vmem:[%s2158] ss:$8 sm:$0x3]
    %v2160 = vpack.c.bf16 %v2155, %v2129
    %v2162 = vperm.slane %v2159, 0
    %v2163 = vperm.slane %v2159, 1
    %v2166 = vpack.c.bf16 %v2163, %v2162
    %v2168 = vunpack.c.l.b16 %v2166
    %v2169 = vunpack.c.h.b16 %v2166
    %v2170 = vpack.c.b16 %v2168, %v2168
    %v2171 = vpack.c.b16 %v2169, %v2169
    %v2173 = vpack.i.b16 %v2170, %v2170
    %v2175 = vperm.slane %v2173, 0
    %v2177 = vpack.i.b16 %v2171, %v2171
    %v2179 = vperm.slane %v2177, 0
    %v2180 = vunpack.c.l.bf16 %v2160
    %v2181 = vunpack.c.h.bf16 %v2160
    %v2182 = vunpack.c.l.bf16 %v2175
    %v2183 = vunpack.c.l.bf16 %v2179
    %v2184 = vadd.f32 %v2180, %v2182
    %v2185 = vadd.f32 %v2181, %v2183
    %v2186 = vpack.c.bf16 %v2185, %v2184
    %v2187 = vunpack.c.l.bf16 %v2186
    %v2188 = vunpack.c.h.bf16 %v2186
    %v2189 = vmax.f32 %v2187, 0.0
    %v2190 = vmax.f32 %v2188, 0.0
    %v2191 = vpack.c.bf16 %v2189, %v2189
    %v2192 = vpack.c.bf16 %v2190, %v2190
    %v2193 = vld [vmem:[#allocation11] sm:$0xf]
    %v2194 = vld [vmem:[#allocation11 + $0x4] sm:$0xf]
    %v2195 = vld [vmem:[#allocation11 + $0x8] sm:$0xf]
    %v2196 = vld [vmem:[#allocation11 + $0xc] sm:$0xf]
    %v2197 = vld [vmem:[#allocation11 + $0x10] sm:$0xf]
    %v2198 = vld [vmem:[#allocation11 + $0x14] sm:$0xf]
    %v2199 = vld [vmem:[#allocation11 + $0x18] sm:$0xf]
    %v2200 = vld [vmem:[#allocation11 + $0x1c] sm:$0xf]
    %v2201 = vld [vmem:[#allocation11 + $0x20] sm:$0xf]
    %v2202 = vld [vmem:[#allocation11 + $0x24] sm:$0xf]
    %v2203 = vld [vmem:[#allocation11 + $0x28] sm:$0xf]
    %v2204 = vld [vmem:[#allocation11 + $0x2c] sm:$0xf]
    %v2205 = vld [vmem:[#allocation11 + $0x30] sm:$0xf]
    %v2206 = vld [vmem:[#allocation11 + $0x34] sm:$0xf]
    %v2207 = vld [vmem:[#allocation11 + $0x38] sm:$0xf]
    %v2208 = vld [vmem:[#allocation11 + $0x3c] sm:$0xf]
    %v2209 = vld [vmem:[#allocation11 + $0x40] sm:$0xf]
    %v2210 = vld [vmem:[#allocation11 + $0x44] sm:$0xf]
    %v2211 = vld [vmem:[#allocation11 + $0x48] sm:$0xf]
    %v2212 = vld [vmem:[#allocation11 + $0x4c] sm:$0xf]
    %v2213 = vld [vmem:[#allocation11 + $0x50] sm:$0xf]
    %v2214 = vld [vmem:[#allocation11 + $0x54] sm:$0xf]
    %v2215 = vld [vmem:[#allocation11 + $0x58] sm:$0xf]
    %v2216 = vld [vmem:[#allocation11 + $0x5c] sm:$0xf]
    %v2217 = vld [vmem:[#allocation11 + $0x60] sm:$0xf]
    %v2218 = vld [vmem:[#allocation11 + $0x64] sm:$0xf]
    %v2219 = vld [vmem:[#allocation11 + $0x68] sm:$0xf]
    %v2220 = vld [vmem:[#allocation11 + $0x6c] sm:$0xf]
    %v2221 = vld [vmem:[#allocation11 + $0x70] sm:$0xf]
    %v2222 = vld [vmem:[#allocation11 + $0x74] sm:$0xf]
    %v2223 = vld [vmem:[#allocation11 + $0x78] sm:$0xf]
    %v2224 = vld [vmem:[#allocation11 + $0x7c] sm:$0xf]
    %v2257 = vunpack.c.l.b16 %v2193
    %v2258 = vunpack.c.l.b16 %v2194
    %v2259 = vunpack.c.l.b16 %v2195
    %v2260 = vunpack.c.l.b16 %v2196
    %v2261 = vunpack.c.l.b16 %v2197
    %v2262 = vunpack.c.l.b16 %v2198
    %v2263 = vunpack.c.l.b16 %v2199
    %v2264 = vunpack.c.l.b16 %v2200
    %v2265 = vunpack.c.l.b16 %v2201
    %v2266 = vunpack.c.l.b16 %v2202
    %v2267 = vunpack.c.l.b16 %v2203
    %v2268 = vunpack.c.l.b16 %v2204
    %v2269 = vunpack.c.l.b16 %v2205
    %v2270 = vunpack.c.l.b16 %v2206
    %v2271 = vunpack.c.l.b16 %v2207
    %v2272 = vunpack.c.l.b16 %v2208
    %v2273 = vunpack.c.l.b16 %v2209
    %v2274 = vunpack.c.l.b16 %v2210
    %v2275 = vunpack.c.l.b16 %v2211
    %v2276 = vunpack.c.l.b16 %v2212
    %v2277 = vunpack.c.l.b16 %v2213
    %v2278 = vunpack.c.l.b16 %v2214
    %v2279 = vunpack.c.l.b16 %v2215
    %v2280 = vunpack.c.l.b16 %v2216
    %v2281 = vunpack.c.l.b16 %v2217
    %v2282 = vunpack.c.l.b16 %v2218
    %v2283 = vunpack.c.l.b16 %v2219
    %v2284 = vunpack.c.l.b16 %v2220
    %v2285 = vunpack.c.l.b16 %v2221
    %v2286 = vunpack.c.l.b16 %v2222
    %v2287 = vunpack.c.l.b16 %v2223
    %v2288 = vunpack.c.l.b16 %v2224
    %v2289 = vpack.c.b16 %v2258, %v2257
    %v2290 = vpack.c.b16 %v2260, %v2259
    %v2291 = vpack.c.b16 %v2262, %v2261
    %v2292 = vpack.c.b16 %v2264, %v2263
    %v2293 = vpack.c.b16 %v2266, %v2265
    %v2294 = vpack.c.b16 %v2268, %v2267
    %v2295 = vpack.c.b16 %v2270, %v2269
    %v2296 = vpack.c.b16 %v2272, %v2271
    %v2297 = vpack.c.b16 %v2274, %v2273
    %v2298 = vpack.c.b16 %v2276, %v2275
    %v2299 = vpack.c.b16 %v2278, %v2277
    %v2300 = vpack.c.b16 %v2280, %v2279
    %v2301 = vpack.c.b16 %v2282, %v2281
    %v2302 = vpack.c.b16 %v2284, %v2283
    %v2303 = vpack.c.b16 %v2286, %v2285
    %v2304 = vpack.c.b16 %v2288, %v2287
    %2321 = vmatpush.bf16.msra.mxu0 %v2296
    %2322 = vmatpush.bf16.msra.mxu0 %v2295
    %2323 = vmatpush.bf16.msra.mxu0 %v2294
    %2324 = vmatpush.bf16.msra.mxu0 %v2293
    %2325 = vmatpush.bf16.msra.mxu0 %v2292
    %2326 = vmatpush.bf16.msra.mxu0 %v2291
    %2327 = vmatpush.bf16.msra.mxu0 %v2290
    %2328 = vmatpush.bf16.msra.mxu0 %v2289
    %2329 = vmatmul.bf16.gmra.mxu0 %v2191
    %v2330 = vpop.f32.mrf.mxu0
    %v2331 = vadd.f32 0.0, %v2330
    %v2332 = vpop.f32.mrf.mxu0
    %2333 = vdwg.mxu0
    %2334 = vmatpush.bf16.msra.mxu0 %v2304
    %2335 = vmatpush.bf16.msra.mxu0 %v2303
    %2336 = vmatpush.bf16.msra.mxu0 %v2302
    %2337 = vmatpush.bf16.msra.mxu0 %v2301
    %2338 = vmatpush.bf16.msra.mxu0 %v2300
    %2339 = vmatpush.bf16.msra.mxu0 %v2299
    %2340 = vmatpush.bf16.msra.mxu0 %v2298
    %2341 = vmatpush.bf16.msra.mxu0 %v2297
    %2342 = vmatmul.bf16.gmra.mxu0 %v2192
    %v2343 = vpop.f32.mrf.mxu0
    %v2344 = vadd.f32 %v2331, %v2343
    %v2345 = vpop.f32.mrf.mxu0
    %2346 = vdwg.mxu0
    %v2347 = vld [vmem:[%s9 + $0x4] ss:$0 sm:$0xff]
    %v2348 = vpack.c.bf16 %v2344, %v2344
    %v2349 = vpack.c.bf16 %v2347, %v2347
    %v2350 = vunpack.c.l.bf16 %v2348
    %v2351 = vunpack.c.l.bf16 %v2349
    %v2352 = vadd.f32 %v2350, %v2351
    %v2353 = vpack.c.bf16 %v2352, %v2352
    %v2354 = vunpack.c.l.bf16 %v2353
    %v2355 = vmax.f32 %v2354, 0.0
    %v2356 = vpack.c.bf16 %v2355, %v2355
    %v2357 = vld [vmem:[%s6] sm:$0xf]
    %v2358 = vld [vmem:[%s6 + $0x4] sm:$0xf]
    %v2359 = vld [vmem:[%s6 + $0x8] sm:$0xf]
    %v2360 = vld [vmem:[%s6 + $0xc] sm:$0xf]
    %v2361 = vld [vmem:[%s6 + $0x10] sm:$0xf]
    %v2362 = vld [vmem:[%s6 + $0x14] sm:$0xf]
    %v2363 = vld [vmem:[%s6 + $0x18] sm:$0xf]
    %v2364 = vld [vmem:[%s6 + $0x1c] sm:$0xf]
    %v2365 = vld [vmem:[%s6 + $0x20] sm:$0xf]
    %v2366 = vld [vmem:[%s6 + $0x24] sm:$0xf]
    %v2367 = vld [vmem:[%s6 + $0x28] sm:$0xf]
    %v2368 = vld [vmem:[%s6 + $0x2c] sm:$0xf]
    %v2369 = vld [vmem:[%s6 + $0x30] sm:$0xf]
    %v2370 = vld [vmem:[%s6 + $0x34] sm:$0xf]
    %v2371 = vld [vmem:[%s6 + $0x38] sm:$0xf]
    %v2372 = vld [vmem:[%s6 + $0x3c] sm:$0xf]
    %v2389 = vunpack.c.l.b16 %v2357
    %v2390 = vunpack.c.l.b16 %v2358
    %v2391 = vunpack.c.l.b16 %v2359
    %v2392 = vunpack.c.l.b16 %v2360
    %v2393 = vunpack.c.l.b16 %v2361
    %v2394 = vunpack.c.l.b16 %v2362
    %v2395 = vunpack.c.l.b16 %v2363
    %v2396 = vunpack.c.l.b16 %v2364
    %v2397 = vunpack.c.l.b16 %v2365
    %v2398 = vunpack.c.l.b16 %v2366
    %v2399 = vunpack.c.l.b16 %v2367
    %v2400 = vunpack.c.l.b16 %v2368
    %v2401 = vunpack.c.l.b16 %v2369
    %v2402 = vunpack.c.l.b16 %v2370
    %v2403 = vunpack.c.l.b16 %v2371
    %v2404 = vunpack.c.l.b16 %v2372
    %v2405 = vpack.c.b16 %v2390, %v2389
    %v2406 = vpack.c.b16 %v2392, %v2391
    %v2407 = vpack.c.b16 %v2394, %v2393
    %v2408 = vpack.c.b16 %v2396, %v2395
    %v2409 = vpack.c.b16 %v2398, %v2397
    %v2410 = vpack.c.b16 %v2400, %v2399
    %v2411 = vpack.c.b16 %v2402, %v2401
    %v2412 = vpack.c.b16 %v2404, %v2403
    %2421 = vmatpush.bf16.msra.mxu0 %v2412
    %2422 = vmatpush.bf16.msra.mxu0 %v2411
    %2423 = vmatpush.bf16.msra.mxu0 %v2410
    %2424 = vmatpush.bf16.msra.mxu0 %v2409
    %2425 = vmatpush.bf16.msra.mxu0 %v2408
    %2426 = vmatpush.bf16.msra.mxu0 %v2407
    %2427 = vmatpush.bf16.msra.mxu0 %v2406
    %2428 = vmatpush.bf16.msra.mxu0 %v2405
    %2429 = vmatmul.bf16.gmra.mxu0 %v2356
    %v2430 = vpop.f32.mrf.mxu0
    %v2431 = vadd.f32 0.0, %v2430
    %v2432 = vpop.f32.mrf.mxu0
    %2433 = vdwg.mxu0
    %v2434 = vld [vmem:[%s9 + $0x5] ss:$0 sm:$0xff]
    %v2435 = vpack.c.bf16 %v2431, %v2431
    %v2436 = vpack.c.bf16 %v2434, %v2434
    %v2437 = vunpack.c.l.bf16 %v2435
    %v2438 = vunpack.c.l.bf16 %v2436
    %v2439 = vadd.f32 %v2437, %v2438
    %v2440 = vpack.c.bf16 %v2439, %v2439
    %v2441 = vunpack.c.l.bf16 %v2440
    %v2442 = vmax.f32 %v2441, 0.0
    %v2443 = vpack.c.bf16 %v2442, %v2442
    %v2444 = vld [vmem:[%s7] sm:$0xf]
    %v2445 = vld [vmem:[%s7 + $0x4] sm:$0xf]
    %v2446 = vld [vmem:[%s7 + $0x8] sm:$0xf]
    %v2447 = vld [vmem:[%s7 + $0xc] sm:$0xf]
    %v2448 = vld [vmem:[%s7 + $0x10] sm:$0xf]
    %v2449 = vld [vmem:[%s7 + $0x14] sm:$0xf]
    %v2450 = vld [vmem:[%s7 + $0x18] sm:$0xf]
    %v2451 = vld [vmem:[%s7 + $0x1c] sm:$0xf]
    %v2460 = vunpack.c.l.b16 %v2444
    %v2461 = vunpack.c.l.b16 %v2445
    %v2462 = vunpack.c.l.b16 %v2446
    %v2463 = vunpack.c.l.b16 %v2447
    %v2464 = vunpack.c.l.b16 %v2448
    %v2465 = vunpack.c.l.b16 %v2449
    %v2466 = vunpack.c.l.b16 %v2450
    %v2467 = vunpack.c.l.b16 %v2451
    %v2468 = vpack.c.b16 %v2461, %v2460
    %v2469 = vpack.c.b16 %v2463, %v2462
    %v2470 = vpack.c.b16 %v2465, %v2464
    %v2471 = vpack.c.b16 %v2467, %v2466
    %v2477 = vsel %vm226, %v2443, 0
    %2479 = vmatpush.bf16.msra.mxu0 0
    %2480 = vmatpush.bf16.msra.mxu0 0
    %2481 = vmatpush.bf16.msra.mxu0 0
    %2482 = vmatpush.bf16.msra.mxu0 0
    %2483 = vmatpush.bf16.msra.mxu0 %v2471
    %2484 = vmatpush.bf16.msra.mxu0 %v2470
    %2485 = vmatpush.bf16.msra.mxu0 %v2469
    %2486 = vmatpush.bf16.msra.mxu0 %v2468
    %2487 = vmatmul.bf16.gmra.mxu0 %v2477
    %v2488 = vpop.f32.mrf.mxu0
    %v2489 = vadd.f32 0.0, %v2488
    %v2490 = vpop.f32.mrf.mxu0
    %2491 = vdwg.mxu0
    %v2492 = vld [vmem:[%s9 + $0x6] ss:$0 sm:$0xff]
    %v2493 = vpack.c.bf16 %v2489, %v2489
    %v2494 = vpack.c.bf16 %v2492, %v2492
    %v2495 = vunpack.c.l.bf16 %v2493
    %v2496 = vunpack.c.l.bf16 %v2494
    %v2497 = vadd.f32 %v2495, %v2496
    %v2498 = vpack.c.bf16 %v2497, %v2497
    %v2499 = vunpack.c.l.bf16 %v2498
    %v2500 = vmax.f32 %v2499, 0.0
    %v2501 = vpack.c.bf16 %v2500, %v2500
    %v2502 = vld [vmem:[%s9 + $0x7] ss:$0 sm:$0xff]
    %v2503 = vld [vmem:[%s8] sm:$0xf]
    %v2504 = vld [vmem:[%s8 + $0x4] sm:$0xf]
    %v2505 = vld [vmem:[%s8 + $0x8] sm:$0xf]
    %v2506 = vld [vmem:[%s8 + $0xc] sm:$0xf]
    %v2507 = vld [vmem:[%s8 + $0x10] sm:$0xf]
    %v2508 = vld [vmem:[%s8 + $0x14] sm:$0xf]
    %v2509 = vld [vmem:[%s8 + $0x18] sm:$0xf]
    %v2510 = vld [vmem:[%s8 + $0x1c] sm:$0xf]
    %v2519 = vunpack.c.l.b16 %v2503
    %v2520 = vunpack.c.l.b16 %v2504
    %v2521 = vunpack.c.l.b16 %v2505
    %v2522 = vunpack.c.l.b16 %v2506
    %v2523 = vunpack.c.l.b16 %v2507
    %v2524 = vunpack.c.l.b16 %v2508
    %v2525 = vunpack.c.l.b16 %v2509
    %v2526 = vunpack.c.l.b16 %v2510
    %v2527 = vpack.c.b16 %v2520, %v2519
    %v2528 = vpack.c.b16 %v2522, %v2521
    %v2529 = vpack.c.b16 %v2524, %v2523
    %v2530 = vpack.c.b16 %v2526, %v2525
    %v2536 = vsel %vm226, %v2501, 0
    %2538 = vmatpush.bf16.msra.mxu0 0
    %2539 = vmatpush.bf16.msra.mxu0 0
    %2540 = vmatpush.bf16.msra.mxu0 0
    %2541 = vmatpush.bf16.msra.mxu0 0
    %2542 = vmatpush.bf16.msra.mxu0 %v2530
    %2543 = vmatpush.bf16.msra.mxu0 %v2529
    %2544 = vmatpush.bf16.msra.mxu0 %v2528
    %2545 = vmatpush.bf16.msra.mxu0 %v2527
    %2546 = vmatmul.bf16.gmra.mxu0 %v2536
    %v2547 = vpop.f32.mrf.mxu0
    %v2548 = vadd.f32 %v2502, %v2547
    %v2549 = vpop.f32.mrf.mxu0
    %2550 = vdwg.mxu0
    %2551 = vst [vmem:[#allocation13] sm:$0xff] %v2548
    // Predicated region
    $region66: #{tpu_custom_call.1} parent=1 // pred_check
      _
    $region67: #{tpu_custom_call.1} parent=1 // pred_check_branch
      %2553 = sbr.rel (0) target = $region69
    $region68: #{tpu_custom_call.1} parent=1 // pred_region
      %2555 = vsyncadd [#allocation4], 0
      %s2557 = sshll.u32 [#allocation13], 4
      %s2558 = int_to_ptr.vmem [resolvable:$true] %s2557
      %s2559 = sshll.u32 %s10, 4
      %s2560 = int_to_ptr.hbm [resolvable:$true] %s2559
      %2562 = dma.vmem_to_hbm [thread:$0]  %s2558, 128, %s2560, [#allocation4]
    $region69: #{tpu_custom_call.1} parent=1 // pred_fallthru
      _
    // Predicated region
    $region70: #{tpu_custom_call.1} parent=1 // pred_check
      _
    $region71: #{tpu_custom_call.1} parent=1 // pred_check_branch
      %2564 = sbr.rel (0) target = $region73
    $region72: #{tpu_custom_call.1} parent=1 // pred_region
      %2566 = dma.done [#allocation4], 128
    $region73: #{tpu_custom_call.1} parent=1 // pred_fallthru
      _
    %2567 = vsyncpa [#allocation3], 1
    %2568 = vsyncpa [#allocation6], 1
    %2569 = vsyncpa [#allocation9], 1
    %2570 = vsyncpa [#allocation12], 1
    %2571 = vsyncpa [#allocation4], 1

// kernel: tpu_custom_call.1
$region0: #{tpu_custom_call.1}
  #allocation0 [shape = 'u32[]', space=smem, size = 0x4, offset = 0x4, fixed_abs, tag = 'smem constant byte address 0x4 - core index']
  #allocation1 [shape = 'u32[72,128]{1,0:T(1,128)}', space=vmem, size = 0x9000, scoped, tag = 'internal scratch']
  %s0 = inlined_call_operand.hbm [shape: bf16[8,64], index: 0, kind: input, shape index: {}]
  %s1 = inlined_call_operand.hbm [shape: bf16[64,512], index: 1, kind: input, shape index: {}]
  %s2 = inlined_call_operand.hbm [shape: bf16[512,512], index: 2, kind: input, shape index: {}]
  %s3 = inlined_call_operand.hbm [shape: bf16[512,256], index: 3, kind: input, shape index: {}]
  %s4 = inlined_call_operand.hbm [shape: bf16[256,256], index: 4, kind: input, shape index: {}]
  %s5 = inlined_call_operand.hbm [shape: bf16[256,128], index: 5, kind: input, shape index: {}]
  %s6 = inlined_call_operand.vmem [shape: bf16[128,64], index: 6, kind: input, shape index: {}]
  %s7 = inlined_call_operand.vmem [shape: bf16[64,64], index: 7, kind: input, shape index: {}]
  %s8 = inlined_call_operand.vmem [shape: bf16[64,128], index: 8, kind: input, shape index: {}]
  %s9 = inlined_call_operand.vmem [shape: f32[8,512], index: 9, kind: input, shape index: {}]
  %s10 = inlined_call_operand.hbm [shape: f32[8,128], index: 10, kind: output, shape index: {}]
  %s11 = sld [smem:[#allocation0]]
  $region74: #{tpu_custom_call.1} parent=0
    _
  %s13 = ssub.s32 1, %s11
  %s14 = scalar_select 0, %s13, %s11
  $region1: #{tpu_custom_call.1} parent=0
    #allocation2 [shape = 'u8[2048]{0}', space=vmem, size = 0x800, scoped, tag = 'input window, operand 0, single buffered']
    #allocation3 [shape = 's32[1]{0}', space=sflag, size = 0x4, scoped, tag = 'scoped memory for tpu_custom_call.1']
    #allocation4 [shape = 's32[1]{0}', space=sflag, size = 0x4, scoped, tag = 'scoped memory for tpu_custom_call.1']
    #allocation5 [shape = 'u8[65536]{0}', space=vmem, size = 0x10000, scoped, tag = 'input window, operand 1, single buffered']
    #allocation6 [shape = 's32[1]{0}', space=sflag, size = 0x4, scoped, tag = 'scoped memory for tpu_custom_call.1']
    #allocation7 [shape = 'u8[524288]{0}', space=vmem, size = 0x80000, scoped, tag = 'input window, operand 2, single buffered']
    #allocation8 [shape = 'u8[262144]{0}', space=vmem, size = 0x40000, scoped, tag = 'input window, operand 3, single buffered']
    #allocation9 [shape = 's32[1]{0}', space=sflag, size = 0x4, scoped, tag = 'scoped memory for tpu_custom_call.1']
    #allocation10 [shape = 'u8[131072]{0}', space=vmem, size = 0x20000, scoped, tag = 'input window, operand 4, single buffered']
    #allocation11 [shape = 'u8[65536]{0}', space=vmem, size = 0x10000, scoped, tag = 'input window, operand 5, single buffered']
    #allocation12 [shape = 's32[1]{0}', space=sflag, size = 0x4, scoped, tag = 'scoped memory for tpu_custom_call.1']
    #allocation13 [shape = 'u8[4096]{0}', space=vmem, size = 0x1000, scoped, tag = 'output window, operand 0, single buffered']
    %15 = vsyncpa [#allocation3], 0
    %16 = vsyncpa [#allocation6], 0
    %17 = vsyncpa [#allocation9], 0
    %18 = vsyncpa [#allocation12], 0
    %19 = vsyncpa [#allocation4], 0
    // Predicated region
    $region2: #{tpu_custom_call.1} parent=1 // pred_check
      _
    $region3: #{tpu_custom_call.1} parent=1 // pred_check_branch
      %21 = sbr.rel (0) target = $region5
    $region4: #{tpu_custom_call.1} parent=1 // pred_region
      %23 = vsyncadd [#allocation3], 0
      %s25 = sshll.u32 %s0, 4
      %s26 = int_to_ptr.hbm [resolvable:$true] %s25
      %s27 = sshll.u32 [#allocation2], 4
      %s28 = int_to_ptr.vmem [resolvable:$true] %s27
      %30 = dma.hbm_to_vmem [thread:$0]  %s26, 64, %s28, [#allocation3]
    $region5: #{tpu_custom_call.1} parent=1 // pred_fallthru
      _
    // Predicated region
    $region6: #{tpu_custom_call.1} parent=1 // pred_check
      _
    $region7: #{tpu_custom_call.1} parent=1 // pred_check_branch
      %32 = sbr.rel (0) target = $region9
    $region8: #{tpu_custom_call.1} parent=1 // pred_region
      %34 = vsyncadd [#allocation6], 0
      %s35 = sshll.u32 %s1, 4
      %s36 = int_to_ptr.hbm [resolvable:$true] %s35
      %s37 = sshll.u32 [#allocation5], 4
      %s38 = int_to_ptr.vmem [resolvable:$true] %s37
      %43 = dma.hbm_to_vmem [thread:$0]  %s36, 2048, %s38, [#allocation6], 256, 256, 16
    $region9: #{tpu_custom_call.1} parent=1 // pred_fallthru
      _
    // Predicated region
    $region10: #{tpu_custom_call.1} parent=1 // pred_check
      _
    $region11: #{tpu_custom_call.1} parent=1 // pred_check_branch
      %45 = sbr.rel (0) target = $region13
    $region12: #{tpu_custom_call.1} parent=1 // pred_region
      %47 = vsyncadd [#allocation6], 0
      %s48 = sshll.u32 %s2, 4
      %s49 = int_to_ptr.hbm [resolvable:$true] %s48
      %s50 = sshll.u32 [#allocation7], 4
      %s51 = int_to_ptr.vmem [resolvable:$true] %s50
      %56 = dma.hbm_to_vmem [thread:$0]  %s49, 16384, %s51, [#allocation6], 256, 256, 16
    $region13: #{tpu_custom_call.1} parent=1 // pred_fallthru
      _
    // Predicated region
    $region14: #{tpu_custom_call.1} parent=1 // pred_check
      _
    $region15: #{tpu_custom_call.1} parent=1 // pred_check_branch
      %58 = sbr.rel (0) target = $region17
    $region16: #{tpu_custom_call.1} parent=1 // pred_region
      %60 = vsyncadd [#allocation9], 0
      %s61 = sshll.u32 %s3, 4
      %s62 = int_to_ptr.hbm [resolvable:$true] %s61
      %s63 = sshll.u32 [#allocation8], 4
      %s64 = int_to_ptr.vmem [resolvable:$true] %s63
      %69 = dma.hbm_to_vmem [thread:$0]  %s62, 8192, %s64, [#allocation9], 128, 128, 8
    $region17: #{tpu_custom_call.1} parent=1 // pred_fallthru
      _
    // Predicated region
    $region18: #{tpu_custom_call.1} parent=1 // pred_check
      _
    $region19: #{tpu_custom_call.1} parent=1 // pred_check_branch
      %71 = sbr.rel (0) target = $region21
    $region20: #{tpu_custom_call.1} parent=1 // pred_region
      %73 = vsyncadd [#allocation9], 0
      %s74 = sshll.u32 %s4, 4
      %s75 = int_to_ptr.hbm [resolvable:$true] %s74
      %s76 = sshll.u32 [#allocation10], 4
      %s77 = int_to_ptr.vmem [resolvable:$true] %s76
      %82 = dma.hbm_to_vmem [thread:$0]  %s75, 4096, %s77, [#allocation9], 128, 128, 8
    $region21: #{tpu_custom_call.1} parent=1 // pred_fallthru
      _
    // Predicated region
    $region22: #{tpu_custom_call.1} parent=1 // pred_check
      _
    $region23: #{tpu_custom_call.1} parent=1 // pred_check_branch
      %84 = sbr.rel (0) target = $region25
    $region24: #{tpu_custom_call.1} parent=1 // pred_region
      %86 = vsyncadd [#allocation12], 0
      %s87 = sshll.u32 %s5, 4
      %s88 = int_to_ptr.hbm [resolvable:$true] %s87
      %s89 = sshll.u32 [#allocation11], 4
      %s90 = int_to_ptr.vmem [resolvable:$true] %s89
      %95 = dma.hbm_to_vmem [thread:$0]  %s88, 2048, %s90, [#allocation12], 64, 64, 4
    $region25: #{tpu_custom_call.1} parent=1 // pred_fallthru
      _
    // Predicated region
    $region26: #{tpu_custom_call.1} parent=1 // pred_check
      _
    $region27: #{tpu_custom_call.1} parent=1 // pred_check_branch
      %97 = sbr.rel (0) target = $region29
    $region28: #{tpu_custom_call.1} parent=1 // pred_region
      _
    $region29: #{tpu_custom_call.1} parent=1 // pred_fallthru
      _
    // Predicated region
    $region30: #{tpu_custom_call.1} parent=1 // pred_check
      _
    $region31: #{tpu_custom_call.1} parent=1 // pred_check_branch
      %99 = sbr.rel (0) target = $region33
    $region32: #{tpu_custom_call.1} parent=1 // pred_region
      _
    $region33: #{tpu_custom_call.1} parent=1 // pred_fallthru
      _
    // Predicated region
    $region34: #{tpu_custom_call.1} parent=1 // pred_check
      _
    $region35: #{tpu_custom_call.1} parent=1 // pred_check_branch
      %101 = sbr.rel (0) target = $region37
    $region36: #{tpu_custom_call.1} parent=1 // pred_region
      _
    $region37: #{tpu_custom_call.1} parent=1 // pred_fallthru
      _
    // Predicated region
    $region38: #{tpu_custom_call.1} parent=1 // pred_check
      _
    $region39: #{tpu_custom_call.1} parent=1 // pred_check_branch
      %103 = sbr.rel (0) target = $region41
    $region40: #{tpu_custom_call.1} parent=1 // pred_region
      _
    $region41: #{tpu_custom_call.1} parent=1 // pred_fallthru
      _
    // Predicated region
    $region42: #{tpu_custom_call.1} parent=1 // pred_check
      _
    $region43: #{tpu_custom_call.1} parent=1 // pred_check_branch
      %105 = sbr.rel (0) target = $region45
    $region44: #{tpu_custom_call.1} parent=1 // pred_region
      %107 = dma.done [#allocation3], 64
    $region45: #{tpu_custom_call.1} parent=1 // pred_fallthru
      _
    // Predicated region
    $region46: #{tpu_custom_call.1} parent=1 // pred_check
      _
    $region47: #{tpu_custom_call.1} parent=1 // pred_check_branch
      %109 = sbr.rel (0) target = $region49
    $region48: #{tpu_custom_call.1} parent=1 // pred_region
      %111 = dma.done [#allocation6], 2048
    $region49: #{tpu_custom_call.1} parent=1 // pred_fallthru
      _
    // Predicated region
    $region50: #{tpu_custom_call.1} parent=1 // pred_check
      _
    $region51: #{tpu_custom_call.1} parent=1 // pred_check_branch
      %113 = sbr.rel (0) target = $region53
    $region52: #{tpu_custom_call.1} parent=1 // pred_region
      %115 = dma.done [#allocation6], 16384
    $region53: #{tpu_custom_call.1} parent=1 // pred_fallthru
      _
    // Predicated region
    $region54: #{tpu_custom_call.1} parent=1 // pred_check
      _
    $region55: #{tpu_custom_call.1} parent=1 // pred_check_branch
      %117 = sbr.rel (0) target = $region57
    $region56: #{tpu_custom_call.1} parent=1 // pred_region
      %119 = dma.done [#allocation9], 8192
    $region57: #{tpu_custom_call.1} parent=1 // pred_fallthru
      _
    // Predicated region
    $region58: #{tpu_custom_call.1} parent=1 // pred_check
      _
    $region59: #{tpu_custom_call.1} parent=1 // pred_check_branch
      %121 = sbr.rel (0) target = $region61
    $region60: #{tpu_custom_call.1} parent=1 // pred_region
      %123 = dma.done [#allocation9], 4096
    $region61: #{tpu_custom_call.1} parent=1 // pred_fallthru
      _
    // Predicated region
    $region62: #{tpu_custom_call.1} parent=1 // pred_check
      _
    $region63: #{tpu_custom_call.1} parent=1 // pred_check_branch
      %125 = sbr.rel (0) target = $region65
    $region64: #{tpu_custom_call.1} parent=1 // pred_region
      %127 = dma.done [#allocation12], 2048
    $region65: #{tpu_custom_call.1} parent=1 // pred_fallthru
      _
    %v129 = vld [vmem:[#allocation2] sm:$0xf]
    %v130 = vld [vmem:[#allocation5] sm:$0xff]
    %v131 = vld [vmem:[#allocation5 + $0x8] sm:$0xff]
    %v132 = vld [vmem:[#allocation5 + $0x10] sm:$0xff]
    %v133 = vld [vmem:[#allocation5 + $0x18] sm:$0xff]
    %v134 = vld [vmem:[#allocation5 + $0x20] sm:$0xff]
    %v135 = vld [vmem:[#allocation5 + $0x28] sm:$0xff]
    %v136 = vld [vmem:[#allocation5 + $0x30] sm:$0xff]
    %v137 = vld [vmem:[#allocation5 + $0x38] sm:$0xff]
    %v138 = vld [vmem:[#allocation5 + $0x40] sm:$0xff]
    %v139 = vld [vmem:[#allocation5 + $0x48] sm:$0xff]
    %v140 = vld [vmem:[#allocation5 + $0x50] sm:$0xff]
    %v141 = vld [vmem:[#allocation5 + $0x58] sm:$0xff]
    %v142 = vld [vmem:[#allocation5 + $0x60] sm:$0xff]
    %v143 = vld [vmem:[#allocation5 + $0x68] sm:$0xff]
    %v144 = vld [vmem:[#allocation5 + $0x70] sm:$0xff]
    %v145 = vld [vmem:[#allocation5 + $0x78] sm:$0xff]
    %v162 = vunpack.c.l.b16 %v130
    %v163 = vunpack.c.h.b16 %v130
    %v164 = vunpack.c.l.b16 %v131
    %v165 = vunpack.c.h.b16 %v131
    %v166 = vunpack.c.l.b16 %v132
    %v167 = vunpack.c.h.b16 %v132
    %v168 = vunpack.c.l.b16 %v133
    %v169 = vunpack.c.h.b16 %v133
    %v170 = vunpack.c.l.b16 %v134
    %v171 = vunpack.c.h.b16 %v134
    %v172 = vunpack.c.l.b16 %v135
    %v173 = vunpack.c.h.b16 %v135
    %v174 = vunpack.c.l.b16 %v136
    %v175 = vunpack.c.h.b16 %v136
    %v176 = vunpack.c.l.b16 %v137
    %v177 = vunpack.c.h.b16 %v137
    %v178 = vunpack.c.l.b16 %v138
    %v179 = vunpack.c.h.b16 %v138
    %v180 = vunpack.c.l.b16 %v139
    %v181 = vunpack.c.h.b16 %v139
    %v182 = vunpack.c.l.b16 %v140
    %v183 = vunpack.c.h.b16 %v140
    %v184 = vunpack.c.l.b16 %v141
    %v185 = vunpack.c.h.b16 %v141
    %v186 = vunpack.c.l.b16 %v142
    %v187 = vunpack.c.h.b16 %v142
    %v188 = vunpack.c.l.b16 %v143
    %v189 = vunpack.c.h.b16 %v143
    %v190 = vunpack.c.l.b16 %v144
    %v191 = vunpack.c.h.b16 %v144
    %v192 = vunpack.c.l.b16 %v145
    %v193 = vunpack.c.h.b16 %v145
    %v194 = vpack.c.b16 %v166, %v162
    %v195 = vpack.c.b16 %v167, %v163
    %v196 = vpack.c.b16 %v168, %v164
    %v197 = vpack.c.b16 %v169, %v165
    %v198 = vpack.c.b16 %v174, %v170
    %v199 = vpack.c.b16 %v175, %v171
    %v200 = vpack.c.b16 %v176, %v172
    %v201 = vpack.c.b16 %v177, %v173
    %v202 = vpack.c.b16 %v182, %v178
    %v203 = vpack.c.b16 %v183, %v179
    %v204 = vpack.c.b16 %v184, %v180
    %v205 = vpack.c.b16 %v185, %v181
    %v206 = vpack.c.b16 %v190, %v186
    %v207 = vpack.c.b16 %v191, %v187
    %v208 = vpack.c.b16 %v192, %v188
    %v209 = vpack.c.b16 %v193, %v189
    %vm226 = vcmask 523264
    %v228 = vsel %vm226, %v129, 0
    %230 = vmatpush.bf16.msra.mxu0 0
    %231 = vmatpush.bf16.msra.mxu0 0
    %232 = vmatpush.bf16.msra.mxu0 0
    %233 = vmatpush.bf16.msra.mxu0 0
    %234 = vmatpush.bf16.msra.mxu0 %v206
    %235 = vmatpush.bf16.msra.mxu0 %v202
    %236 = vmatpush.bf16.msra.mxu0 %v198
    %237 = vmatpush.bf16.msra.mxu0 %v194
    %238 = vmatmul.bf16.gmra.mxu0 %v228
    %v239 = vpop.f32.mrf.mxu0
    %v240 = vadd.f32 0.0, %v239
    %v241 = vpop.f32.mrf.mxu0
    %242 = vdwg.mxu0
    %243 = vmatpush.bf16.msra.mxu0 0
    %244 = vmatpush.bf16.msra.mxu0 0
    %245 = vmatpush.bf16.msra.mxu0 0
    %246 = vmatpush.bf16.msra.mxu0 0
    %247 = vmatpush.bf16.msra.mxu0 %v207
    %248 = vmatpush.bf16.msra.mxu0 %v203
    %249 = vmatpush.bf16.msra.mxu0 %v199
    %250 = vmatpush.bf16.msra.mxu0 %v195
    %251 = vmatmul.bf16.gmra.mxu0 %v228
    %v252 = vpop.f32.mrf.mxu0
    %v253 = vadd.f32 0.0, %v252
    %v254 = vpop.f32.mrf.mxu0
    %255 = vdwg.mxu0
    %256 = vmatpush.bf16.msra.mxu0 0
    %257 = vmatpush.bf16.msra.mxu0 0
    %258 = vmatpush.bf16.msra.mxu0 0
    %259 = vmatpush.bf16.msra.mxu0 0
    %260 = vmatpush.bf16.msra.mxu0 %v208
    %261 = vmatpush.bf16.msra.mxu0 %v204
    %262 = vmatpush.bf16.msra.mxu0 %v200
    %263 = vmatpush.bf16.msra.mxu0 %v196
    %264 = vmatmul.bf16.gmra.mxu0 %v228
    %v265 = vpop.f32.mrf.mxu0
    %v266 = vadd.f32 0.0, %v265
    %v267 = vpop.f32.mrf.mxu0
    %268 = vdwg.mxu0
    %269 = vmatpush.bf16.msra.mxu0 0
    %270 = vmatpush.bf16.msra.mxu0 0
    %271 = vmatpush.bf16.msra.mxu0 0
    %272 = vmatpush.bf16.msra.mxu0 0
    %273 = vmatpush.bf16.msra.mxu0 %v209
    %274 = vmatpush.bf16.msra.mxu0 %v205
    %275 = vmatpush.bf16.msra.mxu0 %v201
    %276 = vmatpush.bf16.msra.mxu0 %v197
    %277 = vmatmul.bf16.gmra.mxu0 %v228
    %v278 = vpop.f32.mrf.mxu0
    %v279 = vadd.f32 0.0, %v278
    %v280 = vpop.f32.mrf.mxu0
    %281 = vdwg.mxu0
    %v282 = vld [vmem:[%s9] ss:$8 sm:$0xf]
    %v283 = vpack.c.bf16 %v253, %v240
    %v284 = vpack.c.bf16 %v279, %v266
    %v286 = vperm.slane %v282, 0
    %v287 = vperm.slane %v282, 1
    %v288 = vperm.slane %v282, 2
    %v289 = vperm.slane %v282, 3
    %v294 = vpack.c.bf16 %v287, %v286
    %v295 = vpack.c.bf16 %v289, %v288
    %v298 = vunpack.c.l.b16 %v294
    %v299 = vunpack.c.h.b16 %v294
    %v300 = vunpack.c.l.b16 %v295
    %v301 = vunpack.c.h.b16 %v295
    %v302 = vpack.c.b16 %v298, %v298
    %v303 = vpack.c.b16 %v299, %v299
    %v304 = vpack.c.b16 %v300, %v300
    %v305 = vpack.c.b16 %v301, %v301
    %v307 = vpack.i.b16 %v302, %v302
    %v309 = vperm.slane %v307, 0
    %v311 = vpack.i.b16 %v303, %v303
    %v313 = vperm.slane %v311, 0
    %v315 = vpack.i.b16 %v304, %v304
    %v317 = vperm.slane %v315, 0
    %v319 = vpack.i.b16 %v305, %v305
    %v321 = vperm.slane %v319, 0
    %v322 = vunpack.c.l.bf16 %v283
    %v323 = vunpack.c.h.bf16 %v283
    %v324 = vunpack.c.l.bf16 %v284
    %v325 = vunpack.c.h.bf16 %v284
    %v326 = vunpack.c.l.bf16 %v309
    %v327 = vunpack.c.l.bf16 %v313
    %v328 = vunpack.c.l.bf16 %v317
    %v329 = vunpack.c.l.bf16 %v321
    %v330 = vadd.f32 %v322, %v326
    %v331 = vadd.f32 %v323, %v327
    %v332 = vadd.f32 %v324, %v328
    %v333 = vadd.f32 %v325, %v329
    %v334 = vpack.c.bf16 %v331, %v330
    %v335 = vpack.c.bf16 %v333, %v332
    %v336 = vunpack.c.l.bf16 %v334
    %v337 = vunpack.c.h.bf16 %v334
    %v338 = vunpack.c.l.bf16 %v335
    %v339 = vunpack.c.h.bf16 %v335
    %v340 = vmax.f32 %v336, 0.0
    %v341 = vmax.f32 %v337, 0.0
    %v342 = vmax.f32 %v338, 0.0
    %v343 = vmax.f32 %v339, 0.0
    %v344 = vpack.c.bf16 %v340, %v340
    %v345 = vpack.c.bf16 %v341, %v341
    %v346 = vpack.c.bf16 %v342, %v342
    %v347 = vpack.c.bf16 %v343, %v343
    %v348 = vld [vmem:[#allocation7] sm:$0xff]
    %v349 = vld [vmem:[#allocation7 + $0x8] sm:$0xff]
    %v350 = vld [vmem:[#allocation7 + $0x10] sm:$0xff]
    %v351 = vld [vmem:[#allocation7 + $0x18] sm:$0xff]
    %v352 = vld [vmem:[#allocation7 + $0x20] sm:$0xff]
    %v353 = vld [vmem:[#allocation7 + $0x28] sm:$0xff]
    %v354 = vld [vmem:[#allocation7 + $0x30] sm:$0xff]
    %v355 = vld [vmem:[#allocation7 + $0x38] sm:$0xff]
    %v356 = vld [vmem:[#allocation7 + $0x40] sm:$0xff]
    %v357 = vld [vmem:[#allocation7 + $0x48] sm:$0xff]
    %v358 = vld [vmem:[#allocation7 + $0x50] sm:$0xff]
    %v359 = vld [vmem:[#allocation7 + $0x58] sm:$0xff]
    %v360 = vld [vmem:[#allocation7 + $0x60] sm:$0xff]
    %v361 = vld [vmem:[#allocation7 + $0x68] sm:$0xff]
    %v362 = vld [vmem:[#allocation7 + $0x70] sm:$0xff]
    %v363 = vld [vmem:[#allocation7 + $0x78] sm:$0xff]
    %v364 = vld [vmem:[#allocation7 + $0x80] sm:$0xff]
    %v365 = vld [vmem:[#allocation7 + $0x88] sm:$0xff]
    %v366 = vld [vmem:[#allocation7 + $0x90] sm:$0xff]
    %v367 = vld [vmem:[#allocation7 + $0x98] sm:$0xff]
    %v368 = vld [vmem:[#allocation7 + $0xa0] sm:$0xff]
    %v369 = vld [vmem:[#allocation7 + $0xa8] sm:$0xff]
    %v370 = vld [vmem:[#allocation7 + $0xb0] sm:$0xff]
    %v371 = vld [vmem:[#allocation7 + $0xb8] sm:$0xff]
    %v372 = vld [vmem:[#allocation7 + $0xc0] sm:$0xff]
    %v373 = vld [vmem:[#allocation7 + $0xc8] sm:$0xff]
    %v374 = vld [vmem:[#allocation7 + $0xd0] sm:$0xff]
    %v375 = vld [vmem:[#allocation7 + $0xd8] sm:$0xff]
    %v376 = vld [vmem:[#allocation7 + $0xe0] sm:$0xff]
    %v377 = vld [vmem:[#allocation7 + $0xe8] sm:$0xff]
    %v378 = vld [vmem:[#allocation7 + $0xf0] sm:$0xff]
    %v379 = vld [vmem:[#allocation7 + $0xf8] sm:$0xff]
    %v380 = vld [vmem:[#allocation7 + $0x100] sm:$0xff]
    %v381 = vld [vmem:[#allocation7 + $0x108] sm:$0xff]
    %v382 = vld [vmem:[#allocation7 + $0x110] sm:$0xff]
    %v383 = vld [vmem:[#allocation7 + $0x118] sm:$0xff]
    %v384 = vld [vmem:[#allocation7 + $0x120] sm:$0xff]
    %v385 = vld [vmem:[#allocation7 + $0x128] sm:$0xff]
    %v386 = vld [vmem:[#allocation7 + $0x130] sm:$0xff]
    %v387 = vld [vmem:[#allocation7 + $0x138] sm:$0xff]
    %v388 = vld [vmem:[#allocation7 + $0x140] sm:$0xff]
    %v389 = vld [vmem:[#allocation7 + $0x148] sm:$0xff]
    %v390 = vld [vmem:[#allocation7 + $0x150] sm:$0xff]
    %v391 = vld [vmem:[#allocation7 + $0x158] sm:$0xff]
    %v392 = vld [vmem:[#allocation7 + $0x160] sm:$0xff]
    %v393 = vld [vmem:[#allocation7 + $0x168] sm:$0xff]
    %v394 = vld [vmem:[#allocation7 + $0x170] sm:$0xff]
    %v395 = vld [vmem:[#allocation7 + $0x178] sm:$0xff]
    %v396 = vld [vmem:[#allocation7 + $0x180] sm:$0xff]
    %v397 = vld [vmem:[#allocation7 + $0x188] sm:$0xff]
    %v398 = vld [vmem:[#allocation7 + $0x190] sm:$0xff]
    %v399 = vld [vmem:[#allocation7 + $0x198] sm:$0xff]
    %v400 = vld [vmem:[#allocation7 + $0x1a0] sm:$0xff]
    %v401 = vld [vmem:[#allocation7 + $0x1a8] sm:$0xff]
    %v402 = vld [vmem:[#allocation7 + $0x1b0] sm:$0xff]
    %v403 = vld [vmem:[#allocation7 + $0x1b8] sm:$0xff]
    %v404 = vld [vmem:[#allocation7 + $0x1c0] sm:$0xff]
    %v405 = vld [vmem:[#allocation7 + $0x1c8] sm:$0xff]
    %v406 = vld [vmem:[#allocation7 + $0x1d0] sm:$0xff]
    %v407 = vld [vmem:[#allocation7 + $0x1d8] sm:$0xff]
    %v408 = vld [vmem:[#allocation7 + $0x1e0] sm:$0xff]
    %v409 = vld [vmem:[#allocation7 + $0x1e8] sm:$0xff]
    %v410 = vld [vmem:[#allocation7 + $0x1f0] sm:$0xff]
    %v411 = vld [vmem:[#allocation7 + $0x1f8] sm:$0xff]
    %v412 = vld [vmem:[#allocation7 + $0x200] sm:$0xff]
    %v413 = vld [vmem:[#allocation7 + $0x208] sm:$0xff]
    %v414 = vld [vmem:[#allocation7 + $0x210] sm:$0xff]
    %v415 = vld [vmem:[#allocation7 + $0x218] sm:$0xff]
    %v416 = vld [vmem:[#allocation7 + $0x220] sm:$0xff]
    %v417 = vld [vmem:[#allocation7 + $0x228] sm:$0xff]
    %v418 = vld [vmem:[#allocation7 + $0x230] sm:$0xff]
    %v419 = vld [vmem:[#allocation7 + $0x238] sm:$0xff]
    %v420 = vld [vmem:[#allocation7 + $0x240] sm:$0xff]
    %v421 = vld [vmem:[#allocation7 + $0x248] sm:$0xff]
    %v422 = vld [vmem:[#allocation7 + $0x250] sm:$0xff]
    %v423 = vld [vmem:[#allocation7 + $0x258] sm:$0xff]
    %v424 = vld [vmem:[#allocation7 + $0x260] sm:$0xff]
    %v425 = vld [vmem:[#allocation7 + $0x268] sm:$0xff]
    %v426 = vld [vmem:[#allocation7 + $0x270] sm:$0xff]
    %v427 = vld [vmem:[#allocation7 + $0x278] sm:$0xff]
    %v428 = vld [vmem:[#allocation7 + $0x280] sm:$0xff]
    %v429 = vld [vmem:[#allocation7 + $0x288] sm:$0xff]
    %v430 = vld [vmem:[#allocation7 + $0x290] sm:$0xff]
    %v431 = vld [vmem:[#allocation7 + $0x298] sm:$0xff]
    %v432 = vld [vmem:[#allocation7 + $0x2a0] sm:$0xff]
    %v433 = vld [vmem:[#allocation7 + $0x2a8] sm:$0xff]
    %v434 = vld [vmem:[#allocation7 + $0x2b0] sm:$0xff]
    %v435 = vld [vmem:[#allocation7 + $0x2b8] sm:$0xff]
    %v436 = vld [vmem:[#allocation7 + $0x2c0] sm:$0xff]
    %v437 = vld [vmem:[#allocation7 + $0x2c8] sm:$0xff]
    %v438 = vld [vmem:[#allocation7 + $0x2d0] sm:$0xff]
    %v439 = vld [vmem:[#allocation7 + $0x2d8] sm:$0xff]
    %v440 = vld [vmem:[#allocation7 + $0x2e0] sm:$0xff]
    %v441 = vld [vmem:[#allocation7 + $0x2e8] sm:$0xff]
    %v442 = vld [vmem:[#allocation7 + $0x2f0] sm:$0xff]
    %v443 = vld [vmem:[#allocation7 + $0x2f8] sm:$0xff]
    %v444 = vld [vmem:[#allocation7 + $0x300] sm:$0xff]
    %v445 = vld [vmem:[#allocation7 + $0x308] sm:$0xff]
    %v446 = vld [vmem:[#allocation7 + $0x310] sm:$0xff]
    %v447 = vld [vmem:[#allocation7 + $0x318] sm:$0xff]
    %v448 = vld [vmem:[#allocation7 + $0x320] sm:$0xff]
    %v449 = vld [vmem:[#allocation7 + $0x328] sm:$0xff]
    %v450 = vld [vmem:[#allocation7 + $0x330] sm:$0xff]
    %v451 = vld [vmem:[#allocation7 + $0x338] sm:$0xff]
    %v452 = vld [vmem:[#allocation7 + $0x340] sm:$0xff]
    %v453 = vld [vmem:[#allocation7 + $0x348] sm:$0xff]
    %v454 = vld [vmem:[#allocation7 + $0x350] sm:$0xff]
    %v455 = vld [vmem:[#allocation7 + $0x358] sm:$0xff]
    %v456 = vld [vmem:[#allocation7 + $0x360] sm:$0xff]
    %v457 = vld [vmem:[#allocation7 + $0x368] sm:$0xff]
    %v458 = vld [vmem:[#allocation7 + $0x370] sm:$0xff]
    %v459 = vld [vmem:[#allocation7 + $0x378] sm:$0xff]
    %v460 = vld [vmem:[#allocation7 + $0x380] sm:$0xff]
    %v461 = vld [vmem:[#allocation7 + $0x388] sm:$0xff]
    %v462 = vld [vmem:[#allocation7 + $0x390] sm:$0xff]
    %v463 = vld [vmem:[#allocation7 + $0x398] sm:$0xff]
    %v464 = vld [vmem:[#allocation7 + $0x3a0] sm:$0xff]
    %v465 = vld [vmem:[#allocation7 + $0x3a8] sm:$0xff]
    %v466 = vld [vmem:[#allocation7 + $0x3b0] sm:$0xff]
    %v467 = vld [vmem:[#allocation7 + $0x3b8] sm:$0xff]
    %v468 = vld [vmem:[#allocation7 + $0x3c0] sm:$0xff]
    %v469 = vld [vmem:[#allocation7 + $0x3c8] sm:$0xff]
    %v470 = vld [vmem:[#allocation7 + $0x3d0] sm:$0xff]
    %v471 = vld [vmem:[#allocation7 + $0x3d8] sm:$0xff]
    %v472 = vld [vmem:[#allocation7 + $0x3e0] sm:$0xff]
    %v473 = vld [vmem:[#allocation7 + $0x3e8] sm:$0xff]
    %v474 = vld [vmem:[#allocation7 + $0x3f0] sm:$0xff]
    %v475 = vld [vmem:[#allocation7 + $0x3f8] sm:$0xff]
    %v604 = vunpack.c.l.b16 %v348
    %v605 = vunpack.c.h.b16 %v348
    %v606 = vunpack.c.l.b16 %v349
    %v607 = vunpack.c.h.b16 %v349
    %v608 = vunpack.c.l.b16 %v350
    %v609 = vunpack.c.h.b16 %v350
    %v610 = vunpack.c.l.b16 %v351
    %v611 = vunpack.c.h.b16 %v351
    %v612 = vunpack.c.l.b16 %v352
    %v613 = vunpack.c.h.b16 %v352
    %v614 = vunpack.c.l.b16 %v353
    %v615 = vunpack.c.h.b16 %v353
    %v616 = vunpack.c.l.b16 %v354
    %v617 = vunpack.c.h.b16 %v354
    %v618 = vunpack.c.l.b16 %v355
    %v619 = vunpack.c.h.b16 %v355
    %v620 = vunpack.c.l.b16 %v356
    %v621 = vunpack.c.h.b16 %v356
    %v622 = vunpack.c.l.b16 %v357
    %v623 = vunpack.c.h.b16 %v357
    %v624 = vunpack.c.l.b16 %v358
    %v625 = vunpack.c.h.b16 %v358
    %v626 = vunpack.c.l.b16 %v359
    %v627 = vunpack.c.h.b16 %v359
    %v628 = vunpack.c.l.b16 %v360
    %v629 = vunpack.c.h.b16 %v360
    %v630 = vunpack.c.l.b16 %v361
    %v631 = vunpack.c.h.b16 %v361
    %v632 = vunpack.c.l.b16 %v362
    %v633 = vunpack.c.h.b16 %v362
    %v634 = vunpack.c.l.b16 %v363
    %v635 = vunpack.c.h.b16 %v363
    %v636 = vunpack.c.l.b16 %v364
    %v637 = vunpack.c.h.b16 %v364
    %v638 = vunpack.c.l.b16 %v365
    %v639 = vunpack.c.h.b16 %v365
    %v640 = vunpack.c.l.b16 %v366
    %v641 = vunpack.c.h.b16 %v366
    %v642 = vunpack.c.l.b16 %v367
    %v643 = vunpack.c.h.b16 %v367
    %v644 = vunpack.c.l.b16 %v368
    %v645 = vunpack.c.h.b16 %v368
    %v646 = vunpack.c.l.b16 %v369
    %v647 = vunpack.c.h.b16 %v369
    %v648 = vunpack.c.l.b16 %v370
    %v649 = vunpack.c.h.b16 %v370
    %v650 = vunpack.c.l.b16 %v371
    %v651 = vunpack.c.h.b16 %v371
    %v652 = vunpack.c.l.b16 %v372
    %v653 = vunpack.c.h.b16 %v372
    %v654 = vunpack.c.l.b16 %v373
    %v655 = vunpack.c.h.b16 %v373
    %v656 = vunpack.c.l.b16 %v374
    %v657 = vunpack.c.h.b16 %v374
    %v658 = vunpack.c.l.b16 %v375
    %v659 = vunpack.c.h.b16 %v375
    %v660 = vunpack.c.l.b16 %v376
    %v661 = vunpack.c.h.b16 %v376
    %v662 = vunpack.c.l.b16 %v377
    %v663 = vunpack.c.h.b16 %v377
    %v664 = vunpack.c.l.b16 %v378
    %v665 = vunpack.c.h.b16 %v378
    %v666 = vunpack.c.l.b16 %v379
    %v667 = vunpack.c.h.b16 %v379
    %v668 = vunpack.c.l.b16 %v380
    %v669 = vunpack.c.h.b16 %v380
    %v670 = vunpack.c.l.b16 %v381
    %v671 = vunpack.c.h.b16 %v381
    %v672 = vunpack.c.l.b16 %v382
    %v673 = vunpack.c.h.b16 %v382
    %v674 = vunpack.c.l.b16 %v383
    %v675 = vunpack.c.h.b16 %v383
    %v676 = vunpack.c.l.b16 %v384
    %v677 = vunpack.c.h.b16 %v384
    %v678 = vunpack.c.l.b16 %v385
    %v679 = vunpack.c.h.b16 %v385
    %v680 = vunpack.c.l.b16 %v386
    %v681 = vunpack.c.h.b16 %v386
    %v682 = vunpack.c.l.b16 %v387
    %v683 = vunpack.c.h.b16 %v387
    %v684 = vunpack.c.l.b16 %v388
    %v685 = vunpack.c.h.b16 %v388
    %v686 = vunpack.c.l.b16 %v389
    %v687 = vunpack.c.h.b16 %v389
    %v688 = vunpack.c.l.b16 %v390
    %v689 = vunpack.c.h.b16 %v390
    %v690 = vunpack.c.l.b16 %v391
    %v691 = vunpack.c.h.b16 %v391
    %v692 = vunpack.c.l.b16 %v392
    %v693 = vunpack.c.h.b16 %v392
    %v694 = vunpack.c.l.b16 %v393
    %v695 = vunpack.c.h.b16 %v393
    %v696 = vunpack.c.l.b16 %v394
    %v697 = vunpack.c.h.b16 %v394
    %v698 = vunpack.c.l.b16 %v395
    %v699 = vunpack.c.h.b16 %v395
    %v700 = vunpack.c.l.b16 %v396
    %v701 = vunpack.c.h.b16 %v396
    %v702 = vunpack.c.l.b16 %v397
    %v703 = vunpack.c.h.b16 %v397
    %v704 = vunpack.c.l.b16 %v398
    %v705 = vunpack.c.h.b16 %v398
    %v706 = vunpack.c.l.b16 %v399
    %v707 = vunpack.c.h.b16 %v399
    %v708 = vunpack.c.l.b16 %v400
    %v709 = vunpack.c.h.b16 %v400
    %v710 = vunpack.c.l.b16 %v401
    %v711 = vunpack.c.h.b16 %v401
    %v712 = vunpack.c.l.b16 %v402
    %v713 = vunpack.c.h.b16 %v402
    %v714 = vunpack.c.l.b16 %v403
    %v715 = vunpack.c.h.b16 %v403
    %v716 = vunpack.c.l.b16 %v404
    %v717 = vunpack.c.h.b16 %v404
    %v718 = vunpack.c.l.b16 %v405
    %v719 = vunpack.c.h.b16 %v405
    %v720 = vunpack.c.l.b16 %v406
    %v721 = vunpack.c.h.b16 %v406
    %v722 = vunpack.c.l.b16 %v407
    %v723 = vunpack.c.h.b16 %v407
    %v724 = vunpack.c.l.b16 %v408
    %v725 = vunpack.c.h.b16 %v408
    %v726 = vunpack.c.l.b16 %v409
    %v727 = vunpack.c.h.b16 %v409
    %v728 = vunpack.c.l.b16 %v410
    %v729 = vunpack.c.h.b16 %v410
    %v730 = vunpack.c.l.b16 %v411
    %v731 = vunpack.c.h.b16 %v411
    %v732 = vunpack.c.l.b16 %v412
    %v733 = vunpack.c.h.b16 %v412
    %v734 = vunpack.c.l.b16 %v413
    %v735 = vunpack.c.h.b16 %v413
    %v736 = vunpack.c.l.b16 %v414
    %v737 = vunpack.c.h.b16 %v414
    %v738 = vunpack.c.l.b16 %v415
    %v739 = vunpack.c.h.b16 %v415
    %v740 = vunpack.c.l.b16 %v416
    %v741 = vunpack.c.h.b16 %v416
    %v742 = vunpack.c.l.b16 %v417
    %v743 = vunpack.c.h.b16 %v417
    %v744 = vunpack.c.l.b16 %v418
    %v745 = vunpack.c.h.b16 %v418
    %v746 = vunpack.c.l.b16 %v419
    %v747 = vunpack.c.h.b16 %v419
    %v748 = vunpack.c.l.b16 %v420
    %v749 = vunpack.c.h.b16 %v420
    %v750 = vunpack.c.l.b16 %v421
    %v751 = vunpack.c.h.b16 %v421
    %v752 = vunpack.c.l.b16 %v422
    %v753 = vunpack.c.h.b16 %v422
    %v754 = vunpack.c.l.b16 %v423
    %v755 = vunpack.c.h.b16 %v423
    %v756 = vunpack.c.l.b16 %v424
    %v757 = vunpack.c.h.b16 %v424
    %v758 = vunpack.c.l.b16 %v425
    %v759 = vunpack.c.h.b16 %v425
    %v760 = vunpack.c.l.b16 %v426
    %v761 = vunpack.c.h.b16 %v426
    %v762 = vunpack.c.l.b16 %v427
    %v763 = vunpack.c.h.b16 %v427
    %v764 = vunpack.c.l.b16 %v428
    %v765 = vunpack.c.h.b16 %v428
    %v766 = vunpack.c.l.b16 %v429
    %v767 = vunpack.c.h.b16 %v429
    %v768 = vunpack.c.l.b16 %v430
    %v769 = vunpack.c.h.b16 %v430
    %v770 = vunpack.c.l.b16 %v431
    %v771 = vunpack.c.h.b16 %v431
    %v772 = vunpack.c.l.b16 %v432
    %v773 = vunpack.c.h.b16 %v432
    %v774 = vunpack.c.l.b16 %v433
    %v775 = vunpack.c.h.b16 %v433
    %v776 = vunpack.c.l.b16 %v434
    %v777 = vunpack.c.h.b16 %v434
    %v778 = vunpack.c.l.b16 %v435
    %v779 = vunpack.c.h.b16 %v435
    %v780 = vunpack.c.l.b16 %v436
    %v781 = vunpack.c.h.b16 %v436
    %v782 = vunpack.c.l.b16 %v437
    %v783 = vunpack.c.h.b16 %v437
    %v784 = vunpack.c.l.b16 %v438
    %v785 = vunpack.c.h.b16 %v438
    %v786 = vunpack.c.l.b16 %v439
    %v787 = vunpack.c.h.b16 %v439
    %v788 = vunpack.c.l.b16 %v440
    %v789 = vunpack.c.h.b16 %v440
    %v790 = vunpack.c.l.b16 %v441
    %v791 = vunpack.c.h.b16 %v441
    %v792 = vunpack.c.l.b16 %v442
    %v793 = vunpack.c.h.b16 %v442
    %v794 = vunpack.c.l.b16 %v443
    %v795 = vunpack.c.h.b16 %v443
    %v796 = vunpack.c.l.b16 %v444
    %v797 = vunpack.c.h.b16 %v444
    %v798 = vunpack.c.l.b16 %v445
    %v799 = vunpack.c.h.b16 %v445
    %v800 = vunpack.c.l.b16 %v446
    %v801 = vunpack.c.h.b16 %v446
    %v802 = vunpack.c.l.b16 %v447
    %v803 = vunpack.c.h.b16 %v447
    %v804 = vunpack.c.l.b16 %v448
    %v805 = vunpack.c.h.b16 %v448
    %v806 = vunpack.c.l.b16 %v449
    %v807 = vunpack.c.h.b16 %v449
    %v808 = vunpack.c.l.b16 %v450
    %v809 = vunpack.c.h.b16 %v450
    %v810 = vunpack.c.l.b16 %v451
    %v811 = vunpack.c.h.b16 %v451
    %v812 = vunpack.c.l.b16 %v452
    %v813 = vunpack.c.h.b16 %v452
    %v814 = vunpack.c.l.b16 %v453
    %v815 = vunpack.c.h.b16 %v453
    %v816 = vunpack.c.l.b16 %v454
    %v817 = vunpack.c.h.b16 %v454
    %v818 = vunpack.c.l.b16 %v455
    %v819 = vunpack.c.h.b16 %v455
    %v820 = vunpack.c.l.b16 %v456
    %v821 = vunpack.c.h.b16 %v456
    %v822 = vunpack.c.l.b16 %v457
    %v823 = vunpack.c.h.b16 %v457
    %v824 = vunpack.c.l.b16 %v458
    %v825 = vunpack.c.h.b16 %v458
    %v826 = vunpack.c.l.b16 %v459
    %v827 = vunpack.c.h.b16 %v459
    %v828 = vunpack.c.l.b16 %v460
    %v829 = vunpack.c.h.b16 %v460
    %v830 = vunpack.c.l.b16 %v461
    %v831 = vunpack.c.h.b16 %v461
    %v832 = vunpack.c.l.b16 %v462
    %v833 = vunpack.c.h.b16 %v462
    %v834 = vunpack.c.l.b16 %v463
    %v835 = vunpack.c.h.b16 %v463
    %v836 = vunpack.c.l.b16 %v464
    %v837 = vunpack.c.h.b16 %v464
    %v838 = vunpack.c.l.b16 %v465
    %v839 = vunpack.c.h.b16 %v465
    %v840 = vunpack.c.l.b16 %v466
    %v841 = vunpack.c.h.b16 %v466
    %v842 = vunpack.c.l.b16 %v467
    %v843 = vunpack.c.h.b16 %v467
    %v844 = vunpack.c.l.b16 %v468
    %v845 = vunpack.c.h.b16 %v468
    %v846 = vunpack.c.l.b16 %v469
    %v847 = vunpack.c.h.b16 %v469
    %v848 = vunpack.c.l.b16 %v470
    %v849 = vunpack.c.h.b16 %v470
    %v850 = vunpack.c.l.b16 %v471
    %v851 = vunpack.c.h.b16 %v471
    %v852 = vunpack.c.l.b16 %v472
    %v853 = vunpack.c.h.b16 %v472
    %v854 = vunpack.c.l.b16 %v473
    %v855 = vunpack.c.h.b16 %v473
    %v856 = vunpack.c.l.b16 %v474
    %v857 = vunpack.c.h.b16 %v474
    %v858 = vunpack.c.l.b16 %v475
    %v859 = vunpack.c.h.b16 %v475
    %v860 = vpack.c.b16 %v608, %v604
    %v861 = vpack.c.b16 %v609, %v605
    %v862 = vpack.c.b16 %v610, %v606
    %v863 = vpack.c.b16 %v611, %v607
    %v864 = vpack.c.b16 %v616, %v612
    %v865 = vpack.c.b16 %v617, %v613
    %v866 = vpack.c.b16 %v618, %v614
    %v867 = vpack.c.b16 %v619, %v615
    %v868 = vpack.c.b16 %v624, %v620
    %v869 = vpack.c.b16 %v625, %v621
    %v870 = vpack.c.b16 %v626, %v622
    %v871 = vpack.c.b16 %v627, %v623
    %v872 = vpack.c.b16 %v632, %v628
    %v873 = vpack.c.b16 %v633, %v629
    %v874 = vpack.c.b16 %v634, %v630
    %v875 = vpack.c.b16 %v635, %v631
    %v876 = vpack.c.b16 %v640, %v636
    %v877 = vpack.c.b16 %v641, %v637
    %v878 = vpack.c.b16 %v642, %v638
    %v879 = vpack.c.b16 %v643, %v639
    %v880 = vpack.c.b16 %v648, %v644
    %v881 = vpack.c.b16 %v649, %v645
    %v882 = vpack.c.b16 %v650, %v646
    %v883 = vpack.c.b16 %v651, %v647
    %v884 = vpack.c.b16 %v656, %v652
    %v885 = vpack.c.b16 %v657, %v653
    %v886 = vpack.c.b16 %v658, %v654
    %v887 = vpack.c.b16 %v659, %v655
    %v888 = vpack.c.b16 %v664, %v660
    %v889 = vpack.c.b16 %v665, %v661
    %v890 = vpack.c.b16 %v666, %v662
    %v891 = vpack.c.b16 %v667, %v663
    %v892 = vpack.c.b16 %v672, %v668
    %v893 = vpack.c.b16 %v673, %v669
    %v894 = vpack.c.b16 %v674, %v670
    %v895 = vpack.c.b16 %v675, %v671
    %v896 = vpack.c.b16 %v680, %v676
    %v897 = vpack.c.b16 %v681, %v677
    %v898 = vpack.c.b16 %v682, %v678
    %v899 = vpack.c.b16 %v683, %v679
    %v900 = vpack.c.b16 %v688, %v684
    %v901 = vpack.c.b16 %v689, %v685
    %v902 = vpack.c.b16 %v690, %v686
    %v903 = vpack.c.b16 %v691, %v687
    %v904 = vpack.c.b16 %v696, %v692
    %v905 = vpack.c.b16 %v697, %v693
    %v906 = vpack.c.b16 %v698, %v694
    %v907 = vpack.c.b16 %v699, %v695
    %v908 = vpack.c.b16 %v704, %v700
    %v909 = vpack.c.b16 %v705, %v701
    %v910 = vpack.c.b16 %v706, %v702
    %v911 = vpack.c.b16 %v707, %v703
    %v912 = vpack.c.b16 %v712, %v708
    %v913 = vpack.c.b16 %v713, %v709
    %v914 = vpack.c.b16 %v714, %v710
    %v915 = vpack.c.b16 %v715, %v711
    %v916 = vpack.c.b16 %v720, %v716
    %v917 = vpack.c.b16 %v721, %v717
    %v918 = vpack.c.b16 %v722, %v718
    %v919 = vpack.c.b16 %v723, %v719
    %v920 = vpack.c.b16 %v728, %v724
    %v921 = vpack.c.b16 %v729, %v725
    %v922 = vpack.c.b16 %v730, %v726
    %v923 = vpack.c.b16 %v731, %v727
    %v924 = vpack.c.b16 %v736, %v732
    %v925 = vpack.c.b16 %v737, %v733
    %v926 = vpack.c.b16 %v738, %v734
    %v927 = vpack.c.b16 %v739, %v735
    %v928 = vpack.c.b16 %v744, %v740
    %v929 = vpack.c.b16 %v745, %v741
    %v930 = vpack.c.b16 %v746, %v742
    %v931 = vpack.c.b16 %v747, %v743
    %v932 = vpack.c.b16 %v752, %v748
    %v933 = vpack.c.b16 %v753, %v749
    %v934 = vpack.c.b16 %v754, %v750
    %v935 = vpack.c.b16 %v755, %v751
    %v936 = vpack.c.b16 %v760, %v756
    %v937 = vpack.c.b16 %v761, %v757
    %v938 = vpack.c.b16 %v762, %v758
    %v939 = vpack.c.b16 %v763, %v759
    %v940 = vpack.c.b16 %v768, %v764
    %v941 = vpack.c.b16 %v769, %v765
    %v942 = vpack.c.b16 %v770, %v766
    %v943 = vpack.c.b16 %v771, %v767
    %v944 = vpack.c.b16 %v776, %v772
    %v945 = vpack.c.b16 %v777, %v773
    %v946 = vpack.c.b16 %v778, %v774
    %v947 = vpack.c.b16 %v779, %v775
    %v948 = vpack.c.b16 %v784, %v780
    %v949 = vpack.c.b16 %v785, %v781
    %v950 = vpack.c.b16 %v786, %v782
    %v951 = vpack.c.b16 %v787, %v783
    %v952 = vpack.c.b16 %v792, %v788
    %v953 = vpack.c.b16 %v793, %v789
    %v954 = vpack.c.b16 %v794, %v790
    %v955 = vpack.c.b16 %v795, %v791
    %v956 = vpack.c.b16 %v800, %v796
    %v957 = vpack.c.b16 %v801, %v797
    %v958 = vpack.c.b16 %v802, %v798
    %v959 = vpack.c.b16 %v803, %v799
    %v960 = vpack.c.b16 %v808, %v804
    %v961 = vpack.c.b16 %v809, %v805
    %v962 = vpack.c.b16 %v810, %v806
    %v963 = vpack.c.b16 %v811, %v807
    %v964 = vpack.c.b16 %v816, %v812
    %v965 = vpack.c.b16 %v817, %v813
    %v966 = vpack.c.b16 %v818, %v814
    %v967 = vpack.c.b16 %v819, %v815
    %v968 = vpack.c.b16 %v824, %v820
    %v969 = vpack.c.b16 %v825, %v821
    %v970 = vpack.c.b16 %v826, %v822
    %v971 = vpack.c.b16 %v827, %v823
    %v972 = vpack.c.b16 %v832, %v828
    %v973 = vpack.c.b16 %v833, %v829
    %v974 = vpack.c.b16 %v834, %v830
    %v975 = vpack.c.b16 %v835, %v831
    %v976 = vpack.c.b16 %v840, %v836
    %v977 = vpack.c.b16 %v841, %v837
    %v978 = vpack.c.b16 %v842, %v838
    %v979 = vpack.c.b16 %v843, %v839
    %v980 = vpack.c.b16 %v848, %v844
    %v981 = vpack.c.b16 %v849, %v845
    %v982 = vpack.c.b16 %v850, %v846
    %v983 = vpack.c.b16 %v851, %v847
    %v984 = vpack.c.b16 %v856, %v852
    %v985 = vpack.c.b16 %v857, %v853
    %v986 = vpack.c.b16 %v858, %v854
    %v987 = vpack.c.b16 %v859, %v855
    %1116 = vmatpush.bf16.msra.mxu0 %v888
    %1117 = vmatpush.bf16.msra.mxu0 %v884
    %1118 = vmatpush.bf16.msra.mxu0 %v880
    %1119 = vmatpush.bf16.msra.mxu0 %v876
    %1120 = vmatpush.bf16.msra.mxu0 %v872
    %1121 = vmatpush.bf16.msra.mxu0 %v868
    %1122 = vmatpush.bf16.msra.mxu0 %v864
    %1123 = vmatpush.bf16.msra.mxu0 %v860
    %1124 = vmatmul.bf16.gmra.mxu0 %v344
    %v1125 = vpop.f32.mrf.mxu0
    %v1126 = vadd.f32 0.0, %v1125
    %v1127 = vpop.f32.mrf.mxu0
    %1128 = vdwg.mxu0
    %1129 = vmatpush.bf16.msra.mxu0 %v920
    %1130 = vmatpush.bf16.msra.mxu0 %v916
    %1131 = vmatpush.bf16.msra.mxu0 %v912
    %1132 = vmatpush.bf16.msra.mxu0 %v908
    %1133 = vmatpush.bf16.msra.mxu0 %v904
    %1134 = vmatpush.bf16.msra.mxu0 %v900
    %1135 = vmatpush.bf16.msra.mxu0 %v896
    %1136 = vmatpush.bf16.msra.mxu0 %v892
    %1137 = vmatmul.bf16.gmra.mxu0 %v345
    %v1138 = vpop.f32.mrf.mxu0
    %v1139 = vadd.f32 %v1126, %v1138
    %v1140 = vpop.f32.mrf.mxu0
    %1141 = vdwg.mxu0
    %1142 = vmatpush.bf16.msra.mxu0 %v952
    %1143 = vmatpush.bf16.msra.mxu0 %v948
    %1144 = vmatpush.bf16.msra.mxu0 %v944
    %1145 = vmatpush.bf16.msra.mxu0 %v940
    %1146 = vmatpush.bf16.msra.mxu0 %v936
    %1147 = vmatpush.bf16.msra.mxu0 %v932
    %1148 = vmatpush.bf16.msra.mxu0 %v928
    %1149 = vmatpush.bf16.msra.mxu0 %v924
    %1150 = vmatmul.bf16.gmra.mxu0 %v346
    %v1151 = vpop.f32.mrf.mxu0
    %v1152 = vadd.f32 %v1139, %v1151
    %v1153 = vpop.f32.mrf.mxu0
    %1154 = vdwg.mxu0
    %1155 = vmatpush.bf16.msra.mxu0 %v984
    %1156 = vmatpush.bf16.msra.mxu0 %v980
    %1157 = vmatpush.bf16.msra.mxu0 %v976
    %1158 = vmatpush.bf16.msra.mxu0 %v972
    %1159 = vmatpush.bf16.msra.mxu0 %v968
    %1160 = vmatpush.bf16.msra.mxu0 %v964
    %1161 = vmatpush.bf16.msra.mxu0 %v960
    %1162 = vmatpush.bf16.msra.mxu0 %v956
    %1163 = vmatmul.bf16.gmra.mxu0 %v347
    %v1164 = vpop.f32.mrf.mxu0
    %v1165 = vadd.f32 %v1152, %v1164
    %v1166 = vpop.f32.mrf.mxu0
    %1167 = vdwg.mxu0
    %1168 = vmatpush.bf16.msra.mxu0 %v889
    %1169 = vmatpush.bf16.msra.mxu0 %v885
    %1170 = vmatpush.bf16.msra.mxu0 %v881
    %1171 = vmatpush.bf16.msra.mxu0 %v877
    %1172 = vmatpush.bf16.msra.mxu0 %v873
    %1173 = vmatpush.bf16.msra.mxu0 %v869
    %1174 = vmatpush.bf16.msra.mxu0 %v865
    %1175 = vmatpush.bf16.msra.mxu0 %v861
    %1176 = vmatmul.bf16.gmra.mxu0 %v344
    %v1177 = vpop.f32.mrf.mxu0
    %v1178 = vadd.f32 0.0, %v1177
    %v1179 = vpop.f32.mrf.mxu0
    %1180 = vdwg.mxu0
    %1181 = vmatpush.bf16.msra.mxu0 %v921
    %1182 = vmatpush.bf16.msra.mxu0 %v917
    %1183 = vmatpush.bf16.msra.mxu0 %v913
    %1184 = vmatpush.bf16.msra.mxu0 %v909
    %1185 = vmatpush.bf16.msra.mxu0 %v905
    %1186 = vmatpush.bf16.msra.mxu0 %v901
    %1187 = vmatpush.bf16.msra.mxu0 %v897
    %1188 = vmatpush.bf16.msra.mxu0 %v893
    %1189 = vmatmul.bf16.gmra.mxu0 %v345
    %v1190 = vpop.f32.mrf.mxu0
    %v1191 = vadd.f32 %v1178, %v1190
    %v1192 = vpop.f32.mrf.mxu0
    %1193 = vdwg.mxu0
    %1194 = vmatpush.bf16.msra.mxu0 %v953
    %1195 = vmatpush.bf16.msra.mxu0 %v949
    %1196 = vmatpush.bf16.msra.mxu0 %v945
    %1197 = vmatpush.bf16.msra.mxu0 %v941
    %1198 = vmatpush.bf16.msra.mxu0 %v937
    %1199 = vmatpush.bf16.msra.mxu0 %v933
    %1200 = vmatpush.bf16.msra.mxu0 %v929
    %1201 = vmatpush.bf16.msra.mxu0 %v925
    %1202 = vmatmul.bf16.gmra.mxu0 %v346
    %v1203 = vpop.f32.mrf.mxu0
    %v1204 = vadd.f32 %v1191, %v1203
    %v1205 = vpop.f32.mrf.mxu0
    %1206 = vdwg.mxu0
    %1207 = vmatpush.bf16.msra.mxu0 %v985
    %1208 = vmatpush.bf16.msra.mxu0 %v981
    %1209 = vmatpush.bf16.msra.mxu0 %v977
    %1210 = vmatpush.bf16.msra.mxu0 %v973
    %1211 = vmatpush.bf16.msra.mxu0 %v969
    %1212 = vmatpush.bf16.msra.mxu0 %v965
    %1213 = vmatpush.bf16.msra.mxu0 %v961
    %1214 = vmatpush.bf16.msra.mxu0 %v957
    %1215 = vmatmul.bf16.gmra.mxu0 %v347
    %v1216 = vpop.f32.mrf.mxu0
    %v1217 = vadd.f32 %v1204, %v1216
    %v1218 = vpop.f32.mrf.mxu0
    %1219 = vdwg.mxu0
    %1220 = vmatpush.bf16.msra.mxu0 %v890
    %1221 = vmatpush.bf16.msra.mxu0 %v886
    %1222 = vmatpush.bf16.msra.mxu0 %v882
    %1223 = vmatpush.bf16.msra.mxu0 %v878
    %1224 = vmatpush.bf16.msra.mxu0 %v874
    %1225 = vmatpush.bf16.msra.mxu0 %v870
    %1226 = vmatpush.bf16.msra.mxu0 %v866
    %1227 = vmatpush.bf16.msra.mxu0 %v862
    %1228 = vmatmul.bf16.gmra.mxu0 %v344
    %v1229 = vpop.f32.mrf.mxu0
    %v1230 = vadd.f32 0.0, %v1229
    %v1231 = vpop.f32.mrf.mxu0
    %1232 = vdwg.mxu0
    %1233 = vmatpush.bf16.msra.mxu0 %v922
    %1234 = vmatpush.bf16.msra.mxu0 %v918
    %1235 = vmatpush.bf16.msra.mxu0 %v914
    %1236 = vmatpush.bf16.msra.mxu0 %v910
    %1237 = vmatpush.bf16.msra.mxu0 %v906
    %1238 = vmatpush.bf16.msra.mxu0 %v902
    %1239 = vmatpush.bf16.msra.mxu0 %v898
    %1240 = vmatpush.bf16.msra.mxu0 %v894
    %1241 = vmatmul.bf16.gmra.mxu0 %v345
    %v1242 = vpop.f32.mrf.mxu0
    %v1243 = vadd.f32 %v1230, %v1242
    %v1244 = vpop.f32.mrf.mxu0
    %1245 = vdwg.mxu0
    %1246 = vmatpush.bf16.msra.mxu0 %v954
    %1247 = vmatpush.bf16.msra.mxu0 %v950
    %1248 = vmatpush.bf16.msra.mxu0 %v946
    %1249 = vmatpush.bf16.msra.mxu0 %v942
    %1250 = vmatpush.bf16.msra.mxu0 %v938
    %1251 = vmatpush.bf16.msra.mxu0 %v934
    %1252 = vmatpush.bf16.msra.mxu0 %v930
    %1253 = vmatpush.bf16.msra.mxu0 %v926
    %1254 = vmatmul.bf16.gmra.mxu0 %v346
    %v1255 = vpop.f32.mrf.mxu0
    %v1256 = vadd.f32 %v1243, %v1255
    %v1257 = vpop.f32.mrf.mxu0
    %1258 = vdwg.mxu0
    %1259 = vmatpush.bf16.msra.mxu0 %v986
    %1260 = vmatpush.bf16.msra.mxu0 %v982
    %1261 = vmatpush.bf16.msra.mxu0 %v978
    %1262 = vmatpush.bf16.msra.mxu0 %v974
    %1263 = vmatpush.bf16.msra.mxu0 %v970
    %1264 = vmatpush.bf16.msra.mxu0 %v966
    %1265 = vmatpush.bf16.msra.mxu0 %v962
    %1266 = vmatpush.bf16.msra.mxu0 %v958
    %1267 = vmatmul.bf16.gmra.mxu0 %v347
    %v1268 = vpop.f32.mrf.mxu0
    %v1269 = vadd.f32 %v1256, %v1268
    %v1270 = vpop.f32.mrf.mxu0
    %1271 = vdwg.mxu0
    %1272 = vmatpush.bf16.msra.mxu0 %v891
    %1273 = vmatpush.bf16.msra.mxu0 %v887
    %1274 = vmatpush.bf16.msra.mxu0 %v883
    %1275 = vmatpush.bf16.msra.mxu0 %v879
    %1276 = vmatpush.bf16.msra.mxu0 %v875
    %1277 = vmatpush.bf16.msra.mxu0 %v871
    %1278 = vmatpush.bf16.msra.mxu0 %v867
    %1279 = vmatpush.bf16.msra.mxu0 %v863
    %1280 = vmatmul.bf16.gmra.mxu0 %v344
    %v1281 = vpop.f32.mrf.mxu0
    %v1282 = vadd.f32 0.0, %v1281
    %v1283 = vpop.f32.mrf.mxu0
    %1284 = vdwg.mxu0
    %1285 = vmatpush.bf16.msra.mxu0 %v923
    %1286 = vmatpush.bf16.msra.mxu0 %v919
    %1287 = vmatpush.bf16.msra.mxu0 %v915
    %1288 = vmatpush.bf16.msra.mxu0 %v911
    %1289 = vmatpush.bf16.msra.mxu0 %v907
    %1290 = vmatpush.bf16.msra.mxu0 %v903
    %1291 = vmatpush.bf16.msra.mxu0 %v899
    %1292 = vmatpush.bf16.msra.mxu0 %v895
    %1293 = vmatmul.bf16.gmra.mxu0 %v345
    %v1294 = vpop.f32.mrf.mxu0
    %v1295 = vadd.f32 %v1282, %v1294
    %v1296 = vpop.f32.mrf.mxu0
    %1297 = vdwg.mxu0
    %1298 = vmatpush.bf16.msra.mxu0 %v955
    %1299 = vmatpush.bf16.msra.mxu0 %v951
    %1300 = vmatpush.bf16.msra.mxu0 %v947
    %1301 = vmatpush.bf16.msra.mxu0 %v943
    %1302 = vmatpush.bf16.msra.mxu0 %v939
    %1303 = vmatpush.bf16.msra.mxu0 %v935
    %1304 = vmatpush.bf16.msra.mxu0 %v931
    %1305 = vmatpush.bf16.msra.mxu0 %v927
    %1306 = vmatmul.bf16.gmra.mxu0 %v346
    %v1307 = vpop.f32.mrf.mxu0
    %v1308 = vadd.f32 %v1295, %v1307
    %v1309 = vpop.f32.mrf.mxu0
    %1310 = vdwg.mxu0
    %1311 = vmatpush.bf16.msra.mxu0 %v987
    %1312 = vmatpush.bf16.msra.mxu0 %v983
    %1313 = vmatpush.bf16.msra.mxu0 %v979
    %1314 = vmatpush.bf16.msra.mxu0 %v975
    %1315 = vmatpush.bf16.msra.mxu0 %v971
    %1316 = vmatpush.bf16.msra.mxu0 %v967
    %1317 = vmatpush.bf16.msra.mxu0 %v963
    %1318 = vmatpush.bf16.msra.mxu0 %v959
    %1319 = vmatmul.bf16.gmra.mxu0 %v347
    %v1320 = vpop.f32.mrf.mxu0
    %v1321 = vadd.f32 %v1308, %v1320
    %v1322 = vpop.f32.mrf.mxu0
    %1323 = vdwg.mxu0
    %s1324 = scalar_lea.vmem %s9, 1
    %v1325 = vld [vmem:[%s1324] ss:$8 sm:$0xf]
    %v1326 = vpack.c.bf16 %v1217, %v1165
    %v1327 = vpack.c.bf16 %v1321, %v1269
    %v1329 = vperm.slane %v1325, 0
    %v1330 = vperm.slane %v1325, 1
    %v1331 = vperm.slane %v1325, 2
    %v1332 = vperm.slane %v1325, 3
    %v1337 = vpack.c.bf16 %v1330, %v1329
    %v1338 = vpack.c.bf16 %v1332, %v1331
    %v1341 = vunpack.c.l.b16 %v1337
    %v1342 = vunpack.c.h.b16 %v1337
    %v1343 = vunpack.c.l.b16 %v1338
    %v1344 = vunpack.c.h.b16 %v1338
    %v1345 = vpack.c.b16 %v1341, %v1341
    %v1346 = vpack.c.b16 %v1342, %v1342
    %v1347 = vpack.c.b16 %v1343, %v1343
    %v1348 = vpack.c.b16 %v1344, %v1344
    %v1350 = vpack.i.b16 %v1345, %v1345
    %v1352 = vperm.slane %v1350, 0
    %v1354 = vpack.i.b16 %v1346, %v1346
    %v1356 = vperm.slane %v1354, 0
    %v1358 = vpack.i.b16 %v1347, %v1347
    %v1360 = vperm.slane %v1358, 0
    %v1362 = vpack.i.b16 %v1348, %v1348
    %v1364 = vperm.slane %v1362, 0
    %v1365 = vunpack.c.l.bf16 %v1326
    %v1366 = vunpack.c.h.bf16 %v1326
    %v1367 = vunpack.c.l.bf16 %v1327
    %v1368 = vunpack.c.h.bf16 %v1327
    %v1369 = vunpack.c.l.bf16 %v1352
    %v1370 = vunpack.c.l.bf16 %v1356
    %v1371 = vunpack.c.l.bf16 %v1360
    %v1372 = vunpack.c.l.bf16 %v1364
    %v1373 = vadd.f32 %v1365, %v1369
    %v1374 = vadd.f32 %v1366, %v1370
    %v1375 = vadd.f32 %v1367, %v1371
    %v1376 = vadd.f32 %v1368, %v1372
    %v1377 = vpack.c.bf16 %v1374, %v1373
    %v1378 = vpack.c.bf16 %v1376, %v1375
    %v1379 = vunpack.c.l.bf16 %v1377
    %v1380 = vunpack.c.h.bf16 %v1377
    %v1381 = vunpack.c.l.bf16 %v1378
    %v1382 = vunpack.c.h.bf16 %v1378
    %v1383 = vmax.f32 %v1379, 0.0
    %v1384 = vmax.f32 %v1380, 0.0
    %v1385 = vmax.f32 %v1381, 0.0
    %v1386 = vmax.f32 %v1382, 0.0
    %v1387 = vpack.c.bf16 %v1383, %v1383
    %v1388 = vpack.c.bf16 %v1384, %v1384
    %v1389 = vpack.c.bf16 %v1385, %v1385
    %v1390 = vpack.c.bf16 %v1386, %v1386
    %v1391 = vld [vmem:[#allocation8] sm:$0xff]
    %v1392 = vld [vmem:[#allocation8 + $0x8] sm:$0xff]
    %v1393 = vld [vmem:[#allocation8 + $0x10] sm:$0xff]
    %v1394 = vld [vmem:[#allocation8 + $0x18] sm:$0xff]
    %v1395 = vld [vmem:[#allocation8 + $0x20] sm:$0xff]
    %v1396 = vld [vmem:[#allocation8 + $0x28] sm:$0xff]
    %v1397 = vld [vmem:[#allocation8 + $0x30] sm:$0xff]
    %v1398 = vld [vmem:[#allocation8 + $0x38] sm:$0xff]
    %v1399 = vld [vmem:[#allocation8 + $0x40] sm:$0xff]
    %v1400 = vld [vmem:[#allocation8 + $0x48] sm:$0xff]
    %v1401 = vld [vmem:[#allocation8 + $0x50] sm:$0xff]
    %v1402 = vld [vmem:[#allocation8 + $0x58] sm:$0xff]
    %v1403 = vld [vmem:[#allocation8 + $0x60] sm:$0xff]
    %v1404 = vld [vmem:[#allocation8 + $0x68] sm:$0xff]
    %v1405 = vld [vmem:[#allocation8 + $0x70] sm:$0xff]
    %v1406 = vld [vmem:[#allocation8 + $0x78] sm:$0xff]
    %v1407 = vld [vmem:[#allocation8 + $0x80] sm:$0xff]
    %v1408 = vld [vmem:[#allocation8 + $0x88] sm:$0xff]
    %v1409 = vld [vmem:[#allocation8 + $0x90] sm:$0xff]
    %v1410 = vld [vmem:[#allocation8 + $0x98] sm:$0xff]
    %v1411 = vld [vmem:[#allocation8 + $0xa0] sm:$0xff]
    %v1412 = vld [vmem:[#allocation8 + $0xa8] sm:$0xff]
    %v1413 = vld [vmem:[#allocation8 + $0xb0] sm:$0xff]
    %v1414 = vld [vmem:[#allocation8 + $0xb8] sm:$0xff]
    %v1415 = vld [vmem:[#allocation8 + $0xc0] sm:$0xff]
    %v1416 = vld [vmem:[#allocation8 + $0xc8] sm:$0xff]
    %v1417 = vld [vmem:[#allocation8 + $0xd0] sm:$0xff]
    %v1418 = vld [vmem:[#allocation8 + $0xd8] sm:$0xff]
    %v1419 = vld [vmem:[#allocation8 + $0xe0] sm:$0xff]
    %v1420 = vld [vmem:[#allocation8 + $0xe8] sm:$0xff]
    %v1421 = vld [vmem:[#allocation8 + $0xf0] sm:$0xff]
    %v1422 = vld [vmem:[#allocation8 + $0xf8] sm:$0xff]
    %v1423 = vld [vmem:[#allocation8 + $0x100] sm:$0xff]
    %v1424 = vld [vmem:[#allocation8 + $0x108] sm:$0xff]
    %v1425 = vld [vmem:[#allocation8 + $0x110] sm:$0xff]
    %v1426 = vld [vmem:[#allocation8 + $0x118] sm:$0xff]
    %v1427 = vld [vmem:[#allocation8 + $0x120] sm:$0xff]
    %v1428 = vld [vmem:[#allocation8 + $0x128] sm:$0xff]
    %v1429 = vld [vmem:[#allocation8 + $0x130] sm:$0xff]
    %v1430 = vld [vmem:[#allocation8 + $0x138] sm:$0xff]
    %v1431 = vld [vmem:[#allocation8 + $0x140] sm:$0xff]
    %v1432 = vld [vmem:[#allocation8 + $0x148] sm:$0xff]
    %v1433 = vld [vmem:[#allocation8 + $0x150] sm:$0xff]
    %v1434 = vld [vmem:[#allocation8 + $0x158] sm:$0xff]
    %v1435 = vld [vmem:[#allocation8 + $0x160] sm:$0xff]
    %v1436 = vld [vmem:[#allocation8 + $0x168] sm:$0xff]
    %v1437 = vld [vmem:[#allocation8 + $0x170] sm:$0xff]
    %v1438 = vld [vmem:[#allocation8 + $0x178] sm:$0xff]
    %v1439 = vld [vmem:[#allocation8 + $0x180] sm:$0xff]
    %v1440 = vld [vmem:[#allocation8 + $0x188] sm:$0xff]
    %v1441 = vld [vmem:[#allocation8 + $0x190] sm:$0xff]
    %v1442 = vld [vmem:[#allocation8 + $0x198] sm:$0xff]
    %v1443 = vld [vmem:[#allocation8 + $0x1a0] sm:$0xff]
    %v1444 = vld [vmem:[#allocation8 + $0x1a8] sm:$0xff]
    %v1445 = vld [vmem:[#allocation8 + $0x1b0] sm:$0xff]
    %v1446 = vld [vmem:[#allocation8 + $0x1b8] sm:$0xff]
    %v1447 = vld [vmem:[#allocation8 + $0x1c0] sm:$0xff]
    %v1448 = vld [vmem:[#allocation8 + $0x1c8] sm:$0xff]
    %v1449 = vld [vmem:[#allocation8 + $0x1d0] sm:$0xff]
    %v1450 = vld [vmem:[#allocation8 + $0x1d8] sm:$0xff]
    %v1451 = vld [vmem:[#allocation8 + $0x1e0] sm:$0xff]
    %v1452 = vld [vmem:[#allocation8 + $0x1e8] sm:$0xff]
    %v1453 = vld [vmem:[#allocation8 + $0x1f0] sm:$0xff]
    %v1454 = vld [vmem:[#allocation8 + $0x1f8] sm:$0xff]
    %v1519 = vunpack.c.l.b16 %v1391
    %v1520 = vunpack.c.h.b16 %v1391
    %v1521 = vunpack.c.l.b16 %v1392
    %v1522 = vunpack.c.h.b16 %v1392
    %v1523 = vunpack.c.l.b16 %v1393
    %v1524 = vunpack.c.h.b16 %v1393
    %v1525 = vunpack.c.l.b16 %v1394
    %v1526 = vunpack.c.h.b16 %v1394
    %v1527 = vunpack.c.l.b16 %v1395
    %v1528 = vunpack.c.h.b16 %v1395
    %v1529 = vunpack.c.l.b16 %v1396
    %v1530 = vunpack.c.h.b16 %v1396
    %v1531 = vunpack.c.l.b16 %v1397
    %v1532 = vunpack.c.h.b16 %v1397
    %v1533 = vunpack.c.l.b16 %v1398
    %v1534 = vunpack.c.h.b16 %v1398
    %v1535 = vunpack.c.l.b16 %v1399
    %v1536 = vunpack.c.h.b16 %v1399
    %v1537 = vunpack.c.l.b16 %v1400
    %v1538 = vunpack.c.h.b16 %v1400
    %v1539 = vunpack.c.l.b16 %v1401
    %v1540 = vunpack.c.h.b16 %v1401
    %v1541 = vunpack.c.l.b16 %v1402
    %v1542 = vunpack.c.h.b16 %v1402
    %v1543 = vunpack.c.l.b16 %v1403
    %v1544 = vunpack.c.h.b16 %v1403
    %v1545 = vunpack.c.l.b16 %v1404
    %v1546 = vunpack.c.h.b16 %v1404
    %v1547 = vunpack.c.l.b16 %v1405
    %v1548 = vunpack.c.h.b16 %v1405
    %v1549 = vunpack.c.l.b16 %v1406
    %v1550 = vunpack.c.h.b16 %v1406
    %v1551 = vunpack.c.l.b16 %v1407
    %v1552 = vunpack.c.h.b16 %v1407
    %v1553 = vunpack.c.l.b16 %v1408
    %v1554 = vunpack.c.h.b16 %v1408
    %v1555 = vunpack.c.l.b16 %v1409
    %v1556 = vunpack.c.h.b16 %v1409
    %v1557 = vunpack.c.l.b16 %v1410
    %v1558 = vunpack.c.h.b16 %v1410
    %v1559 = vunpack.c.l.b16 %v1411
    %v1560 = vunpack.c.h.b16 %v1411
    %v1561 = vunpack.c.l.b16 %v1412
    %v1562 = vunpack.c.h.b16 %v1412
    %v1563 = vunpack.c.l.b16 %v1413
    %v1564 = vunpack.c.h.b16 %v1413
    %v1565 = vunpack.c.l.b16 %v1414
    %v1566 = vunpack.c.h.b16 %v1414
    %v1567 = vunpack.c.l.b16 %v1415
    %v1568 = vunpack.c.h.b16 %v1415
    %v1569 = vunpack.c.l.b16 %v1416
    %v1570 = vunpack.c.h.b16 %v1416
    %v1571 = vunpack.c.l.b16 %v1417
    %v1572 = vunpack.c.h.b16 %v1417
    %v1573 = vunpack.c.l.b16 %v1418
    %v1574 = vunpack.c.h.b16 %v1418
    %v1575 = vunpack.c.l.b16 %v1419
    %v1576 = vunpack.c.h.b16 %v1419
    %v1577 = vunpack.c.l.b16 %v1420
    %v1578 = vunpack.c.h.b16 %v1420
    %v1579 = vunpack.c.l.b16 %v1421
    %v1580 = vunpack.c.h.b16 %v1421
    %v1581 = vunpack.c.l.b16 %v1422
    %v1582 = vunpack.c.h.b16 %v1422
    %v1583 = vunpack.c.l.b16 %v1423
    %v1584 = vunpack.c.h.b16 %v1423
    %v1585 = vunpack.c.l.b16 %v1424
    %v1586 = vunpack.c.h.b16 %v1424
    %v1587 = vunpack.c.l.b16 %v1425
    %v1588 = vunpack.c.h.b16 %v1425
    %v1589 = vunpack.c.l.b16 %v1426
    %v1590 = vunpack.c.h.b16 %v1426
    %v1591 = vunpack.c.l.b16 %v1427
    %v1592 = vunpack.c.h.b16 %v1427
    %v1593 = vunpack.c.l.b16 %v1428
    %v1594 = vunpack.c.h.b16 %v1428
    %v1595 = vunpack.c.l.b16 %v1429
    %v1596 = vunpack.c.h.b16 %v1429
    %v1597 = vunpack.c.l.b16 %v1430
    %v1598 = vunpack.c.h.b16 %v1430
    %v1599 = vunpack.c.l.b16 %v1431
    %v1600 = vunpack.c.h.b16 %v1431
    %v1601 = vunpack.c.l.b16 %v1432
    %v1602 = vunpack.c.h.b16 %v1432
    %v1603 = vunpack.c.l.b16 %v1433
    %v1604 = vunpack.c.h.b16 %v1433
    %v1605 = vunpack.c.l.b16 %v1434
    %v1606 = vunpack.c.h.b16 %v1434
    %v1607 = vunpack.c.l.b16 %v1435
    %v1608 = vunpack.c.h.b16 %v1435
    %v1609 = vunpack.c.l.b16 %v1436
    %v1610 = vunpack.c.h.b16 %v1436
    %v1611 = vunpack.c.l.b16 %v1437
    %v1612 = vunpack.c.h.b16 %v1437
    %v1613 = vunpack.c.l.b16 %v1438
    %v1614 = vunpack.c.h.b16 %v1438
    %v1615 = vunpack.c.l.b16 %v1439
    %v1616 = vunpack.c.h.b16 %v1439
    %v1617 = vunpack.c.l.b16 %v1440
    %v1618 = vunpack.c.h.b16 %v1440
    %v1619 = vunpack.c.l.b16 %v1441
    %v1620 = vunpack.c.h.b16 %v1441
    %v1621 = vunpack.c.l.b16 %v1442
    %v1622 = vunpack.c.h.b16 %v1442
    %v1623 = vunpack.c.l.b16 %v1443
    %v1624 = vunpack.c.h.b16 %v1443
    %v1625 = vunpack.c.l.b16 %v1444
    %v1626 = vunpack.c.h.b16 %v1444
    %v1627 = vunpack.c.l.b16 %v1445
    %v1628 = vunpack.c.h.b16 %v1445
    %v1629 = vunpack.c.l.b16 %v1446
    %v1630 = vunpack.c.h.b16 %v1446
    %v1631 = vunpack.c.l.b16 %v1447
    %v1632 = vunpack.c.h.b16 %v1447
    %v1633 = vunpack.c.l.b16 %v1448
    %v1634 = vunpack.c.h.b16 %v1448
    %v1635 = vunpack.c.l.b16 %v1449
    %v1636 = vunpack.c.h.b16 %v1449
    %v1637 = vunpack.c.l.b16 %v1450
    %v1638 = vunpack.c.h.b16 %v1450
    %v1639 = vunpack.c.l.b16 %v1451
    %v1640 = vunpack.c.h.b16 %v1451
    %v1641 = vunpack.c.l.b16 %v1452
    %v1642 = vunpack.c.h.b16 %v1452
    %v1643 = vunpack.c.l.b16 %v1453
    %v1644 = vunpack.c.h.b16 %v1453
    %v1645 = vunpack.c.l.b16 %v1454
    %v1646 = vunpack.c.h.b16 %v1454
    %v1647 = vpack.c.b16 %v1521, %v1519
    %v1648 = vpack.c.b16 %v1522, %v1520
    %v1649 = vpack.c.b16 %v1525, %v1523
    %v1650 = vpack.c.b16 %v1526, %v1524
    %v1651 = vpack.c.b16 %v1529, %v1527
    %v1652 = vpack.c.b16 %v1530, %v1528
    %v1653 = vpack.c.b16 %v1533, %v1531
    %v1654 = vpack.c.b16 %v1534, %v1532
    %v1655 = vpack.c.b16 %v1537, %v1535
    %v1656 = vpack.c.b16 %v1538, %v1536
    %v1657 = vpack.c.b16 %v1541, %v1539
    %v1658 = vpack.c.b16 %v1542, %v1540
    %v1659 = vpack.c.b16 %v1545, %v1543
    %v1660 = vpack.c.b16 %v1546, %v1544
    %v1661 = vpack.c.b16 %v1549, %v1547
    %v1662 = vpack.c.b16 %v1550, %v1548
    %v1663 = vpack.c.b16 %v1553, %v1551
    %v1664 = vpack.c.b16 %v1554, %v1552
    %v1665 = vpack.c.b16 %v1557, %v1555
    %v1666 = vpack.c.b16 %v1558, %v1556
    %v1667 = vpack.c.b16 %v1561, %v1559
    %v1668 = vpack.c.b16 %v1562, %v1560
    %v1669 = vpack.c.b16 %v1565, %v1563
    %v1670 = vpack.c.b16 %v1566, %v1564
    %v1671 = vpack.c.b16 %v1569, %v1567
    %v1672 = vpack.c.b16 %v1570, %v1568
    %v1673 = vpack.c.b16 %v1573, %v1571
    %v1674 = vpack.c.b16 %v1574, %v1572
    %v1675 = vpack.c.b16 %v1577, %v1575
    %v1676 = vpack.c.b16 %v1578, %v1576
    %v1677 = vpack.c.b16 %v1581, %v1579
    %v1678 = vpack.c.b16 %v1582, %v1580
    %v1679 = vpack.c.b16 %v1585, %v1583
    %v1680 = vpack.c.b16 %v1586, %v1584
    %v1681 = vpack.c.b16 %v1589, %v1587
    %v1682 = vpack.c.b16 %v1590, %v1588
    %v1683 = vpack.c.b16 %v1593, %v1591
    %v1684 = vpack.c.b16 %v1594, %v1592
    %v1685 = vpack.c.b16 %v1597, %v1595
    %v1686 = vpack.c.b16 %v1598, %v1596
    %v1687 = vpack.c.b16 %v1601, %v1599
    %v1688 = vpack.c.b16 %v1602, %v1600
    %v1689 = vpack.c.b16 %v1605, %v1603
    %v1690 = vpack.c.b16 %v1606, %v1604
    %v1691 = vpack.c.b16 %v1609, %v1607
    %v1692 = vpack.c.b16 %v1610, %v1608
    %v1693 = vpack.c.b16 %v1613, %v1611
    %v1694 = vpack.c.b16 %v1614, %v1612
    %v1695 = vpack.c.b16 %v1617, %v1615
    %v1696 = vpack.c.b16 %v1618, %v1616
    %v1697 = vpack.c.b16 %v1621, %v1619
    %v1698 = vpack.c.b16 %v1622, %v1620
    %v1699 = vpack.c.b16 %v1625, %v1623
    %v1700 = vpack.c.b16 %v1626, %v1624
    %v1701 = vpack.c.b16 %v1629, %v1627
    %v1702 = vpack.c.b16 %v1630, %v1628
    %v1703 = vpack.c.b16 %v1633, %v1631
    %v1704 = vpack.c.b16 %v1634, %v1632
    %v1705 = vpack.c.b16 %v1637, %v1635
    %v1706 = vpack.c.b16 %v1638, %v1636
    %v1707 = vpack.c.b16 %v1641, %v1639
    %v1708 = vpack.c.b16 %v1642, %v1640
    %v1709 = vpack.c.b16 %v1645, %v1643
    %v1710 = vpack.c.b16 %v1646, %v1644
    %1775 = vmatpush.bf16.msra.mxu0 %v1661
    %1776 = vmatpush.bf16.msra.mxu0 %v1659
    %1777 = vmatpush.bf16.msra.mxu0 %v1657
    %1778 = vmatpush.bf16.msra.mxu0 %v1655
    %1779 = vmatpush.bf16.msra.mxu0 %v1653
    %1780 = vmatpush.bf16.msra.mxu0 %v1651
    %1781 = vmatpush.bf16.msra.mxu0 %v1649
    %1782 = vmatpush.bf16.msra.mxu0 %v1647
    %1783 = vmatmul.bf16.gmra.mxu0 %v1387
    %v1784 = vpop.f32.mrf.mxu0
    %v1785 = vadd.f32 0.0, %v1784
    %v1786 = vpop.f32.mrf.mxu0
    %1787 = vdwg.mxu0
    %1788 = vmatpush.bf16.msra.mxu0 %v1677
    %1789 = vmatpush.bf16.msra.mxu0 %v1675
    %1790 = vmatpush.bf16.msra.mxu0 %v1673
    %1791 = vmatpush.bf16.msra.mxu0 %v1671
    %1792 = vmatpush.bf16.msra.mxu0 %v1669
    %1793 = vmatpush.bf16.msra.mxu0 %v1667
    %1794 = vmatpush.bf16.msra.mxu0 %v1665
    %1795 = vmatpush.bf16.msra.mxu0 %v1663
    %1796 = vmatmul.bf16.gmra.mxu0 %v1388
    %v1797 = vpop.f32.mrf.mxu0
    %v1798 = vadd.f32 %v1785, %v1797
    %v1799 = vpop.f32.mrf.mxu0
    %1800 = vdwg.mxu0
    %1801 = vmatpush.bf16.msra.mxu0 %v1693
    %1802 = vmatpush.bf16.msra.mxu0 %v1691
    %1803 = vmatpush.bf16.msra.mxu0 %v1689
    %1804 = vmatpush.bf16.msra.mxu0 %v1687
    %1805 = vmatpush.bf16.msra.mxu0 %v1685
    %1806 = vmatpush.bf16.msra.mxu0 %v1683
    %1807 = vmatpush.bf16.msra.mxu0 %v1681
    %1808 = vmatpush.bf16.msra.mxu0 %v1679
    %1809 = vmatmul.bf16.gmra.mxu0 %v1389
    %v1810 = vpop.f32.mrf.mxu0
    %v1811 = vadd.f32 %v1798, %v1810
    %v1812 = vpop.f32.mrf.mxu0
    %1813 = vdwg.mxu0
    %1814 = vmatpush.bf16.msra.mxu0 %v1709
    %1815 = vmatpush.bf16.msra.mxu0 %v1707
    %1816 = vmatpush.bf16.msra.mxu0 %v1705
    %1817 = vmatpush.bf16.msra.mxu0 %v1703
    %1818 = vmatpush.bf16.msra.mxu0 %v1701
    %1819 = vmatpush.bf16.msra.mxu0 %v1699
    %1820 = vmatpush.bf16.msra.mxu0 %v1697
    %1821 = vmatpush.bf16.msra.mxu0 %v1695
    %1822 = vmatmul.bf16.gmra.mxu0 %v1390
    %v1823 = vpop.f32.mrf.mxu0
    %v1824 = vadd.f32 %v1811, %v1823
    %v1825 = vpop.f32.mrf.mxu0
    %1826 = vdwg.mxu0
    %1827 = vmatpush.bf16.msra.mxu0 %v1662
    %1828 = vmatpush.bf16.msra.mxu0 %v1660
    %1829 = vmatpush.bf16.msra.mxu0 %v1658
    %1830 = vmatpush.bf16.msra.mxu0 %v1656
    %1831 = vmatpush.bf16.msra.mxu0 %v1654
    %1832 = vmatpush.bf16.msra.mxu0 %v1652
    %1833 = vmatpush.bf16.msra.mxu0 %v1650
    %1834 = vmatpush.bf16.msra.mxu0 %v1648
    %1835 = vmatmul.bf16.gmra.mxu0 %v1387
    %v1836 = vpop.f32.mrf.mxu0
    %v1837 = vadd.f32 0.0, %v1836
    %v1838 = vpop.f32.mrf.mxu0
    %1839 = vdwg.mxu0
    %1840 = vmatpush.bf16.msra.mxu0 %v1678
    %1841 = vmatpush.bf16.msra.mxu0 %v1676
    %1842 = vmatpush.bf16.msra.mxu0 %v1674
    %1843 = vmatpush.bf16.msra.mxu0 %v1672
    %1844 = vmatpush.bf16.msra.mxu0 %v1670
    %1845 = vmatpush.bf16.msra.mxu0 %v1668
    %1846 = vmatpush.bf16.msra.mxu0 %v1666
    %1847 = vmatpush.bf16.msra.mxu0 %v1664
    %1848 = vmatmul.bf16.gmra.mxu0 %v1388
    %v1849 = vpop.f32.mrf.mxu0
    %v1850 = vadd.f32 %v1837, %v1849
    %v1851 = vpop.f32.mrf.mxu0
    %1852 = vdwg.mxu0
    %1853 = vmatpush.bf16.msra.mxu0 %v1694
    %1854 = vmatpush.bf16.msra.mxu0 %v1692
    %1855 = vmatpush.bf16.msra.mxu0 %v1690
    %1856 = vmatpush.bf16.msra.mxu0 %v1688
    %1857 = vmatpush.bf16.msra.mxu0 %v1686
    %1858 = vmatpush.bf16.msra.mxu0 %v1684
    %1859 = vmatpush.bf16.msra.mxu0 %v1682
    %1860 = vmatpush.bf16.msra.mxu0 %v1680
    %1861 = vmatmul.bf16.gmra.mxu0 %v1389
    %v1862 = vpop.f32.mrf.mxu0
    %v1863 = vadd.f32 %v1850, %v1862
    %v1864 = vpop.f32.mrf.mxu0
    %1865 = vdwg.mxu0
    %1866 = vmatpush.bf16.msra.mxu0 %v1710
    %1867 = vmatpush.bf16.msra.mxu0 %v1708
    %1868 = vmatpush.bf16.msra.mxu0 %v1706
    %1869 = vmatpush.bf16.msra.mxu0 %v1704
    %1870 = vmatpush.bf16.msra.mxu0 %v1702
    %1871 = vmatpush.bf16.msra.mxu0 %v1700
    %1872 = vmatpush.bf16.msra.mxu0 %v1698
    %1873 = vmatpush.bf16.msra.mxu0 %v1696
    %1874 = vmatmul.bf16.gmra.mxu0 %v1390
    %v1875 = vpop.f32.mrf.mxu0
    %v1876 = vadd.f32 %v1863, %v1875
    %v1877 = vpop.f32.mrf.mxu0
    %1878 = vdwg.mxu0
    %s1879 = scalar_lea.vmem %s9, 2
    %v1880 = vld [vmem:[%s1879] ss:$8 sm:$0x3]
    %v1881 = vpack.c.bf16 %v1876, %v1824
    %v1883 = vperm.slane %v1880, 0
    %v1884 = vperm.slane %v1880, 1
    %v1887 = vpack.c.bf16 %v1884, %v1883
    %v1889 = vunpack.c.l.b16 %v1887
    %v1890 = vunpack.c.h.b16 %v1887
    %v1891 = vpack.c.b16 %v1889, %v1889
    %v1892 = vpack.c.b16 %v1890, %v1890
    %v1894 = vpack.i.b16 %v1891, %v1891
    %v1896 = vperm.slane %v1894, 0
    %v1898 = vpack.i.b16 %v1892, %v1892
    %v1900 = vperm.slane %v1898, 0
    %v1901 = vunpack.c.l.bf16 %v1881
    %v1902 = vunpack.c.h.bf16 %v1881
    %v1903 = vunpack.c.l.bf16 %v1896
    %v1904 = vunpack.c.l.bf16 %v1900
    %v1905 = vadd.f32 %v1901, %v1903
    %v1906 = vadd.f32 %v1902, %v1904
    %v1907 = vpack.c.bf16 %v1906, %v1905
    %v1908 = vunpack.c.l.bf16 %v1907
    %v1909 = vunpack.c.h.bf16 %v1907
    %v1910 = vmax.f32 %v1908, 0.0
    %v1911 = vmax.f32 %v1909, 0.0
    %v1912 = vpack.c.bf16 %v1910, %v1910
    %v1913 = vpack.c.bf16 %v1911, %v1911
    %v1914 = vld [vmem:[#allocation10] sm:$0xff]
    %v1915 = vld [vmem:[#allocation10 + $0x8] sm:$0xff]
    %v1916 = vld [vmem:[#allocation10 + $0x10] sm:$0xff]
    %v1917 = vld [vmem:[#allocation10 + $0x18] sm:$0xff]
    %v1918 = vld [vmem:[#allocation10 + $0x20] sm:$0xff]
    %v1919 = vld [vmem:[#allocation10 + $0x28] sm:$0xff]
    %v1920 = vld [vmem:[#allocation10 + $0x30] sm:$0xff]
    %v1921 = vld [vmem:[#allocation10 + $0x38] sm:$0xff]
    %v1922 = vld [vmem:[#allocation10 + $0x40] sm:$0xff]
    %v1923 = vld [vmem:[#allocation10 + $0x48] sm:$0xff]
    %v1924 = vld [vmem:[#allocation10 + $0x50] sm:$0xff]
    %v1925 = vld [vmem:[#allocation10 + $0x58] sm:$0xff]
    %v1926 = vld [vmem:[#allocation10 + $0x60] sm:$0xff]
    %v1927 = vld [vmem:[#allocation10 + $0x68] sm:$0xff]
    %v1928 = vld [vmem:[#allocation10 + $0x70] sm:$0xff]
    %v1929 = vld [vmem:[#allocation10 + $0x78] sm:$0xff]
    %v1930 = vld [vmem:[#allocation10 + $0x80] sm:$0xff]
    %v1931 = vld [vmem:[#allocation10 + $0x88] sm:$0xff]
    %v1932 = vld [vmem:[#allocation10 + $0x90] sm:$0xff]
    %v1933 = vld [vmem:[#allocation10 + $0x98] sm:$0xff]
    %v1934 = vld [vmem:[#allocation10 + $0xa0] sm:$0xff]
    %v1935 = vld [vmem:[#allocation10 + $0xa8] sm:$0xff]
    %v1936 = vld [vmem:[#allocation10 + $0xb0] sm:$0xff]
    %v1937 = vld [vmem:[#allocation10 + $0xb8] sm:$0xff]
    %v1938 = vld [vmem:[#allocation10 + $0xc0] sm:$0xff]
    %v1939 = vld [vmem:[#allocation10 + $0xc8] sm:$0xff]
    %v1940 = vld [vmem:[#allocation10 + $0xd0] sm:$0xff]
    %v1941 = vld [vmem:[#allocation10 + $0xd8] sm:$0xff]
    %v1942 = vld [vmem:[#allocation10 + $0xe0] sm:$0xff]
    %v1943 = vld [vmem:[#allocation10 + $0xe8] sm:$0xff]
    %v1944 = vld [vmem:[#allocation10 + $0xf0] sm:$0xff]
    %v1945 = vld [vmem:[#allocation10 + $0xf8] sm:$0xff]
    %v1978 = vunpack.c.l.b16 %v1914
    %v1979 = vunpack.c.h.b16 %v1914
    %v1980 = vunpack.c.l.b16 %v1915
    %v1981 = vunpack.c.h.b16 %v1915
    %v1982 = vunpack.c.l.b16 %v1916
    %v1983 = vunpack.c.h.b16 %v1916
    %v1984 = vunpack.c.l.b16 %v1917
    %v1985 = vunpack.c.h.b16 %v1917
    %v1986 = vunpack.c.l.b16 %v1918
    %v1987 = vunpack.c.h.b16 %v1918
    %v1988 = vunpack.c.l.b16 %v1919
    %v1989 = vunpack.c.h.b16 %v1919
    %v1990 = vunpack.c.l.b16 %v1920
    %v1991 = vunpack.c.h.b16 %v1920
    %v1992 = vunpack.c.l.b16 %v1921
    %v1993 = vunpack.c.h.b16 %v1921
    %v1994 = vunpack.c.l.b16 %v1922
    %v1995 = vunpack.c.h.b16 %v1922
    %v1996 = vunpack.c.l.b16 %v1923
    %v1997 = vunpack.c.h.b16 %v1923
    %v1998 = vunpack.c.l.b16 %v1924
    %v1999 = vunpack.c.h.b16 %v1924
    %v2000 = vunpack.c.l.b16 %v1925
    %v2001 = vunpack.c.h.b16 %v1925
    %v2002 = vunpack.c.l.b16 %v1926
    %v2003 = vunpack.c.h.b16 %v1926
    %v2004 = vunpack.c.l.b16 %v1927
    %v2005 = vunpack.c.h.b16 %v1927
    %v2006 = vunpack.c.l.b16 %v1928
    %v2007 = vunpack.c.h.b16 %v1928
    %v2008 = vunpack.c.l.b16 %v1929
    %v2009 = vunpack.c.h.b16 %v1929
    %v2010 = vunpack.c.l.b16 %v1930
    %v2011 = vunpack.c.h.b16 %v1930
    %v2012 = vunpack.c.l.b16 %v1931
    %v2013 = vunpack.c.h.b16 %v1931
    %v2014 = vunpack.c.l.b16 %v1932
    %v2015 = vunpack.c.h.b16 %v1932
    %v2016 = vunpack.c.l.b16 %v1933
    %v2017 = vunpack.c.h.b16 %v1933
    %v2018 = vunpack.c.l.b16 %v1934
    %v2019 = vunpack.c.h.b16 %v1934
    %v2020 = vunpack.c.l.b16 %v1935
    %v2021 = vunpack.c.h.b16 %v1935
    %v2022 = vunpack.c.l.b16 %v1936
    %v2023 = vunpack.c.h.b16 %v1936
    %v2024 = vunpack.c.l.b16 %v1937
    %v2025 = vunpack.c.h.b16 %v1937
    %v2026 = vunpack.c.l.b16 %v1938
    %v2027 = vunpack.c.h.b16 %v1938
    %v2028 = vunpack.c.l.b16 %v1939
    %v2029 = vunpack.c.h.b16 %v1939
    %v2030 = vunpack.c.l.b16 %v1940
    %v2031 = vunpack.c.h.b16 %v1940
    %v2032 = vunpack.c.l.b16 %v1941
    %v2033 = vunpack.c.h.b16 %v1941
    %v2034 = vunpack.c.l.b16 %v1942
    %v2035 = vunpack.c.h.b16 %v1942
    %v2036 = vunpack.c.l.b16 %v1943
    %v2037 = vunpack.c.h.b16 %v1943
    %v2038 = vunpack.c.l.b16 %v1944
    %v2039 = vunpack.c.h.b16 %v1944
    %v2040 = vunpack.c.l.b16 %v1945
    %v2041 = vunpack.c.h.b16 %v1945
    %v2042 = vpack.c.b16 %v1980, %v1978
    %v2043 = vpack.c.b16 %v1981, %v1979
    %v2044 = vpack.c.b16 %v1984, %v1982
    %v2045 = vpack.c.b16 %v1985, %v1983
    %v2046 = vpack.c.b16 %v1988, %v1986
    %v2047 = vpack.c.b16 %v1989, %v1987
    %v2048 = vpack.c.b16 %v1992, %v1990
    %v2049 = vpack.c.b16 %v1993, %v1991
    %v2050 = vpack.c.b16 %v1996, %v1994
    %v2051 = vpack.c.b16 %v1997, %v1995
    %v2052 = vpack.c.b16 %v2000, %v1998
    %v2053 = vpack.c.b16 %v2001, %v1999
    %v2054 = vpack.c.b16 %v2004, %v2002
    %v2055 = vpack.c.b16 %v2005, %v2003
    %v2056 = vpack.c.b16 %v2008, %v2006
    %v2057 = vpack.c.b16 %v2009, %v2007
    %v2058 = vpack.c.b16 %v2012, %v2010
    %v2059 = vpack.c.b16 %v2013, %v2011
    %v2060 = vpack.c.b16 %v2016, %v2014
    %v2061 = vpack.c.b16 %v2017, %v2015
    %v2062 = vpack.c.b16 %v2020, %v2018
    %v2063 = vpack.c.b16 %v2021, %v2019
    %v2064 = vpack.c.b16 %v2024, %v2022
    %v2065 = vpack.c.b16 %v2025, %v2023
    %v2066 = vpack.c.b16 %v2028, %v2026
    %v2067 = vpack.c.b16 %v2029, %v2027
    %v2068 = vpack.c.b16 %v2032, %v2030
    %v2069 = vpack.c.b16 %v2033, %v2031
    %v2070 = vpack.c.b16 %v2036, %v2034
    %v2071 = vpack.c.b16 %v2037, %v2035
    %v2072 = vpack.c.b16 %v2040, %v2038
    %v2073 = vpack.c.b16 %v2041, %v2039
    %2106 = vmatpush.bf16.msra.mxu0 %v2056
    %2107 = vmatpush.bf16.msra.mxu0 %v2054
    %2108 = vmatpush.bf16.msra.mxu0 %v2052
    %2109 = vmatpush.bf16.msra.mxu0 %v2050
    %2110 = vmatpush.bf16.msra.mxu0 %v2048
    %2111 = vmatpush.bf16.msra.mxu0 %v2046
    %2112 = vmatpush.bf16.msra.mxu0 %v2044
    %2113 = vmatpush.bf16.msra.mxu0 %v2042
    %2114 = vmatmul.bf16.gmra.mxu0 %v1912
    %v2115 = vpop.f32.mrf.mxu0
    %v2116 = vadd.f32 0.0, %v2115
    %v2117 = vpop.f32.mrf.mxu0
    %2118 = vdwg.mxu0
    %2119 = vmatpush.bf16.msra.mxu0 %v2072
    %2120 = vmatpush.bf16.msra.mxu0 %v2070
    %2121 = vmatpush.bf16.msra.mxu0 %v2068
    %2122 = vmatpush.bf16.msra.mxu0 %v2066
    %2123 = vmatpush.bf16.msra.mxu0 %v2064
    %2124 = vmatpush.bf16.msra.mxu0 %v2062
    %2125 = vmatpush.bf16.msra.mxu0 %v2060
    %2126 = vmatpush.bf16.msra.mxu0 %v2058
    %2127 = vmatmul.bf16.gmra.mxu0 %v1913
    %v2128 = vpop.f32.mrf.mxu0
    %v2129 = vadd.f32 %v2116, %v2128
    %v2130 = vpop.f32.mrf.mxu0
    %2131 = vdwg.mxu0
    %2132 = vmatpush.bf16.msra.mxu0 %v2057
    %2133 = vmatpush.bf16.msra.mxu0 %v2055
    %2134 = vmatpush.bf16.msra.mxu0 %v2053
    %2135 = vmatpush.bf16.msra.mxu0 %v2051
    %2136 = vmatpush.bf16.msra.mxu0 %v2049
    %2137 = vmatpush.bf16.msra.mxu0 %v2047
    %2138 = vmatpush.bf16.msra.mxu0 %v2045
    %2139 = vmatpush.bf16.msra.mxu0 %v2043
    %2140 = vmatmul.bf16.gmra.mxu0 %v1912
    %v2141 = vpop.f32.mrf.mxu0
    %v2142 = vadd.f32 0.0, %v2141
    %v2143 = vpop.f32.mrf.mxu0
    %2144 = vdwg.mxu0
    %2145 = vmatpush.bf16.msra.mxu0 %v2073
    %2146 = vmatpush.bf16.msra.mxu0 %v2071
    %2147 = vmatpush.bf16.msra.mxu0 %v2069
    %2148 = vmatpush.bf16.msra.mxu0 %v2067
    %2149 = vmatpush.bf16.msra.mxu0 %v2065
    %2150 = vmatpush.bf16.msra.mxu0 %v2063
    %2151 = vmatpush.bf16.msra.mxu0 %v2061
    %2152 = vmatpush.bf16.msra.mxu0 %v2059
    %2153 = vmatmul.bf16.gmra.mxu0 %v1913
    %v2154 = vpop.f32.mrf.mxu0
    %v2155 = vadd.f32 %v2142, %v2154
    %v2156 = vpop.f32.mrf.mxu0
    %2157 = vdwg.mxu0
    %s2158 = scalar_lea.vmem %s9, 3
    %v2159 = vld [vmem:[%s2158] ss:$8 sm:$0x3]
    %v2160 = vpack.c.bf16 %v2155, %v2129
    %v2162 = vperm.slane %v2159, 0
    %v2163 = vperm.slane %v2159, 1
    %v2166 = vpack.c.bf16 %v2163, %v2162
    %v2168 = vunpack.c.l.b16 %v2166
    %v2169 = vunpack.c.h.b16 %v2166
    %v2170 = vpack.c.b16 %v2168, %v2168
    %v2171 = vpack.c.b16 %v2169, %v2169
    %v2173 = vpack.i.b16 %v2170, %v2170
    %v2175 = vperm.slane %v2173, 0
    %v2177 = vpack.i.b16 %v2171, %v2171
    %v2179 = vperm.slane %v2177, 0
    %v2180 = vunpack.c.l.bf16 %v2160
    %v2181 = vunpack.c.h.bf16 %v2160
    %v2182 = vunpack.c.l.bf16 %v2175
    %v2183 = vunpack.c.l.bf16 %v2179
    %v2184 = vadd.f32 %v2180, %v2182
    %v2185 = vadd.f32 %v2181, %v2183
    %v2186 = vpack.c.bf16 %v2185, %v2184
    %v2187 = vunpack.c.l.bf16 %v2186
    %v2188 = vunpack.c.h.bf16 %v2186
    %v2189 = vmax.f32 %v2187, 0.0
    %v2190 = vmax.f32 %v2188, 0.0
    %v2191 = vpack.c.bf16 %v2189, %v2189
    %v2192 = vpack.c.bf16 %v2190, %v2190
    %v2193 = vld [vmem:[#allocation11] sm:$0xf]
    %v2194 = vld [vmem:[#allocation11 + $0x4] sm:$0xf]
    %v2195 = vld [vmem:[#allocation11 + $0x8] sm:$0xf]
    %v2196 = vld [vmem:[#allocation11 + $0xc] sm:$0xf]
    %v2197 = vld [vmem:[#allocation11 + $0x10] sm:$0xf]
    %v2198 = vld [vmem:[#allocation11 + $0x14] sm:$0xf]
    %v2199 = vld [vmem:[#allocation11 + $0x18] sm:$0xf]
    %v2200 = vld [vmem:[#allocation11 + $0x1c] sm:$0xf]
    %v2201 = vld [vmem:[#allocation11 + $0x20] sm:$0xf]
    %v2202 = vld [vmem:[#allocation11 + $0x24] sm:$0xf]
    %v2203 = vld [vmem:[#allocation11 + $0x28] sm:$0xf]
    %v2204 = vld [vmem:[#allocation11 + $0x2c] sm:$0xf]
    %v2205 = vld [vmem:[#allocation11 + $0x30] sm:$0xf]
    %v2206 = vld [vmem:[#allocation11 + $0x34] sm:$0xf]
    %v2207 = vld [vmem:[#allocation11 + $0x38] sm:$0xf]
    %v2208 = vld [vmem:[#allocation11 + $0x3c] sm:$0xf]
    %v2209 = vld [vmem:[#allocation11 + $0x40] sm:$0xf]
    %v2210 = vld [vmem:[#allocation11 + $0x44] sm:$0xf]
    %v2211 = vld [vmem:[#allocation11 + $0x48] sm:$0xf]
    %v2212 = vld [vmem:[#allocation11 + $0x4c] sm:$0xf]
    %v2213 = vld [vmem:[#allocation11 + $0x50] sm:$0xf]
    %v2214 = vld [vmem:[#allocation11 + $0x54] sm:$0xf]
    %v2215 = vld [vmem:[#allocation11 + $0x58] sm:$0xf]
    %v2216 = vld [vmem:[#allocation11 + $0x5c] sm:$0xf]
    %v2217 = vld [vmem:[#allocation11 + $0x60] sm:$0xf]
    %v2218 = vld [vmem:[#allocation11 + $0x64] sm:$0xf]
    %v2219 = vld [vmem:[#allocation11 + $0x68] sm:$0xf]
    %v2220 = vld [vmem:[#allocation11 + $0x6c] sm:$0xf]
    %v2221 = vld [vmem:[#allocation11 + $0x70] sm:$0xf]
    %v2222 = vld [vmem:[#allocation11 + $0x74] sm:$0xf]
    %v2223 = vld [vmem:[#allocation11 + $0x78] sm:$0xf]
    %v2224 = vld [vmem:[#allocation11 + $0x7c] sm:$0xf]
    %v2257 = vunpack.c.l.b16 %v2193
    %v2258 = vunpack.c.l.b16 %v2194
    %v2259 = vunpack.c.l.b16 %v2195
    %v2260 = vunpack.c.l.b16 %v2196
    %v2261 = vunpack.c.l.b16 %v2197
    %v2262 = vunpack.c.l.b16 %v2198
    %v2263 = vunpack.c.l.b16 %v2199
    %v2264 = vunpack.c.l.b16 %v2200
    %v2265 = vunpack.c.l.b16 %v2201
    %v2266 = vunpack.c.l.b16 %v2202
    %v2267 = vunpack.c.l.b16 %v2203
    %v2268 = vunpack.c.l.b16 %v2204
    %v2269 = vunpack.c.l.b16 %v2205
    %v2270 = vunpack.c.l.b16 %v2206
    %v2271 = vunpack.c.l.b16 %v2207
    %v2272 = vunpack.c.l.b16 %v2208
    %v2273 = vunpack.c.l.b16 %v2209
    %v2274 = vunpack.c.l.b16 %v2210
    %v2275 = vunpack.c.l.b16 %v2211
    %v2276 = vunpack.c.l.b16 %v2212
    %v2277 = vunpack.c.l.b16 %v2213
    %v2278 = vunpack.c.l.b16 %v2214
    %v2279 = vunpack.c.l.b16 %v2215
    %v2280 = vunpack.c.l.b16 %v2216
    %v2281 = vunpack.c.l.b16 %v2217
    %v2282 = vunpack.c.l.b16 %v2218
    %v2283 = vunpack.c.l.b16 %v2219
    %v2284 = vunpack.c.l.b16 %v2220
    %v2285 = vunpack.c.l.b16 %v2221
    %v2286 = vunpack.c.l.b16 %v2222
    %v2287 = vunpack.c.l.b16 %v2223
    %v2288 = vunpack.c.l.b16 %v2224
    %v2289 = vpack.c.b16 %v2258, %v2257
    %v2290 = vpack.c.b16 %v2260, %v2259
    %v2291 = vpack.c.b16 %v2262, %v2261
    %v2292 = vpack.c.b16 %v2264, %v2263
    %v2293 = vpack.c.b16 %v2266, %v2265
    %v2294 = vpack.c.b16 %v2268, %v2267
    %v2295 = vpack.c.b16 %v2270, %v2269
    %v2296 = vpack.c.b16 %v2272, %v2271
    %v2297 = vpack.c.b16 %v2274, %v2273
    %v2298 = vpack.c.b16 %v2276, %v2275
    %v2299 = vpack.c.b16 %v2278, %v2277
    %v2300 = vpack.c.b16 %v2280, %v2279
    %v2301 = vpack.c.b16 %v2282, %v2281
    %v2302 = vpack.c.b16 %v2284, %v2283
    %v2303 = vpack.c.b16 %v2286, %v2285
    %v2304 = vpack.c.b16 %v2288, %v2287
    %2321 = vmatpush.bf16.msra.mxu0 %v2296
    %2322 = vmatpush.bf16.msra.mxu0 %v2295
    %2323 = vmatpush.bf16.msra.mxu0 %v2294
    %2324 = vmatpush.bf16.msra.mxu0 %v2293
    %2325 = vmatpush.bf16.msra.mxu0 %v2292
    %2326 = vmatpush.bf16.msra.mxu0 %v2291
    %2327 = vmatpush.bf16.msra.mxu0 %v2290
    %2328 = vmatpush.bf16.msra.mxu0 %v2289
    %2329 = vmatmul.bf16.gmra.mxu0 %v2191
    %v2330 = vpop.f32.mrf.mxu0
    %v2331 = vadd.f32 0.0, %v2330
    %v2332 = vpop.f32.mrf.mxu0
    %2333 = vdwg.mxu0
    %2334 = vmatpush.bf16.msra.mxu0 %v2304
    %2335 = vmatpush.bf16.msra.mxu0 %v2303
    %2336 = vmatpush.bf16.msra.mxu0 %v2302
    %2337 = vmatpush.bf16.msra.mxu0 %v2301
    %2338 = vmatpush.bf16.msra.mxu0 %v2300
    %2339 = vmatpush.bf16.msra.mxu0 %v2299
    %2340 = vmatpush.bf16.msra.mxu0 %v2298
    %2341 = vmatpush.bf16.msra.mxu0 %v2297
    %2342 = vmatmul.bf16.gmra.mxu0 %v2192
    %v2343 = vpop.f32.mrf.mxu0
    %v2344 = vadd.f32 %v2331, %v2343
    %v2345 = vpop.f32.mrf.mxu0
    %2346 = vdwg.mxu0
    %v2347 = vld [vmem:[%s9 + $0x4] ss:$0 sm:$0xff]
    %v2348 = vpack.c.bf16 %v2344, %v2344
    %v2349 = vpack.c.bf16 %v2347, %v2347
    %v2350 = vunpack.c.l.bf16 %v2348
    %v2351 = vunpack.c.l.bf16 %v2349
    %v2352 = vadd.f32 %v2350, %v2351
    %v2353 = vpack.c.bf16 %v2352, %v2352
    %v2354 = vunpack.c.l.bf16 %v2353
    %v2355 = vmax.f32 %v2354, 0.0
    %v2356 = vpack.c.bf16 %v2355, %v2355
    %v2357 = vld [vmem:[%s6] sm:$0xf]
    %v2358 = vld [vmem:[%s6 + $0x4] sm:$0xf]
    %v2359 = vld [vmem:[%s6 + $0x8] sm:$0xf]
    %v2360 = vld [vmem:[%s6 + $0xc] sm:$0xf]
    %v2361 = vld [vmem:[%s6 + $0x10] sm:$0xf]
    %v2362 = vld [vmem:[%s6 + $0x14] sm:$0xf]
    %v2363 = vld [vmem:[%s6 + $0x18] sm:$0xf]
    %v2364 = vld [vmem:[%s6 + $0x1c] sm:$0xf]
    %v2365 = vld [vmem:[%s6 + $0x20] sm:$0xf]
    %v2366 = vld [vmem:[%s6 + $0x24] sm:$0xf]
    %v2367 = vld [vmem:[%s6 + $0x28] sm:$0xf]
    %v2368 = vld [vmem:[%s6 + $0x2c] sm:$0xf]
    %v2369 = vld [vmem:[%s6 + $0x30] sm:$0xf]
    %v2370 = vld [vmem:[%s6 + $0x34] sm:$0xf]
    %v2371 = vld [vmem:[%s6 + $0x38] sm:$0xf]
    %v2372 = vld [vmem:[%s6 + $0x3c] sm:$0xf]
    %v2389 = vunpack.c.l.b16 %v2357
    %v2390 = vunpack.c.l.b16 %v2358
    %v2391 = vunpack.c.l.b16 %v2359
    %v2392 = vunpack.c.l.b16 %v2360
    %v2393 = vunpack.c.l.b16 %v2361
    %v2394 = vunpack.c.l.b16 %v2362
    %v2395 = vunpack.c.l.b16 %v2363
    %v2396 = vunpack.c.l.b16 %v2364
    %v2397 = vunpack.c.l.b16 %v2365
    %v2398 = vunpack.c.l.b16 %v2366
    %v2399 = vunpack.c.l.b16 %v2367
    %v2400 = vunpack.c.l.b16 %v2368
    %v2401 = vunpack.c.l.b16 %v2369
    %v2402 = vunpack.c.l.b16 %v2370
    %v2403 = vunpack.c.l.b16 %v2371
    %v2404 = vunpack.c.l.b16 %v2372
    %v2405 = vpack.c.b16 %v2390, %v2389
    %v2406 = vpack.c.b16 %v2392, %v2391
    %v2407 = vpack.c.b16 %v2394, %v2393
    %v2408 = vpack.c.b16 %v2396, %v2395
    %v2409 = vpack.c.b16 %v2398, %v2397
    %v2410 = vpack.c.b16 %v2400, %v2399
    %v2411 = vpack.c.b16 %v2402, %v2401
    %v2412 = vpack.c.b16 %v2404, %v2403
    %2421 = vmatpush.bf16.msra.mxu0 %v2412
    %2422 = vmatpush.bf16.msra.mxu0 %v2411
    %2423 = vmatpush.bf16.msra.mxu0 %v2410
    %2424 = vmatpush.bf16.msra.mxu0 %v2409
    %2425 = vmatpush.bf16.msra.mxu0 %v2408
    %2426 = vmatpush.bf16.msra.mxu0 %v2407
    %2427 = vmatpush.bf16.msra.mxu0 %v2406
    %2428 = vmatpush.bf16.msra.mxu0 %v2405
    %2429 = vmatmul.bf16.gmra.mxu0 %v2356
    %v2430 = vpop.f32.mrf.mxu0
    %v2431 = vadd.f32 0.0, %v2430
    %v2432 = vpop.f32.mrf.mxu0
    %2433 = vdwg.mxu0
    %v2434 = vld [vmem:[%s9 + $0x5] ss:$0 sm:$0xff]
    %v2435 = vpack.c.bf16 %v2431, %v2431
    %v2436 = vpack.c.bf16 %v2434, %v2434
    %v2437 = vunpack.c.l.bf16 %v2435
    %v2438 = vunpack.c.l.bf16 %v2436
    %v2439 = vadd.f32 %v2437, %v2438
    %v2440 = vpack.c.bf16 %v2439, %v2439
    %v2441 = vunpack.c.l.bf16 %v2440
    %v2442 = vmax.f32 %v2441, 0.0
    %v2443 = vpack.c.bf16 %v2442, %v2442
    %v2444 = vld [vmem:[%s7] sm:$0xf]
    %v2445 = vld [vmem:[%s7 + $0x4] sm:$0xf]
    %v2446 = vld [vmem:[%s7 + $0x8] sm:$0xf]
    %v2447 = vld [vmem:[%s7 + $0xc] sm:$0xf]
    %v2448 = vld [vmem:[%s7 + $0x10] sm:$0xf]
    %v2449 = vld [vmem:[%s7 + $0x14] sm:$0xf]
    %v2450 = vld [vmem:[%s7 + $0x18] sm:$0xf]
    %v2451 = vld [vmem:[%s7 + $0x1c] sm:$0xf]
    %v2460 = vunpack.c.l.b16 %v2444
    %v2461 = vunpack.c.l.b16 %v2445
    %v2462 = vunpack.c.l.b16 %v2446
    %v2463 = vunpack.c.l.b16 %v2447
    %v2464 = vunpack.c.l.b16 %v2448
    %v2465 = vunpack.c.l.b16 %v2449
    %v2466 = vunpack.c.l.b16 %v2450
    %v2467 = vunpack.c.l.b16 %v2451
    %v2468 = vpack.c.b16 %v2461, %v2460
    %v2469 = vpack.c.b16 %v2463, %v2462
    %v2470 = vpack.c.b16 %v2465, %v2464
    %v2471 = vpack.c.b16 %v2467, %v2466
    %v2477 = vsel %vm226, %v2443, 0
    %2479 = vmatpush.bf16.msra.mxu0 0
    %2480 = vmatpush.bf16.msra.mxu0 0
    %2481 = vmatpush.bf16.msra.mxu0 0
    %2482 = vmatpush.bf16.msra.mxu0 0
    %2483 = vmatpush.bf16.msra.mxu0 %v2471
    %2484 = vmatpush.bf16.msra.mxu0 %v2470
    %2485 = vmatpush.bf16.msra.mxu0 %v2469
    %2486 = vmatpush.bf16.msra.mxu0 %v2468
    %2487 = vmatmul.bf16.gmra.mxu0 %v2477
    %v2488 = vpop.f32.mrf.mxu0
    %v2489 = vadd.f32 0.0, %v2488
    %v2490 = vpop.f32.mrf.mxu0
    %2491 = vdwg.mxu0
    %v2492 = vld [vmem:[%s9 + $0x6] ss:$0 sm:$0xff]
    %v2493 = vpack.c.bf16 %v2489, %v2489
    %v2494 = vpack.c.bf16 %v2492, %v2492
    %v2495 = vunpack.c.l.bf16 %v2493
    %v2496 = vunpack.c.l.bf16 %v2494
    %v2497 = vadd.f32 %v2495, %v2496
    %v2498 = vpack.c.bf16 %v2497, %v2497
    %v2499 = vunpack.c.l.bf16 %v2498
    %v2500 = vmax.f32 %v2499, 0.0
    %v2501 = vpack.c.bf16 %v2500, %v2500
    %v2502 = vld [vmem:[%s9 + $0x7] ss:$0 sm:$0xff]
    %v2503 = vld [vmem:[%s8] sm:$0xf]
    %v2504 = vld [vmem:[%s8 + $0x4] sm:$0xf]
    %v2505 = vld [vmem:[%s8 + $0x8] sm:$0xf]
    %v2506 = vld [vmem:[%s8 + $0xc] sm:$0xf]
    %v2507 = vld [vmem:[%s8 + $0x10] sm:$0xf]
    %v2508 = vld [vmem:[%s8 + $0x14] sm:$0xf]
    %v2509 = vld [vmem:[%s8 + $0x18] sm:$0xf]
    %v2510 = vld [vmem:[%s8 + $0x1c] sm:$0xf]
    %v2519 = vunpack.c.l.b16 %v2503
    %v2520 = vunpack.c.l.b16 %v2504
    %v2521 = vunpack.c.l.b16 %v2505
    %v2522 = vunpack.c.l.b16 %v2506
    %v2523 = vunpack.c.l.b16 %v2507
    %v2524 = vunpack.c.l.b16 %v2508
    %v2525 = vunpack.c.l.b16 %v2509
    %v2526 = vunpack.c.l.b16 %v2510
    %v2527 = vpack.c.b16 %v2520, %v2519
    %v2528 = vpack.c.b16 %v2522, %v2521
    %v2529 = vpack.c.b16 %v2524, %v2523
    %v2530 = vpack.c.b16 %v2526, %v2525
    %v2536 = vsel %vm226, %v2501, 0
    %2538 = vmatpush.bf16.msra.mxu0 0
    %2539 = vmatpush.bf16.msra.mxu0 0
    %2540 = vmatpush.bf16.msra.mxu0 0
    %2541 = vmatpush.bf16.msra.mxu0 0
    %2542 = vmatpush.bf16.msra.mxu0 %v2530
    %2543 = vmatpush.bf16.msra.mxu0 %v2529
    %2544 = vmatpush.bf16.msra.mxu0 %v2528
    %2545 = vmatpush.bf16.msra.mxu0 %v2527
    %2546 = vmatmul.bf16.gmra.mxu0 %v2536
    %v2547 = vpop.f32.mrf.mxu0
    %v2548 = vadd.f32 %v2502, %v2547
    %v2549 = vpop.f32.mrf.mxu0
    %2550 = vdwg.mxu0
    %2551 = vst [vmem:[#allocation13] sm:$0xff] %v2548
    // Predicated region
    $region66: #{tpu_custom_call.1} parent=1 // pred_check
      _
    $region67: #{tpu_custom_call.1} parent=1 // pred_check_branch
      %2553 = sbr.rel (0) target = $region69
    $region68: #{tpu_custom_call.1} parent=1 // pred_region
      %2555 = vsyncadd [#allocation4], 0
      %s2557 = sshll.u32 [#allocation13], 4
      %s2558 = int_to_ptr.vmem [resolvable:$true] %s2557
      %s2559 = sshll.u32 %s10, 4
      %s2560 = int_to_ptr.hbm [resolvable:$true] %s2559
      %2562 = dma.vmem_to_hbm [thread:$0]  %s2558, 128, %s2560, [#allocation4]
    $region69: #{tpu_custom_call.1} parent=1 // pred_fallthru
      _
    // Predicated region
    $region70: #{tpu_custom_call.1} parent=1 // pred_check
      _
    $region71: #{tpu_custom_call.1} parent=1 // pred_check_branch
      %2564 = sbr.rel (0) target = $region73
    $region72: #{tpu_custom_call.1} parent=1 // pred_region
      %2566 = dma.done [#allocation4], 128
    $region73: #{tpu_custom_call.1} parent=1 // pred_fallthru
      _
    %2567 = vsyncpa [#allocation3], 1
    %2568 = vsyncpa [#allocation6], 1
    %2569 = vsyncpa [#allocation9], 1
    %2570 = vsyncpa [#allocation12], 1
    %2571 = vsyncpa [#allocation4], 1

</llo_original>
